<compile_context>
chip_gen: v7x
topology: tpu7x:2x2x1
jax: 0.10.0
libtpu: 0.0.40
codegen_flags: <defaults>
</compile_context>

<pallas_src>
import functools
import math

import jax
import jax.numpy as jnp
from jax import lax
from jax.experimental import pallas as pl
from jax.experimental.pallas import tpu as pltpu

D = 96            # input_dim (simple_neural_network(96))
H = 64            # fc1 hidden width (sublane axis: multiple of 8 is enough)
DP = 128          # lane-padded input_dim
B1_ROW = 2 * H    # row of b1 inside the packed parameter buffer (=128)
B2_ROW = 2 * H + 8  # row of b2 inside the packed parameter buffer (=136)
P_ROWS = 2 * H + 16  # packed parameter buffer rows (=144)

RMSE_EPS = 1e-6
ADAM_LR = 1e-4
ADAM_B1 = 0.9
ADAM_B2 = 0.999
ADAM_EPS = 1e-8


# ---------- small dot_general helpers (avoid in-kernel transposes) ----------
def _mm_ct(a, b):   # a:(M,K), b:(N,K) -> (M,N)   == a @ b.T
    return lax.dot_general(a, b, (((1,), (1,)), ((), ())),
                           preferred_element_type=jnp.float32)


def _mm_tc(a, b):   # a:(K,M), b:(K,N) -> (M,N)   == a.T @ b
    return lax.dot_general(a, b, (((0,), (0,)), ((), ())),
                           preferred_element_type=jnp.float32)


def _mm(a, b):      # a:(M,K), b:(K,N) -> (M,N)
    return lax.dot_general(a, b, (((1,), (0,)), ((), ())),
                           preferred_element_type=jnp.float32)


# ------------------------------ fused Pallas kernel --------------------------
def _fused_kernel(sx_ref, sy_ref, qx_ref, p_ref, out_ref,
                  mw1_ref, vw1_ref, mb1_ref, vb1_ref,
                  mw2_ref, vw2_ref, mb2_ref, vb2_ref,
                  *, num_local_update):
    """All adaptation steps + Adam + final query predict in one kernel.

    Shapes (all f32):
      sx (Ns, DP)  sy (Ns, 1)  qx (Nq, DP)
      p  (P_ROWS, DP) packed params: rows [0:H]=w1, [H:2H]=w2T,
                      row B1_ROW = b1 (lanes 0:H), row B2_ROW = b2 (lanes 0:D)
      out (Nq, 128) -- prediction broadcast across lanes (lane-dense store).
    """
    sx = sx_ref[...]
    sy = sy_ref[...]
    qx = qx_ref[...]
    n = sx.shape[0]
    inv_n = jnp.float32(1.0 / n)

    # ---- unpack parameters (values carried through the unrolled loop) ----
    w1 = p_ref[0:H, :]                          # (H, DP)
    w2t = p_ref[H:2 * H, :]                     # (H, DP)  fc2 weight, transposed
    b1 = p_ref[B1_ROW:B1_ROW + 1, :][:, :H]     # (1, H)
    b2 = p_ref[B2_ROW:B2_ROW + 1, :]            # (1, DP)

    def adam(p, g, m_ref, v_ref, t):
        # bias-correction factors folded to compile-time Python scalars
        step_scale = ADAM_LR / (1.0 - ADAM_B1 ** t)
        sqrt_bc2 = 1.0 / math.sqrt(1.0 - ADAM_B2 ** t)
        if t == 1:                               # scratch is uninitialized
            m = (1.0 - ADAM_B1) * g
            v = (1.0 - ADAM_B2) * (g * g)
        else:
            m = ADAM_B1 * m_ref[...] + (1.0 - ADAM_B1) * g
            v = ADAM_B2 * v_ref[...] + (1.0 - ADAM_B2) * (g * g)
        if t < num_local_update:                 # last step never reads m/v
            m_ref[...] = m
            v_ref[...] = v
        # exact division (matches torch Adam; cheap at these sizes)
        return p - step_scale * (m / (jnp.sqrt(v) * sqrt_bc2 + ADAM_EPS))

    for t in range(1, num_local_update + 1):     # fully unrolled, static t
        # ---- forward ----
        z1 = _mm_ct(sx, w1) + b1                 # (Ns, H)
        h = jnp.maximum(z1, 0.0)                 # ReLU
        z2 = _mm(h, w2t) + b2                    # (Ns, DP)
        o = jax.nn.sigmoid(z2)
        u = jnp.mean(o, axis=0, keepdims=True)   # (1, DP)  user_rep
        # yhat = x @ user_rep -> VPU mul + lane reduce (skip 1-col MXU matmul)
        yhat = jnp.sum(sx * u, axis=1, keepdims=True)   # (Ns, 1)
        diff = yhat - sy
        mse = jnp.mean(diff * diff)
        inv_loss = lax.rsqrt(mse + RMSE_EPS)     # 1/sqrt(mse+eps) on EUP

        # ---- backward (RMSELoss of x @ mean(model(x),0) vs y) ----
        dyhat = diff * (inv_n * inv_loss)                   # (Ns, 1)
        du = jnp.sum(sx * dyhat, axis=0, keepdims=True)     # (1, DP)
        dz2 = (du * inv_n) * o * (1.0 - o)                  # mean- & sigmoid-bwd
        gw2t = _mm_tc(h, dz2)                               # (H, DP)
        gb2 = jnp.sum(dz2, axis=0, keepdims=True)           # (1, DP)
        dh = _mm_ct(dz2, w2t)                               # (Ns, H)
        dz1 = dh * (z1 > 0.0).astype(jnp.float32)           # ReLU bwd
        gw1 = _mm_tc(dz1, sx)                               # (H, DP)
        gb1 = jnp.sum(dz1, axis=0, keepdims=True)           # (1, H)

        # ---- Adam(lr=1e-4) ----
        w1 = adam(w1, gw1, mw1_ref, vw1_ref, t)
        b1 = adam(b1, gb1, mb1_ref, vb1_ref, t)
        w2t = adam(w2t, gw2t, mw2_ref, vw2_ref, t)
        b2 = adam(b2, gb2, mb2_ref, vb2_ref, t)

    # ---- final query prediction with adapted weights ----
    z1q = _mm_ct(qx, w1) + b1
    hq = jnp.maximum(z1q, 0.0)
    z2q = _mm(hq, w2t) + b2
    oq = jax.nn.sigmoid(z2q)
    uq = jnp.mean(oq, axis=0, keepdims=True)               # (1, DP)
    yq = jnp.sum(qx * uq, axis=1, keepdims=True)           # (Nq, 1)
    out_ref[...] = jnp.broadcast_to(yq, out_ref.shape)     # lane-dense store


# ------------------------------ host wrappers ---------------------------------
def pack_params(params):
    """Pad + pack the 4 parameter tensors into one (P_ROWS, DP) buffer.

    Done ONCE outside the per-call hot path (hoisted padding, 1 input DMA).
    """
    w1 = params["w1"].astype(jnp.float32)          # (H, D)
    w2t = params["w2"].astype(jnp.float32).T       # (H, D)
    b1 = params["b1"].astype(jnp.float32)          # (1, H)
    b2 = params["b2"].astype(jnp.float32)          # (1, D)
    blocks = [
        jnp.pad(w1, ((0, 0), (0, DP - D))),        # rows [0:H]
        jnp.pad(w2t, ((0, 0), (0, DP - D))),       # rows [H:2H]
        jnp.pad(b1, ((0, 7), (0, DP - H))),        # row B1_ROW (8-row block)
        jnp.pad(b2, ((0, 7), (0, DP - D))),        # row B2_ROW (8-row block)
    ]
    return jnp.concatenate(blocks, axis=0)         # (P_ROWS, DP)


@functools.partial(jax.jit, static_argnums=(4,))
def simple_meta_learning_forward(packed_params, support_x, support_y, query_x,
                                 num_local_update):
    """Functional equivalent of simple_meta_learning.forward (1 pallas_call)."""
    nq = query_x.shape[0]
    sxp = jnp.pad(support_x.astype(jnp.float32), ((0, 0), (0, DP - D)))
    qxp = jnp.pad(query_x.astype(jnp.float32), ((0, 0), (0, DP - D)))
    syp = support_y.astype(jnp.float32)

    kernel = functools.partial(_fused_kernel,
                               num_local_update=int(num_local_update))
    vmem = pl.BlockSpec(memory_space=pltpu.MemorySpace.VMEM)
    f32 = jnp.float32
    out = pl.pallas_call(
        kernel,
        out_shape=jax.ShapeDtypeStruct((nq, DP), f32),
        in_specs=[vmem] * 4,
        out_specs=vmem,
        scratch_shapes=[
            pltpu.VMEM((H, DP), f32), pltpu.VMEM((H, DP), f32),   # m/v w1
            pltpu.VMEM((1, H), f32), pltpu.VMEM((1, H), f32),     # m/v b1
            pltpu.VMEM((H, DP), f32), pltpu.VMEM((H, DP), f32),   # m/v w2T
            pltpu.VMEM((1, DP), f32), pltpu.VMEM((1, DP), f32),   # m/v b2
        ],
    )(sxp, syp, qxp, packed_params)
    # torch.matmul(query_x, user_rep) returns a 1-D (Nq,) tensor
    return out[:, 0]


# ------------------------------ pure-JAX reference ---------------------------
def _ref_model(x, w1, b1, w2, b2):
    h = jnp.maximum(x @ w1.T + b1, 0.0)
    return jax.nn.sigmoid(h @ w2.T + b2)


def _ref_loss(p, x, y):
    u = jnp.mean(_ref_model(x, p["w1"], p["b1"], p["w2"], p["b2"]), axis=0,
                 keepdims=True)
    yhat = x @ u.T
    return jnp.sqrt(jnp.mean((yhat - y) ** 2) + RMSE_EPS)


def _adam_step_ref(p, g, m, v, t):
    m = ADAM_B1 * m + (1.0 - ADAM_B1) * g
    v = ADAM_B2 * v + (1.0 - ADAM_B2) * (g * g)
    mhat = m / (1.0 - ADAM_B1 ** t)
    vhat = v / (1.0 - ADAM_B2 ** t)
    p = p - ADAM_LR * mhat / (jnp.sqrt(vhat) + ADAM_EPS)
    return p, m, v


def reference_forward(params, sx, sy, qx, num_local_update):
    p = dict(params)
    m = {k: jnp.zeros_like(val) for k, val in p.items()}
    v = {k: jnp.zeros_like(val) for k, val in p.items()}
    for t in range(1, num_local_update + 1):
        g = jax.grad(_ref_loss)(p, sx, sy)
        for k in p:
            p[k], m[k], v[k] = _adam_step_ref(p[k], g[k], m[k], v[k], float(t))
    u = jnp.mean(_ref_model(qx, p["w1"], p["b1"], p["w2"], p["b2"]), axis=0)
    return qx @ u


# ------------------------------------ main ------------------------------------
if __name__ == "__main__":
    key = jax.random.PRNGKey(0)
    k1, k2, k3, k4, k5, k6, k7 = jax.random.split(key, 7)

    # deterministic nn.Linear-style init (U(-1/sqrt(fan_in), 1/sqrt(fan_in)))
    bd = 1.0 / (D ** 0.5)
    bh = 1.0 / (H ** 0.5)
    params = {
        "w1": jax.random.uniform(k1, (H, D), jnp.float32, -bd, bd),
        "b1": jax.random.uniform(k2, (1, H), jnp.float32, -bd, bd),
        "w2": jax.random.uniform(k3, (D, H), jnp.float32, -bh, bh),
        "b2": jax.random.uniform(k4, (1, D), jnp.float32, -bh, bh),
    }

    n_support, n_query = 8, 8
    support_x = jax.random.normal(k5, (n_support, D), jnp.float32)
    support_y = jax.random.normal(k6, (n_support, 1), jnp.float32)
    query_x = jax.random.normal(k7, (n_query, D), jnp.float32)
    num_local_update = 3

    packed = pack_params(params)   # one-time padding/packing (hoisted)

    pred = simple_meta_learning_forward(packed, support_x, support_y, query_x,
                                        num_local_update)
    pred = jax.block_until_ready(pred)

    ref = reference_forward(params, support_x, support_y, query_x,
                            num_local_update)
    assert pred.shape == (n_query,)
    assert jnp.allclose(pred, ref, atol=1e-3, rtol=1e-3), (pred, ref)

    print("KERNEL_OK")
</pallas_src>

<mosaic_0001>
module attributes {stable_mosaic.version = 11 : i64} {
  func.func @_fused_kernel(%arg0: memref<8x128xf32, #tpu.memory_space<vmem>>, %arg1: memref<8x1xf32, #tpu.memory_space<vmem>>, %arg2: memref<8x128xf32, #tpu.memory_space<vmem>>, %arg3: memref<144x128xf32, #tpu.memory_space<vmem>>, %arg4: memref<8x128xf32, #tpu.memory_space<vmem>>, %arg5: memref<64x128xf32, #tpu.memory_space<vmem>>, %arg6: memref<64x128xf32, #tpu.memory_space<vmem>>, %arg7: memref<1x64xf32, #tpu.memory_space<vmem>>, %arg8: memref<1x64xf32, #tpu.memory_space<vmem>>, %arg9: memref<64x128xf32, #tpu.memory_space<vmem>>, %arg10: memref<64x128xf32, #tpu.memory_space<vmem>>, %arg11: memref<1x128xf32, #tpu.memory_space<vmem>>, %arg12: memref<1x128xf32, #tpu.memory_space<vmem>>) attributes {dimension_semantics = [], scalar_prefetch = 0 : i64, scratch_operands = 8 : i64, tpu.core_type = #tpu.core_type<tc>} {
    %c0 = arith.constant 0 : index
    %c0_0 = arith.constant 0 : index
    %0 = vector.load %arg0[%c0, %c0_0] : memref<8x128xf32, #tpu.memory_space<vmem>>, vector<8x128xf32>
    %c0_1 = arith.constant 0 : index
    %c0_2 = arith.constant 0 : index
    %1 = vector.load %arg1[%c0_1, %c0_2] : memref<8x1xf32, #tpu.memory_space<vmem>>, vector<8x1xf32>
    %c0_3 = arith.constant 0 : index
    %c0_4 = arith.constant 0 : index
    %2 = vector.load %arg2[%c0_3, %c0_4] : memref<8x128xf32, #tpu.memory_space<vmem>>, vector<8x128xf32>
    %c0_5 = arith.constant 0 : index
    %c0_6 = arith.constant 0 : index
    %3 = vector.load %arg3[%c0_5, %c0_6] : memref<144x128xf32, #tpu.memory_space<vmem>>, vector<64x128xf32>
    %c64 = arith.constant 64 : index
    %c0_7 = arith.constant 0 : index
    %4 = vector.load %arg3[%c64, %c0_7] : memref<144x128xf32, #tpu.memory_space<vmem>>, vector<64x128xf32>
    %c128 = arith.constant 128 : index
    %c0_8 = arith.constant 0 : index
    %5 = vector.load %arg3[%c128, %c0_8] : memref<144x128xf32, #tpu.memory_space<vmem>>, vector<1x128xf32>
    %6 = vector.extract_strided_slice %5 {offsets = [0, 0], sizes = [1, 64], strides = [1, 1]} : vector<1x128xf32> to vector<1x64xf32>
    %c136 = arith.constant 136 : index
    %c0_9 = arith.constant 0 : index
    %7 = vector.load %arg3[%c136, %c0_9] : memref<144x128xf32, #tpu.memory_space<vmem>>, vector<1x128xf32>
    %cst = arith.constant dense<0.000000e+00> : vector<8x64xf32>
    %8 = tpu.matmul %0, %3, %cst {dimension_numbers = #tpu.dot_dimension_numbers<[1], [1], [0], [0], [0, 0, 1, 0], [], []>} : vector<8x128xf32>, vector<64x128xf32>, vector<8x64xf32> -> vector<8x64xf32>
    %9 = vector.broadcast %6 : vector<1x64xf32> to vector<8x64xf32>
    %10 = arith.addf %8, %9 : vector<8x64xf32>
    %cst_10 = arith.constant 0.000000e+00 : f32
    %11 = vector.broadcast %cst_10 : f32 to vector<8x64xf32>
    %12 = arith.maximumf %10, %11 : vector<8x64xf32>
    %cst_11 = arith.constant dense<0.000000e+00> : vector<8x128xf32>
    %13 = tpu.matmul %12, %4, %cst_11 {dimension_numbers = #tpu.dot_dimension_numbers<[1], [0], [0], [1], [0, 0, 1, 1], [], []>} : vector<8x64xf32>, vector<64x128xf32>, vector<8x128xf32> -> vector<8x128xf32>
    %14 = vector.broadcast %7 : vector<1x128xf32> to vector<8x128xf32>
    %15 = arith.addf %13, %14 : vector<8x128xf32>
    %16 = arith.negf %15 : vector<8x128xf32>
    %17 = math.exp %16 : vector<8x128xf32>
    %cst_12 = arith.constant 1.000000e+00 : f32
    %18 = vector.broadcast %cst_12 : f32 to vector<8x128xf32>
    %19 = arith.addf %18, %17 : vector<8x128xf32>
    %20 = arith.divf %18, %19 : vector<8x128xf32>
    %cst_13 = arith.constant dense<0.000000e+00> : vector<128xf32>
    %21 = vector.multi_reduction <add>, %20, %cst_13 [0] : vector<8x128xf32> to vector<128xf32>
    %22 = vector.shape_cast %21 : vector<128xf32> to vector<1x128xf32>
    %cst_14 = arith.constant 8.000000e+00 : f32
    %23 = vector.broadcast %cst_14 : f32 to vector<1x128xf32>
    %24 = arith.divf %22, %23 : vector<1x128xf32>
    %25 = vector.broadcast %24 : vector<1x128xf32> to vector<8x128xf32>
    %26 = arith.mulf %0, %25 : vector<8x128xf32>
    %cst_15 = arith.constant dense<0.000000e+00> : vector<8xf32>
    %27 = vector.multi_reduction <add>, %26, %cst_15 [1] : vector<8x128xf32> to vector<8xf32>
    %28 = vector.shape_cast %27 : vector<8xf32> to vector<8x1xf32>
    %29 = arith.subf %28, %1 : vector<8x1xf32>
    %30 = arith.mulf %29, %29 : vector<8x1xf32>
    %31 = vector.shape_cast %30 : vector<8x1xf32> to vector<1x8x1xf32>
    %cst_16 = arith.constant dense<0.000000e+00> : vector<1xf32>
    %32 = vector.multi_reduction <add>, %31, %cst_16 [1, 2] : vector<1x8x1xf32> to vector<1xf32>
    %33 = vector.shape_cast %32 : vector<1xf32> to vector<1x1x1xf32>
    %34 = vector.extract %33[0, 0, 0] : f32 from vector<1x1x1xf32>
    %cst_17 = arith.constant 8.000000e+00 : f32
    %35 = arith.divf %34, %cst_17 : f32
    %cst_18 = arith.constant 9.99999997E-7 : f32
    %36 = arith.addf %35, %cst_18 : f32
    %37 = math.rsqrt %36 : f32
    %cst_19 = arith.constant 1.250000e-01 : f32
    %38 = arith.mulf %cst_19, %37 : f32
    %39 = vector.broadcast %38 : f32 to vector<8x1xf32>
    %40 = arith.mulf %29, %39 : vector<8x1xf32>
    %41 = vector.broadcast %40 : vector<8x1xf32> to vector<8x128xf32>
    %42 = arith.mulf %0, %41 : vector<8x128xf32>
    %cst_20 = arith.constant dense<0.000000e+00> : vector<128xf32>
    %43 = vector.multi_reduction <add>, %42, %cst_20 [0] : vector<8x128xf32> to vector<128xf32>
    %44 = vector.shape_cast %43 : vector<128xf32> to vector<1x128xf32>
    %cst_21 = arith.constant 1.250000e-01 : f32
    %45 = vector.broadcast %cst_21 : f32 to vector<1x128xf32>
    %46 = arith.mulf %44, %45 : vector<1x128xf32>
    %47 = vector.broadcast %46 : vector<1x128xf32> to vector<8x128xf32>
    %48 = arith.mulf %47, %20 : vector<8x128xf32>
    %cst_22 = arith.constant 1.000000e+00 : f32
    %49 = vector.broadcast %cst_22 : f32 to vector<8x128xf32>
    %50 = arith.subf %49, %20 : vector<8x128xf32>
    %51 = arith.mulf %48, %50 : vector<8x128xf32>
    %cst_23 = arith.constant dense<0.000000e+00> : vector<64x128xf32>
    %52 = tpu.matmul %12, %51, %cst_23 {dimension_numbers = #tpu.dot_dimension_numbers<[0], [0], [1], [1], [0, 1, 1, 1], [], []>} : vector<8x64xf32>, vector<8x128xf32>, vector<64x128xf32> -> vector<64x128xf32>
    %cst_24 = arith.constant dense<0.000000e+00> : vector<128xf32>
    %53 = vector.multi_reduction <add>, %51, %cst_24 [0] : vector<8x128xf32> to vector<128xf32>
    %54 = vector.shape_cast %53 : vector<128xf32> to vector<1x128xf32>
    %cst_25 = arith.constant dense<0.000000e+00> : vector<8x64xf32>
    %55 = tpu.matmul %51, %4, %cst_25 {dimension_numbers = #tpu.dot_dimension_numbers<[1], [1], [0], [0], [0, 0, 1, 0], [], []>} : vector<8x128xf32>, vector<64x128xf32>, vector<8x64xf32> -> vector<8x64xf32>
    %cst_26 = arith.constant 0.000000e+00 : f32
    %56 = vector.broadcast %cst_26 : f32 to vector<8x64xf32>
    %57 = arith.cmpf ogt, %10, %56 : vector<8x64xf32>
    %58 = arith.extui %57 : vector<8x64xi1> to vector<8x64xi32>
    %59 = arith.sitofp %58 : vector<8x64xi32> to vector<8x64xf32>
    %60 = arith.mulf %55, %59 : vector<8x64xf32>
    %cst_27 = arith.constant dense<0.000000e+00> : vector<64x128xf32>
    %61 = tpu.matmul %60, %0, %cst_27 {dimension_numbers = #tpu.dot_dimension_numbers<[0], [0], [1], [1], [0, 1, 1, 1], [], []>} : vector<8x64xf32>, vector<8x128xf32>, vector<64x128xf32> -> vector<64x128xf32>
    %cst_28 = arith.constant dense<0.000000e+00> : vector<64xf32>
    %62 = vector.multi_reduction <add>, %60, %cst_28 [0] : vector<8x64xf32> to vector<64xf32>
    %63 = vector.shape_cast %62 : vector<64xf32> to vector<1x64xf32>
    %cst_29 = arith.constant 1.000000e-01 : f32
    %64 = vector.broadcast %cst_29 : f32 to vector<64x128xf32>
    %65 = arith.mulf %64, %61 : vector<64x128xf32>
    %66 = arith.mulf %61, %61 : vector<64x128xf32>
    %cst_30 = arith.constant 1.000000e-03 : f32
    %67 = vector.broadcast %cst_30 : f32 to vector<64x128xf32>
    %68 = arith.mulf %67, %66 : vector<64x128xf32>
    %c0_31 = arith.constant 0 : index
    %c0_32 = arith.constant 0 : index
    %69 = vector.load %arg5[%c0_31, %c0_32] : memref<64x128xf32, #tpu.memory_space<vmem>>, vector<64x128xf32>
    tpu.vector_store %arg5[%c0_31, %c0_32], %65 {strides = array<i32>} : memref<64x128xf32, #tpu.memory_space<vmem>>, vector<64x128xf32>,
    %c0_33 = arith.constant 0 : index
    %c0_34 = arith.constant 0 : index
    %70 = vector.load %arg6[%c0_33, %c0_34] : memref<64x128xf32, #tpu.memory_space<vmem>>, vector<64x128xf32>
    tpu.vector_store %arg6[%c0_33, %c0_34], %68 {strides = array<i32>} : memref<64x128xf32, #tpu.memory_space<vmem>>, vector<64x128xf32>,
    %71 = math.sqrt %68 : vector<64x128xf32>
    %cst_35 = arith.constant 31.622776 : f32
    %72 = vector.broadcast %cst_35 : f32 to vector<64x128xf32>
    %73 = arith.mulf %71, %72 : vector<64x128xf32>
    %cst_36 = arith.constant 9.99999993E-9 : f32
    %74 = vector.broadcast %cst_36 : f32 to vector<64x128xf32>
    %75 = arith.addf %73, %74 : vector<64x128xf32>
    %76 = arith.divf %65, %75 : vector<64x128xf32>
    %cst_37 = arith.constant 1.000000e-03 : f32
    %77 = vector.broadcast %cst_37 : f32 to vector<64x128xf32>
    %78 = arith.mulf %77, %76 : vector<64x128xf32>
    %79 = arith.subf %3, %78 : vector<64x128xf32>
    %cst_38 = arith.constant 1.000000e-01 : f32
    %80 = vector.broadcast %cst_38 : f32 to vector<1x64xf32>
    %81 = arith.mulf %80, %63 : vector<1x64xf32>
    %82 = arith.mulf %63, %63 : vector<1x64xf32>
    %cst_39 = arith.constant 1.000000e-03 : f32
    %83 = vector.broadcast %cst_39 : f32 to vector<1x64xf32>
    %84 = arith.mulf %83, %82 : vector<1x64xf32>
    %c0_40 = arith.constant 0 : index
    %c0_41 = arith.constant 0 : index
    %85 = vector.load %arg7[%c0_40, %c0_41] : memref<1x64xf32, #tpu.memory_space<vmem>>, vector<1x64xf32>
    tpu.vector_store %arg7[%c0_40, %c0_41], %81 {strides = array<i32>} : memref<1x64xf32, #tpu.memory_space<vmem>>, vector<1x64xf32>,
    %c0_42 = arith.constant 0 : index
    %c0_43 = arith.constant 0 : index
    %86 = vector.load %arg8[%c0_42, %c0_43] : memref<1x64xf32, #tpu.memory_space<vmem>>, vector<1x64xf32>
    tpu.vector_store %arg8[%c0_42, %c0_43], %84 {strides = array<i32>} : memref<1x64xf32, #tpu.memory_space<vmem>>, vector<1x64xf32>,
    %87 = math.sqrt %84 : vector<1x64xf32>
    %cst_44 = arith.constant 31.622776 : f32
    %88 = vector.broadcast %cst_44 : f32 to vector<1x64xf32>
    %89 = arith.mulf %87, %88 : vector<1x64xf32>
    %cst_45 = arith.constant 9.99999993E-9 : f32
    %90 = vector.broadcast %cst_45 : f32 to vector<1x64xf32>
    %91 = arith.addf %89, %90 : vector<1x64xf32>
    %92 = arith.divf %81, %91 : vector<1x64xf32>
    %cst_46 = arith.constant 1.000000e-03 : f32
    %93 = vector.broadcast %cst_46 : f32 to vector<1x64xf32>
    %94 = arith.mulf %93, %92 : vector<1x64xf32>
    %95 = arith.subf %6, %94 : vector<1x64xf32>
    %cst_47 = arith.constant 1.000000e-01 : f32
    %96 = vector.broadcast %cst_47 : f32 to vector<64x128xf32>
    %97 = arith.mulf %96, %52 : vector<64x128xf32>
    %98 = arith.mulf %52, %52 : vector<64x128xf32>
    %cst_48 = arith.constant 1.000000e-03 : f32
    %99 = vector.broadcast %cst_48 : f32 to vector<64x128xf32>
    %100 = arith.mulf %99, %98 : vector<64x128xf32>
    %c0_49 = arith.constant 0 : index
    %c0_50 = arith.constant 0 : index
    %101 = vector.load %arg9[%c0_49, %c0_50] : memref<64x128xf32, #tpu.memory_space<vmem>>, vector<64x128xf32>
    tpu.vector_store %arg9[%c0_49, %c0_50], %97 {strides = array<i32>} : memref<64x128xf32, #tpu.memory_space<vmem>>, vector<64x128xf32>,
    %c0_51 = arith.constant 0 : index
    %c0_52 = arith.constant 0 : index
    %102 = vector.load %arg10[%c0_51, %c0_52] : memref<64x128xf32, #tpu.memory_space<vmem>>, vector<64x128xf32>
    tpu.vector_store %arg10[%c0_51, %c0_52], %100 {strides = array<i32>} : memref<64x128xf32, #tpu.memory_space<vmem>>, vector<64x128xf32>,
    %103 = math.sqrt %100 : vector<64x128xf32>
    %cst_53 = arith.constant 31.622776 : f32
    %104 = vector.broadcast %cst_53 : f32 to vector<64x128xf32>
    %105 = arith.mulf %103, %104 : vector<64x128xf32>
    %cst_54 = arith.constant 9.99999993E-9 : f32
    %106 = vector.broadcast %cst_54 : f32 to vector<64x128xf32>
    %107 = arith.addf %105, %106 : vector<64x128xf32>
    %108 = arith.divf %97, %107 : vector<64x128xf32>
    %cst_55 = arith.constant 1.000000e-03 : f32
    %109 = vector.broadcast %cst_55 : f32 to vector<64x128xf32>
    %110 = arith.mulf %109, %108 : vector<64x128xf32>
    %111 = arith.subf %4, %110 : vector<64x128xf32>
    %cst_56 = arith.constant 1.000000e-01 : f32
    %112 = vector.broadcast %cst_56 : f32 to vector<1x128xf32>
    %113 = arith.mulf %112, %54 : vector<1x128xf32>
    %114 = arith.mulf %54, %54 : vector<1x128xf32>
    %cst_57 = arith.constant 1.000000e-03 : f32
    %115 = vector.broadcast %cst_57 : f32 to vector<1x128xf32>
    %116 = arith.mulf %115, %114 : vector<1x128xf32>
    %c0_58 = arith.constant 0 : index
    %c0_59 = arith.constant 0 : index
    %117 = vector.load %arg11[%c0_58, %c0_59] : memref<1x128xf32, #tpu.memory_space<vmem>>, vector<1x128xf32>
    tpu.vector_store %arg11[%c0_58, %c0_59], %113 {strides = array<i32>} : memref<1x128xf32, #tpu.memory_space<vmem>>, vector<1x128xf32>,
    %c0_60 = arith.constant 0 : index
    %c0_61 = arith.constant 0 : index
    %118 = vector.load %arg12[%c0_60, %c0_61] : memref<1x128xf32, #tpu.memory_space<vmem>>, vector<1x128xf32>
    tpu.vector_store %arg12[%c0_60, %c0_61], %116 {strides = array<i32>} : memref<1x128xf32, #tpu.memory_space<vmem>>, vector<1x128xf32>,
    %119 = math.sqrt %116 : vector<1x128xf32>
    %cst_62 = arith.constant 31.622776 : f32
    %120 = vector.broadcast %cst_62 : f32 to vector<1x128xf32>
    %121 = arith.mulf %119, %120 : vector<1x128xf32>
    %cst_63 = arith.constant 9.99999993E-9 : f32
    %122 = vector.broadcast %cst_63 : f32 to vector<1x128xf32>
    %123 = arith.addf %121, %122 : vector<1x128xf32>
    %124 = arith.divf %113, %123 : vector<1x128xf32>
    %cst_64 = arith.constant 1.000000e-03 : f32
    %125 = vector.broadcast %cst_64 : f32 to vector<1x128xf32>
    %126 = arith.mulf %125, %124 : vector<1x128xf32>
    %127 = arith.subf %7, %126 : vector<1x128xf32>
    %cst_65 = arith.constant dense<0.000000e+00> : vector<8x64xf32>
    %128 = tpu.matmul %0, %79, %cst_65 {dimension_numbers = #tpu.dot_dimension_numbers<[1], [1], [0], [0], [0, 0, 1, 0], [], []>} : vector<8x128xf32>, vector<64x128xf32>, vector<8x64xf32> -> vector<8x64xf32>
    %129 = vector.broadcast %95 : vector<1x64xf32> to vector<8x64xf32>
    %130 = arith.addf %128, %129 : vector<8x64xf32>
    %cst_66 = arith.constant 0.000000e+00 : f32
    %131 = vector.broadcast %cst_66 : f32 to vector<8x64xf32>
    %132 = arith.maximumf %130, %131 : vector<8x64xf32>
    %cst_67 = arith.constant dense<0.000000e+00> : vector<8x128xf32>
    %133 = tpu.matmul %132, %111, %cst_67 {dimension_numbers = #tpu.dot_dimension_numbers<[1], [0], [0], [1], [0, 0, 1, 1], [], []>} : vector<8x64xf32>, vector<64x128xf32>, vector<8x128xf32> -> vector<8x128xf32>
    %134 = vector.broadcast %127 : vector<1x128xf32> to vector<8x128xf32>
    %135 = arith.addf %133, %134 : vector<8x128xf32>
    %136 = arith.negf %135 : vector<8x128xf32>
    %137 = math.exp %136 : vector<8x128xf32>
    %cst_68 = arith.constant 1.000000e+00 : f32
    %138 = vector.broadcast %cst_68 : f32 to vector<8x128xf32>
    %139 = arith.addf %138, %137 : vector<8x128xf32>
    %140 = arith.divf %138, %139 : vector<8x128xf32>
    %cst_69 = arith.constant dense<0.000000e+00> : vector<128xf32>
    %141 = vector.multi_reduction <add>, %140, %cst_69 [0] : vector<8x128xf32> to vector<128xf32>
    %142 = vector.shape_cast %141 : vector<128xf32> to vector<1x128xf32>
    %cst_70 = arith.constant 8.000000e+00 : f32
    %143 = vector.broadcast %cst_70 : f32 to vector<1x128xf32>
    %144 = arith.divf %142, %143 : vector<1x128xf32>
    %145 = vector.broadcast %144 : vector<1x128xf32> to vector<8x128xf32>
    %146 = arith.mulf %0, %145 : vector<8x128xf32>
    %cst_71 = arith.constant dense<0.000000e+00> : vector<8xf32>
    %147 = vector.multi_reduction <add>, %146, %cst_71 [1] : vector<8x128xf32> to vector<8xf32>
    %148 = vector.shape_cast %147 : vector<8xf32> to vector<8x1xf32>
    %149 = arith.subf %148, %1 : vector<8x1xf32>
    %150 = arith.mulf %149, %149 : vector<8x1xf32>
    %151 = vector.shape_cast %150 : vector<8x1xf32> to vector<1x8x1xf32>
    %cst_72 = arith.constant dense<0.000000e+00> : vector<1xf32>
    %152 = vector.multi_reduction <add>, %151, %cst_72 [1, 2] : vector<1x8x1xf32> to vector<1xf32>
    %153 = vector.shape_cast %152 : vector<1xf32> to vector<1x1x1xf32>
    %154 = vector.extract %153[0, 0, 0] : f32 from vector<1x1x1xf32>
    %cst_73 = arith.constant 8.000000e+00 : f32
    %155 = arith.divf %154, %cst_73 : f32
    %cst_74 = arith.constant 9.99999997E-7 : f32
    %156 = arith.addf %155, %cst_74 : f32
    %157 = math.rsqrt %156 : f32
    %cst_75 = arith.constant 1.250000e-01 : f32
    %158 = arith.mulf %cst_75, %157 : f32
    %159 = vector.broadcast %158 : f32 to vector<8x1xf32>
    %160 = arith.mulf %149, %159 : vector<8x1xf32>
    %161 = vector.broadcast %160 : vector<8x1xf32> to vector<8x128xf32>
    %162 = arith.mulf %0, %161 : vector<8x128xf32>
    %cst_76 = arith.constant dense<0.000000e+00> : vector<128xf32>
    %163 = vector.multi_reduction <add>, %162, %cst_76 [0] : vector<8x128xf32> to vector<128xf32>
    %164 = vector.shape_cast %163 : vector<128xf32> to vector<1x128xf32>
    %cst_77 = arith.constant 1.250000e-01 : f32
    %165 = vector.broadcast %cst_77 : f32 to vector<1x128xf32>
    %166 = arith.mulf %164, %165 : vector<1x128xf32>
    %167 = vector.broadcast %166 : vector<1x128xf32> to vector<8x128xf32>
    %168 = arith.mulf %167, %140 : vector<8x128xf32>
    %cst_78 = arith.constant 1.000000e+00 : f32
    %169 = vector.broadcast %cst_78 : f32 to vector<8x128xf32>
    %170 = arith.subf %169, %140 : vector<8x128xf32>
    %171 = arith.mulf %168, %170 : vector<8x128xf32>
    %cst_79 = arith.constant dense<0.000000e+00> : vector<64x128xf32>
    %172 = tpu.matmul %132, %171, %cst_79 {dimension_numbers = #tpu.dot_dimension_numbers<[0], [0], [1], [1], [0, 1, 1, 1], [], []>} : vector<8x64xf32>, vector<8x128xf32>, vector<64x128xf32> -> vector<64x128xf32>
    %cst_80 = arith.constant dense<0.000000e+00> : vector<128xf32>
    %173 = vector.multi_reduction <add>, %171, %cst_80 [0] : vector<8x128xf32> to vector<128xf32>
    %174 = vector.shape_cast %173 : vector<128xf32> to vector<1x128xf32>
    %cst_81 = arith.constant dense<0.000000e+00> : vector<8x64xf32>
    %175 = tpu.matmul %171, %111, %cst_81 {dimension_numbers = #tpu.dot_dimension_numbers<[1], [1], [0], [0], [0, 0, 1, 0], [], []>} : vector<8x128xf32>, vector<64x128xf32>, vector<8x64xf32> -> vector<8x64xf32>
    %cst_82 = arith.constant 0.000000e+00 : f32
    %176 = vector.broadcast %cst_82 : f32 to vector<8x64xf32>
    %177 = arith.cmpf ogt, %130, %176 : vector<8x64xf32>
    %178 = arith.extui %177 : vector<8x64xi1> to vector<8x64xi32>
    %179 = arith.sitofp %178 : vector<8x64xi32> to vector<8x64xf32>
    %180 = arith.mulf %175, %179 : vector<8x64xf32>
    %cst_83 = arith.constant dense<0.000000e+00> : vector<64x128xf32>
    %181 = tpu.matmul %180, %0, %cst_83 {dimension_numbers = #tpu.dot_dimension_numbers<[0], [0], [1], [1], [0, 1, 1, 1], [], []>} : vector<8x64xf32>, vector<8x128xf32>, vector<64x128xf32> -> vector<64x128xf32>
    %cst_84 = arith.constant dense<0.000000e+00> : vector<64xf32>
    %182 = vector.multi_reduction <add>, %180, %cst_84 [0] : vector<8x64xf32> to vector<64xf32>
    %183 = vector.shape_cast %182 : vector<64xf32> to vector<1x64xf32>
    %c0_85 = arith.constant 0 : index
    %c0_86 = arith.constant 0 : index
    %184 = vector.load %arg5[%c0_85, %c0_86] : memref<64x128xf32, #tpu.memory_space<vmem>>, vector<64x128xf32>
    %cst_87 = arith.constant 0.899999976 : f32
    %185 = vector.broadcast %cst_87 : f32 to vector<64x128xf32>
    %186 = arith.mulf %185, %184 : vector<64x128xf32>
    %cst_88 = arith.constant 1.000000e-01 : f32
    %187 = vector.broadcast %cst_88 : f32 to vector<64x128xf32>
    %188 = arith.mulf %187, %181 : vector<64x128xf32>
    %189 = arith.addf %186, %188 : vector<64x128xf32>
    %c0_89 = arith.constant 0 : index
    %c0_90 = arith.constant 0 : index
    %190 = vector.load %arg6[%c0_89, %c0_90] : memref<64x128xf32, #tpu.memory_space<vmem>>, vector<64x128xf32>
    %cst_91 = arith.constant 9.990000e-01 : f32
    %191 = vector.broadcast %cst_91 : f32 to vector<64x128xf32>
    %192 = arith.mulf %191, %190 : vector<64x128xf32>
    %193 = arith.mulf %181, %181 : vector<64x128xf32>
    %cst_92 = arith.constant 1.000000e-03 : f32
    %194 = vector.broadcast %cst_92 : f32 to vector<64x128xf32>
    %195 = arith.mulf %194, %193 : vector<64x128xf32>
    %196 = arith.addf %192, %195 : vector<64x128xf32>
    %c0_93 = arith.constant 0 : index
    %c0_94 = arith.constant 0 : index
    %197 = vector.load %arg5[%c0_93, %c0_94] : memref<64x128xf32, #tpu.memory_space<vmem>>, vector<64x128xf32>
    tpu.vector_store %arg5[%c0_93, %c0_94], %189 {strides = array<i32>} : memref<64x128xf32, #tpu.memory_space<vmem>>, vector<64x128xf32>,
    %c0_95 = arith.constant 0 : index
    %c0_96 = arith.constant 0 : index
    %198 = vector.load %arg6[%c0_95, %c0_96] : memref<64x128xf32, #tpu.memory_space<vmem>>, vector<64x128xf32>
    tpu.vector_store %arg6[%c0_95, %c0_96], %196 {strides = array<i32>} : memref<64x128xf32, #tpu.memory_space<vmem>>, vector<64x128xf32>,
    %199 = math.sqrt %196 : vector<64x128xf32>
    %cst_97 = arith.constant 22.366272 : f32
    %200 = vector.broadcast %cst_97 : f32 to vector<64x128xf32>
    %201 = arith.mulf %199, %200 : vector<64x128xf32>
    %cst_98 = arith.constant 9.99999993E-9 : f32
    %202 = vector.broadcast %cst_98 : f32 to vector<64x128xf32>
    %203 = arith.addf %201, %202 : vector<64x128xf32>
    %204 = arith.divf %189, %203 : vector<64x128xf32>
    %cst_99 = arith.constant 5.26315765E-4 : f32
    %205 = vector.broadcast %cst_99 : f32 to vector<64x128xf32>
    %206 = arith.mulf %205, %204 : vector<64x128xf32>
    %207 = arith.subf %79, %206 : vector<64x128xf32>
    %c0_100 = arith.constant 0 : index
    %c0_101 = arith.constant 0 : index
    %208 = vector.load %arg7[%c0_100, %c0_101] : memref<1x64xf32, #tpu.memory_space<vmem>>, vector<1x64xf32>
    %cst_102 = arith.constant 0.899999976 : f32
    %209 = vector.broadcast %cst_102 : f32 to vector<1x64xf32>
    %210 = arith.mulf %209, %208 : vector<1x64xf32>
    %cst_103 = arith.constant 1.000000e-01 : f32
    %211 = vector.broadcast %cst_103 : f32 to vector<1x64xf32>
    %212 = arith.mulf %211, %183 : vector<1x64xf32>
    %213 = arith.addf %210, %212 : vector<1x64xf32>
    %c0_104 = arith.constant 0 : index
    %c0_105 = arith.constant 0 : index
    %214 = vector.load %arg8[%c0_104, %c0_105] : memref<1x64xf32, #tpu.memory_space<vmem>>, vector<1x64xf32>
    %cst_106 = arith.constant 9.990000e-01 : f32
    %215 = vector.broadcast %cst_106 : f32 to vector<1x64xf32>
    %216 = arith.mulf %215, %214 : vector<1x64xf32>
    %217 = arith.mulf %183, %183 : vector<1x64xf32>
    %cst_107 = arith.constant 1.000000e-03 : f32
    %218 = vector.broadcast %cst_107 : f32 to vector<1x64xf32>
    %219 = arith.mulf %218, %217 : vector<1x64xf32>
    %220 = arith.addf %216, %219 : vector<1x64xf32>
    %c0_108 = arith.constant 0 : index
    %c0_109 = arith.constant 0 : index
    %221 = vector.load %arg7[%c0_108, %c0_109] : memref<1x64xf32, #tpu.memory_space<vmem>>, vector<1x64xf32>
    tpu.vector_store %arg7[%c0_108, %c0_109], %213 {strides = array<i32>} : memref<1x64xf32, #tpu.memory_space<vmem>>, vector<1x64xf32>,
    %c0_110 = arith.constant 0 : index
    %c0_111 = arith.constant 0 : index
    %222 = vector.load %arg8[%c0_110, %c0_111] : memref<1x64xf32, #tpu.memory_space<vmem>>, vector<1x64xf32>
    tpu.vector_store %arg8[%c0_110, %c0_111], %220 {strides = array<i32>} : memref<1x64xf32, #tpu.memory_space<vmem>>, vector<1x64xf32>,
    %223 = math.sqrt %220 : vector<1x64xf32>
    %cst_112 = arith.constant 22.366272 : f32
    %224 = vector.broadcast %cst_112 : f32 to vector<1x64xf32>
    %225 = arith.mulf %223, %224 : vector<1x64xf32>
    %cst_113 = arith.constant 9.99999993E-9 : f32
    %226 = vector.broadcast %cst_113 : f32 to vector<1x64xf32>
    %227 = arith.addf %225, %226 : vector<1x64xf32>
    %228 = arith.divf %213, %227 : vector<1x64xf32>
    %cst_114 = arith.constant 5.26315765E-4 : f32
    %229 = vector.broadcast %cst_114 : f32 to vector<1x64xf32>
    %230 = arith.mulf %229, %228 : vector<1x64xf32>
    %231 = arith.subf %95, %230 : vector<1x64xf32>
    %c0_115 = arith.constant 0 : index
    %c0_116 = arith.constant 0 : index
    %232 = vector.load %arg9[%c0_115, %c0_116] : memref<64x128xf32, #tpu.memory_space<vmem>>, vector<64x128xf32>
    %cst_117 = arith.constant 0.899999976 : f32
    %233 = vector.broadcast %cst_117 : f32 to vector<64x128xf32>
    %234 = arith.mulf %233, %232 : vector<64x128xf32>
    %cst_118 = arith.constant 1.000000e-01 : f32
    %235 = vector.broadcast %cst_118 : f32 to vector<64x128xf32>
    %236 = arith.mulf %235, %172 : vector<64x128xf32>
    %237 = arith.addf %234, %236 : vector<64x128xf32>
    %c0_119 = arith.constant 0 : index
    %c0_120 = arith.constant 0 : index
    %238 = vector.load %arg10[%c0_119, %c0_120] : memref<64x128xf32, #tpu.memory_space<vmem>>, vector<64x128xf32>
    %cst_121 = arith.constant 9.990000e-01 : f32
    %239 = vector.broadcast %cst_121 : f32 to vector<64x128xf32>
    %240 = arith.mulf %239, %238 : vector<64x128xf32>
    %241 = arith.mulf %172, %172 : vector<64x128xf32>
    %cst_122 = arith.constant 1.000000e-03 : f32
    %242 = vector.broadcast %cst_122 : f32 to vector<64x128xf32>
    %243 = arith.mulf %242, %241 : vector<64x128xf32>
    %244 = arith.addf %240, %243 : vector<64x128xf32>
    %c0_123 = arith.constant 0 : index
    %c0_124 = arith.constant 0 : index
    %245 = vector.load %arg9[%c0_123, %c0_124] : memref<64x128xf32, #tpu.memory_space<vmem>>, vector<64x128xf32>
    tpu.vector_store %arg9[%c0_123, %c0_124], %237 {strides = array<i32>} : memref<64x128xf32, #tpu.memory_space<vmem>>, vector<64x128xf32>,
    %c0_125 = arith.constant 0 : index
    %c0_126 = arith.constant 0 : index
    %246 = vector.load %arg10[%c0_125, %c0_126] : memref<64x128xf32, #tpu.memory_space<vmem>>, vector<64x128xf32>
    tpu.vector_store %arg10[%c0_125, %c0_126], %244 {strides = array<i32>} : memref<64x128xf32, #tpu.memory_space<vmem>>, vector<64x128xf32>,
    %247 = math.sqrt %244 : vector<64x128xf32>
    %cst_127 = arith.constant 22.366272 : f32
    %248 = vector.broadcast %cst_127 : f32 to vector<64x128xf32>
    %249 = arith.mulf %247, %248 : vector<64x128xf32>
    %cst_128 = arith.constant 9.99999993E-9 : f32
    %250 = vector.broadcast %cst_128 : f32 to vector<64x128xf32>
    %251 = arith.addf %249, %250 : vector<64x128xf32>
    %252 = arith.divf %237, %251 : vector<64x128xf32>
    %cst_129 = arith.constant 5.26315765E-4 : f32
    %253 = vector.broadcast %cst_129 : f32 to vector<64x128xf32>
    %254 = arith.mulf %253, %252 : vector<64x128xf32>
    %255 = arith.subf %111, %254 : vector<64x128xf32>
    %c0_130 = arith.constant 0 : index
    %c0_131 = arith.constant 0 : index
    %256 = vector.load %arg11[%c0_130, %c0_131] : memref<1x128xf32, #tpu.memory_space<vmem>>, vector<1x128xf32>
    %cst_132 = arith.constant 0.899999976 : f32
    %257 = vector.broadcast %cst_132 : f32 to vector<1x128xf32>
    %258 = arith.mulf %257, %256 : vector<1x128xf32>
    %cst_133 = arith.constant 1.000000e-01 : f32
    %259 = vector.broadcast %cst_133 : f32 to vector<1x128xf32>
    %260 = arith.mulf %259, %174 : vector<1x128xf32>
    %261 = arith.addf %258, %260 : vector<1x128xf32>
    %c0_134 = arith.constant 0 : index
    %c0_135 = arith.constant 0 : index
    %262 = vector.load %arg12[%c0_134, %c0_135] : memref<1x128xf32, #tpu.memory_space<vmem>>, vector<1x128xf32>
    %cst_136 = arith.constant 9.990000e-01 : f32
    %263 = vector.broadcast %cst_136 : f32 to vector<1x128xf32>
    %264 = arith.mulf %263, %262 : vector<1x128xf32>
    %265 = arith.mulf %174, %174 : vector<1x128xf32>
    %cst_137 = arith.constant 1.000000e-03 : f32
    %266 = vector.broadcast %cst_137 : f32 to vector<1x128xf32>
    %267 = arith.mulf %266, %265 : vector<1x128xf32>
    %268 = arith.addf %264, %267 : vector<1x128xf32>
    %c0_138 = arith.constant 0 : index
    %c0_139 = arith.constant 0 : index
    %269 = vector.load %arg11[%c0_138, %c0_139] : memref<1x128xf32, #tpu.memory_space<vmem>>, vector<1x128xf32>
    tpu.vector_store %arg11[%c0_138, %c0_139], %261 {strides = array<i32>} : memref<1x128xf32, #tpu.memory_space<vmem>>, vector<1x128xf32>,
    %c0_140 = arith.constant 0 : index
    %c0_141 = arith.constant 0 : index
    %270 = vector.load %arg12[%c0_140, %c0_141] : memref<1x128xf32, #tpu.memory_space<vmem>>, vector<1x128xf32>
    tpu.vector_store %arg12[%c0_140, %c0_141], %268 {strides = array<i32>} : memref<1x128xf32, #tpu.memory_space<vmem>>, vector<1x128xf32>,
    %271 = math.sqrt %268 : vector<1x128xf32>
    %cst_142 = arith.constant 22.366272 : f32
    %272 = vector.broadcast %cst_142 : f32 to vector<1x128xf32>
    %273 = arith.mulf %271, %272 : vector<1x128xf32>
    %cst_143 = arith.constant 9.99999993E-9 : f32
    %274 = vector.broadcast %cst_143 : f32 to vector<1x128xf32>
    %275 = arith.addf %273, %274 : vector<1x128xf32>
    %276 = arith.divf %261, %275 : vector<1x128xf32>
    %cst_144 = arith.constant 5.26315765E-4 : f32
    %277 = vector.broadcast %cst_144 : f32 to vector<1x128xf32>
    %278 = arith.mulf %277, %276 : vector<1x128xf32>
    %279 = arith.subf %127, %278 : vector<1x128xf32>
    %cst_145 = arith.constant dense<0.000000e+00> : vector<8x64xf32>
    %280 = tpu.matmul %0, %207, %cst_145 {dimension_numbers = #tpu.dot_dimension_numbers<[1], [1], [0], [0], [0, 0, 1, 0], [], []>} : vector<8x128xf32>, vector<64x128xf32>, vector<8x64xf32> -> vector<8x64xf32>
    %281 = vector.broadcast %231 : vector<1x64xf32> to vector<8x64xf32>
    %282 = arith.addf %280, %281 : vector<8x64xf32>
    %cst_146 = arith.constant 0.000000e+00 : f32
    %283 = vector.broadcast %cst_146 : f32 to vector<8x64xf32>
    %284 = arith.maximumf %282, %283 : vector<8x64xf32>
    %cst_147 = arith.constant dense<0.000000e+00> : vector<8x128xf32>
    %285 = tpu.matmul %284, %255, %cst_147 {dimension_numbers = #tpu.dot_dimension_numbers<[1], [0], [0], [1], [0, 0, 1, 1], [], []>} : vector<8x64xf32>, vector<64x128xf32>, vector<8x128xf32> -> vector<8x128xf32>
    %286 = vector.broadcast %279 : vector<1x128xf32> to vector<8x128xf32>
    %287 = arith.addf %285, %286 : vector<8x128xf32>
    %288 = arith.negf %287 : vector<8x128xf32>
    %289 = math.exp %288 : vector<8x128xf32>
    %cst_148 = arith.constant 1.000000e+00 : f32
    %290 = vector.broadcast %cst_148 : f32 to vector<8x128xf32>
    %291 = arith.addf %290, %289 : vector<8x128xf32>
    %292 = arith.divf %290, %291 : vector<8x128xf32>
    %cst_149 = arith.constant dense<0.000000e+00> : vector<128xf32>
    %293 = vector.multi_reduction <add>, %292, %cst_149 [0] : vector<8x128xf32> to vector<128xf32>
    %294 = vector.shape_cast %293 : vector<128xf32> to vector<1x128xf32>
    %cst_150 = arith.constant 8.000000e+00 : f32
    %295 = vector.broadcast %cst_150 : f32 to vector<1x128xf32>
    %296 = arith.divf %294, %295 : vector<1x128xf32>
    %297 = vector.broadcast %296 : vector<1x128xf32> to vector<8x128xf32>
    %298 = arith.mulf %0, %297 : vector<8x128xf32>
    %cst_151 = arith.constant dense<0.000000e+00> : vector<8xf32>
    %299 = vector.multi_reduction <add>, %298, %cst_151 [1] : vector<8x128xf32> to vector<8xf32>
    %300 = vector.shape_cast %299 : vector<8xf32> to vector<8x1xf32>
    %301 = arith.subf %300, %1 : vector<8x1xf32>
    %302 = arith.mulf %301, %301 : vector<8x1xf32>
    %303 = vector.shape_cast %302 : vector<8x1xf32> to vector<1x8x1xf32>
    %cst_152 = arith.constant dense<0.000000e+00> : vector<1xf32>
    %304 = vector.multi_reduction <add>, %303, %cst_152 [1, 2] : vector<1x8x1xf32> to vector<1xf32>
    %305 = vector.shape_cast %304 : vector<1xf32> to vector<1x1x1xf32>
    %306 = vector.extract %305[0, 0, 0] : f32 from vector<1x1x1xf32>
    %cst_153 = arith.constant 8.000000e+00 : f32
    %307 = arith.divf %306, %cst_153 : f32
    %cst_154 = arith.constant 9.99999997E-7 : f32
    %308 = arith.addf %307, %cst_154 : f32
    %309 = math.rsqrt %308 : f32
    %cst_155 = arith.constant 1.250000e-01 : f32
    %310 = arith.mulf %cst_155, %309 : f32
    %311 = vector.broadcast %310 : f32 to vector<8x1xf32>
    %312 = arith.mulf %301, %311 : vector<8x1xf32>
    %313 = vector.broadcast %312 : vector<8x1xf32> to vector<8x128xf32>
    %314 = arith.mulf %0, %313 : vector<8x128xf32>
    %cst_156 = arith.constant dense<0.000000e+00> : vector<128xf32>
    %315 = vector.multi_reduction <add>, %314, %cst_156 [0] : vector<8x128xf32> to vector<128xf32>
    %316 = vector.shape_cast %315 : vector<128xf32> to vector<1x128xf32>
    %cst_157 = arith.constant 1.250000e-01 : f32
    %317 = vector.broadcast %cst_157 : f32 to vector<1x128xf32>
    %318 = arith.mulf %316, %317 : vector<1x128xf32>
    %319 = vector.broadcast %318 : vector<1x128xf32> to vector<8x128xf32>
    %320 = arith.mulf %319, %292 : vector<8x128xf32>
    %cst_158 = arith.constant 1.000000e+00 : f32
    %321 = vector.broadcast %cst_158 : f32 to vector<8x128xf32>
    %322 = arith.subf %321, %292 : vector<8x128xf32>
    %323 = arith.mulf %320, %322 : vector<8x128xf32>
    %cst_159 = arith.constant dense<0.000000e+00> : vector<64x128xf32>
    %324 = tpu.matmul %284, %323, %cst_159 {dimension_numbers = #tpu.dot_dimension_numbers<[0], [0], [1], [1], [0, 1, 1, 1], [], []>} : vector<8x64xf32>, vector<8x128xf32>, vector<64x128xf32> -> vector<64x128xf32>
    %cst_160 = arith.constant dense<0.000000e+00> : vector<128xf32>
    %325 = vector.multi_reduction <add>, %323, %cst_160 [0] : vector<8x128xf32> to vector<128xf32>
    %326 = vector.shape_cast %325 : vector<128xf32> to vector<1x128xf32>
    %cst_161 = arith.constant dense<0.000000e+00> : vector<8x64xf32>
    %327 = tpu.matmul %323, %255, %cst_161 {dimension_numbers = #tpu.dot_dimension_numbers<[1], [1], [0], [0], [0, 0, 1, 0], [], []>} : vector<8x128xf32>, vector<64x128xf32>, vector<8x64xf32> -> vector<8x64xf32>
    %cst_162 = arith.constant 0.000000e+00 : f32
    %328 = vector.broadcast %cst_162 : f32 to vector<8x64xf32>
    %329 = arith.cmpf ogt, %282, %328 : vector<8x64xf32>
    %330 = arith.extui %329 : vector<8x64xi1> to vector<8x64xi32>
    %331 = arith.sitofp %330 : vector<8x64xi32> to vector<8x64xf32>
    %332 = arith.mulf %327, %331 : vector<8x64xf32>
    %cst_163 = arith.constant dense<0.000000e+00> : vector<64x128xf32>
    %333 = tpu.matmul %332, %0, %cst_163 {dimension_numbers = #tpu.dot_dimension_numbers<[0], [0], [1], [1], [0, 1, 1, 1], [], []>} : vector<8x64xf32>, vector<8x128xf32>, vector<64x128xf32> -> vector<64x128xf32>
    %cst_164 = arith.constant dense<0.000000e+00> : vector<64xf32>
    %334 = vector.multi_reduction <add>, %332, %cst_164 [0] : vector<8x64xf32> to vector<64xf32>
    %335 = vector.shape_cast %334 : vector<64xf32> to vector<1x64xf32>
    %c0_165 = arith.constant 0 : index
    %c0_166 = arith.constant 0 : index
    %336 = vector.load %arg5[%c0_165, %c0_166] : memref<64x128xf32, #tpu.memory_space<vmem>>, vector<64x128xf32>
    %cst_167 = arith.constant 0.899999976 : f32
    %337 = vector.broadcast %cst_167 : f32 to vector<64x128xf32>
    %338 = arith.mulf %337, %336 : vector<64x128xf32>
    %cst_168 = arith.constant 1.000000e-01 : f32
    %339 = vector.broadcast %cst_168 : f32 to vector<64x128xf32>
    %340 = arith.mulf %339, %333 : vector<64x128xf32>
    %341 = arith.addf %338, %340 : vector<64x128xf32>
    %c0_169 = arith.constant 0 : index
    %c0_170 = arith.constant 0 : index
    %342 = vector.load %arg6[%c0_169, %c0_170] : memref<64x128xf32, #tpu.memory_space<vmem>>, vector<64x128xf32>
    %cst_171 = arith.constant 9.990000e-01 : f32
    %343 = vector.broadcast %cst_171 : f32 to vector<64x128xf32>
    %344 = arith.mulf %343, %342 : vector<64x128xf32>
    %345 = arith.mulf %333, %333 : vector<64x128xf32>
    %cst_172 = arith.constant 1.000000e-03 : f32
    %346 = vector.broadcast %cst_172 : f32 to vector<64x128xf32>
    %347 = arith.mulf %346, %345 : vector<64x128xf32>
    %348 = arith.addf %344, %347 : vector<64x128xf32>
    %349 = math.sqrt %348 : vector<64x128xf32>
    %cst_173 = arith.constant 18.266552 : f32
    %350 = vector.broadcast %cst_173 : f32 to vector<64x128xf32>
    %351 = arith.mulf %349, %350 : vector<64x128xf32>
    %cst_174 = arith.constant 9.99999993E-9 : f32
    %352 = vector.broadcast %cst_174 : f32 to vector<64x128xf32>
    %353 = arith.addf %351, %352 : vector<64x128xf32>
    %354 = arith.divf %341, %353 : vector<64x128xf32>
    %cst_175 = arith.constant 3.69003683E-4 : f32
    %355 = vector.broadcast %cst_175 : f32 to vector<64x128xf32>
    %356 = arith.mulf %355, %354 : vector<64x128xf32>
    %357 = arith.subf %207, %356 : vector<64x128xf32>
    %c0_176 = arith.constant 0 : index
    %c0_177 = arith.constant 0 : index
    %358 = vector.load %arg7[%c0_176, %c0_177] : memref<1x64xf32, #tpu.memory_space<vmem>>, vector<1x64xf32>
    %cst_178 = arith.constant 0.899999976 : f32
    %359 = vector.broadcast %cst_178 : f32 to vector<1x64xf32>
    %360 = arith.mulf %359, %358 : vector<1x64xf32>
    %cst_179 = arith.constant 1.000000e-01 : f32
    %361 = vector.broadcast %cst_179 : f32 to vector<1x64xf32>
    %362 = arith.mulf %361, %335 : vector<1x64xf32>
    %363 = arith.addf %360, %362 : vector<1x64xf32>
    %c0_180 = arith.constant 0 : index
    %c0_181 = arith.constant 0 : index
    %364 = vector.load %arg8[%c0_180, %c0_181] : memref<1x64xf32, #tpu.memory_space<vmem>>, vector<1x64xf32>
    %cst_182 = arith.constant 9.990000e-01 : f32
    %365 = vector.broadcast %cst_182 : f32 to vector<1x64xf32>
    %366 = arith.mulf %365, %364 : vector<1x64xf32>
    %367 = arith.mulf %335, %335 : vector<1x64xf32>
    %cst_183 = arith.constant 1.000000e-03 : f32
    %368 = vector.broadcast %cst_183 : f32 to vector<1x64xf32>
    %369 = arith.mulf %368, %367 : vector<1x64xf32>
    %370 = arith.addf %366, %369 : vector<1x64xf32>
    %371 = math.sqrt %370 : vector<1x64xf32>
    %cst_184 = arith.constant 18.266552 : f32
    %372 = vector.broadcast %cst_184 : f32 to vector<1x64xf32>
    %373 = arith.mulf %371, %372 : vector<1x64xf32>
    %cst_185 = arith.constant 9.99999993E-9 : f32
    %374 = vector.broadcast %cst_185 : f32 to vector<1x64xf32>
    %375 = arith.addf %373, %374 : vector<1x64xf32>
    %376 = arith.divf %363, %375 : vector<1x64xf32>
    %cst_186 = arith.constant 3.69003683E-4 : f32
    %377 = vector.broadcast %cst_186 : f32 to vector<1x64xf32>
    %378 = arith.mulf %377, %376 : vector<1x64xf32>
    %379 = arith.subf %231, %378 : vector<1x64xf32>
    %c0_187 = arith.constant 0 : index
    %c0_188 = arith.constant 0 : index
    %380 = vector.load %arg9[%c0_187, %c0_188] : memref<64x128xf32, #tpu.memory_space<vmem>>, vector<64x128xf32>
    %cst_189 = arith.constant 0.899999976 : f32
    %381 = vector.broadcast %cst_189 : f32 to vector<64x128xf32>
    %382 = arith.mulf %381, %380 : vector<64x128xf32>
    %cst_190 = arith.constant 1.000000e-01 : f32
    %383 = vector.broadcast %cst_190 : f32 to vector<64x128xf32>
    %384 = arith.mulf %383, %324 : vector<64x128xf32>
    %385 = arith.addf %382, %384 : vector<64x128xf32>
    %c0_191 = arith.constant 0 : index
    %c0_192 = arith.constant 0 : index
    %386 = vector.load %arg10[%c0_191, %c0_192] : memref<64x128xf32, #tpu.memory_space<vmem>>, vector<64x128xf32>
    %cst_193 = arith.constant 9.990000e-01 : f32
    %387 = vector.broadcast %cst_193 : f32 to vector<64x128xf32>
    %388 = arith.mulf %387, %386 : vector<64x128xf32>
    %389 = arith.mulf %324, %324 : vector<64x128xf32>
    %cst_194 = arith.constant 1.000000e-03 : f32
    %390 = vector.broadcast %cst_194 : f32 to vector<64x128xf32>
    %391 = arith.mulf %390, %389 : vector<64x128xf32>
    %392 = arith.addf %388, %391 : vector<64x128xf32>
    %393 = math.sqrt %392 : vector<64x128xf32>
    %cst_195 = arith.constant 18.266552 : f32
    %394 = vector.broadcast %cst_195 : f32 to vector<64x128xf32>
    %395 = arith.mulf %393, %394 : vector<64x128xf32>
    %cst_196 = arith.constant 9.99999993E-9 : f32
    %396 = vector.broadcast %cst_196 : f32 to vector<64x128xf32>
    %397 = arith.addf %395, %396 : vector<64x128xf32>
    %398 = arith.divf %385, %397 : vector<64x128xf32>
    %cst_197 = arith.constant 3.69003683E-4 : f32
    %399 = vector.broadcast %cst_197 : f32 to vector<64x128xf32>
    %400 = arith.mulf %399, %398 : vector<64x128xf32>
    %401 = arith.subf %255, %400 : vector<64x128xf32>
    %c0_198 = arith.constant 0 : index
    %c0_199 = arith.constant 0 : index
    %402 = vector.load %arg11[%c0_198, %c0_199] : memref<1x128xf32, #tpu.memory_space<vmem>>, vector<1x128xf32>
    %cst_200 = arith.constant 0.899999976 : f32
    %403 = vector.broadcast %cst_200 : f32 to vector<1x128xf32>
    %404 = arith.mulf %403, %402 : vector<1x128xf32>
    %cst_201 = arith.constant 1.000000e-01 : f32
    %405 = vector.broadcast %cst_201 : f32 to vector<1x128xf32>
    %406 = arith.mulf %405, %326 : vector<1x128xf32>
    %407 = arith.addf %404, %406 : vector<1x128xf32>
    %c0_202 = arith.constant 0 : index
    %c0_203 = arith.constant 0 : index
    %408 = vector.load %arg12[%c0_202, %c0_203] : memref<1x128xf32, #tpu.memory_space<vmem>>, vector<1x128xf32>
    %cst_204 = arith.constant 9.990000e-01 : f32
    %409 = vector.broadcast %cst_204 : f32 to vector<1x128xf32>
    %410 = arith.mulf %409, %408 : vector<1x128xf32>
    %411 = arith.mulf %326, %326 : vector<1x128xf32>
    %cst_205 = arith.constant 1.000000e-03 : f32
    %412 = vector.broadcast %cst_205 : f32 to vector<1x128xf32>
    %413 = arith.mulf %412, %411 : vector<1x128xf32>
    %414 = arith.addf %410, %413 : vector<1x128xf32>
    %415 = math.sqrt %414 : vector<1x128xf32>
    %cst_206 = arith.constant 18.266552 : f32
    %416 = vector.broadcast %cst_206 : f32 to vector<1x128xf32>
    %417 = arith.mulf %415, %416 : vector<1x128xf32>
    %cst_207 = arith.constant 9.99999993E-9 : f32
    %418 = vector.broadcast %cst_207 : f32 to vector<1x128xf32>
    %419 = arith.addf %417, %418 : vector<1x128xf32>
    %420 = arith.divf %407, %419 : vector<1x128xf32>
    %cst_208 = arith.constant 3.69003683E-4 : f32
    %421 = vector.broadcast %cst_208 : f32 to vector<1x128xf32>
    %422 = arith.mulf %421, %420 : vector<1x128xf32>
    %423 = arith.subf %279, %422 : vector<1x128xf32>
    %cst_209 = arith.constant dense<0.000000e+00> : vector<8x64xf32>
    %424 = tpu.matmul %2, %357, %cst_209 {dimension_numbers = #tpu.dot_dimension_numbers<[1], [1], [0], [0], [0, 0, 1, 0], [], []>} : vector<8x128xf32>, vector<64x128xf32>, vector<8x64xf32> -> vector<8x64xf32>
    %425 = vector.broadcast %379 : vector<1x64xf32> to vector<8x64xf32>
    %426 = arith.addf %424, %425 : vector<8x64xf32>
    %cst_210 = arith.constant 0.000000e+00 : f32
    %427 = vector.broadcast %cst_210 : f32 to vector<8x64xf32>
    %428 = arith.maximumf %426, %427 : vector<8x64xf32>
    %cst_211 = arith.constant dense<0.000000e+00> : vector<8x128xf32>
    %429 = tpu.matmul %428, %401, %cst_211 {dimension_numbers = #tpu.dot_dimension_numbers<[1], [0], [0], [1], [0, 0, 1, 1], [], []>} : vector<8x64xf32>, vector<64x128xf32>, vector<8x128xf32> -> vector<8x128xf32>
    %430 = vector.broadcast %423 : vector<1x128xf32> to vector<8x128xf32>
    %431 = arith.addf %429, %430 : vector<8x128xf32>
    %432 = arith.negf %431 : vector<8x128xf32>
    %433 = math.exp %432 : vector<8x128xf32>
    %cst_212 = arith.constant 1.000000e+00 : f32
    %434 = vector.broadcast %cst_212 : f32 to vector<8x128xf32>
    %435 = arith.addf %434, %433 : vector<8x128xf32>
    %436 = arith.divf %434, %435 : vector<8x128xf32>
    %cst_213 = arith.constant dense<0.000000e+00> : vector<128xf32>
    %437 = vector.multi_reduction <add>, %436, %cst_213 [0] : vector<8x128xf32> to vector<128xf32>
    %438 = vector.shape_cast %437 : vector<128xf32> to vector<1x128xf32>
    %cst_214 = arith.constant 8.000000e+00 : f32
    %439 = vector.broadcast %cst_214 : f32 to vector<1x128xf32>
    %440 = arith.divf %438, %439 : vector<1x128xf32>
    %441 = vector.broadcast %440 : vector<1x128xf32> to vector<8x128xf32>
    %442 = arith.mulf %2, %441 : vector<8x128xf32>
    %cst_215 = arith.constant dense<0.000000e+00> : vector<8xf32>
    %443 = vector.multi_reduction <add>, %442, %cst_215 [1] : vector<8x128xf32> to vector<8xf32>
    %444 = vector.shape_cast %443 : vector<8xf32> to vector<8x1xf32>
    %445 = vector.shape_cast %444 : vector<8x1xf32> to vector<8x1xf32>
    %446 = vector.broadcast %445 : vector<8x1xf32> to vector<8x128xf32>
    %c0_216 = arith.constant 0 : index
    %c0_217 = arith.constant 0 : index
    %447 = vector.load %arg4[%c0_216, %c0_217] : memref<8x128xf32, #tpu.memory_space<vmem>>, vector<8x128xf32>
    tpu.vector_store %arg4[%c0_216, %c0_217], %446 {strides = array<i32>} : memref<8x128xf32, #tpu.memory_space<vmem>>, vector<8x128xf32>,
    return
  }
}

</mosaic_0001>

<llo_original>
// kernel: simple_meta_learning_forward.1
$region0: #{simple_meta_learning_forward.1}
  #allocation0 [shape = 'u32[]', space=smem, size = 0x4, offset = 0x4, fixed_abs, tag = 'smem constant byte address 0x4 - core index']
  #allocation1 [shape = 'u32[144,128]{1,0:T(1,128)}', space=vmem, size = 0x12000, scoped, tag = 'internal scratch']
  #allocation2 [shape = 'f32[64,128]{1,0:T(8,128)}', space=vmem, size = 0x8000, scoped, tag = 'scratch operand']
  #allocation3 [shape = 'f32[64,128]{1,0:T(8,128)}', space=vmem, size = 0x8000, scoped, tag = 'scratch operand']
  #allocation4 [shape = 'f32[1,64]{1,0:T(1,128)}', space=vmem, size = 0x200, scoped, tag = 'scratch operand']
  #allocation5 [shape = 'f32[1,64]{1,0:T(1,128)}', space=vmem, size = 0x200, scoped, tag = 'scratch operand']
  #allocation6 [shape = 'f32[64,128]{1,0:T(8,128)}', space=vmem, size = 0x8000, scoped, tag = 'scratch operand']
  #allocation7 [shape = 'f32[64,128]{1,0:T(8,128)}', space=vmem, size = 0x8000, scoped, tag = 'scratch operand']
  #allocation8 [shape = 'f32[1,128]{1,0:T(1,128)}', space=vmem, size = 0x200, scoped, tag = 'scratch operand']
  #allocation9 [shape = 'f32[1,128]{1,0:T(1,128)}', space=vmem, size = 0x200, scoped, tag = 'scratch operand']
  %s0 = inlined_call_operand.vmem [shape: f32[8,128], index: 0, kind: input, shape index: {}]
  %s1 = inlined_call_operand.vmem [shape: f32[8,1], index: 1, kind: input, shape index: {}]
  %s2 = inlined_call_operand.vmem [shape: f32[8,128], index: 2, kind: input, shape index: {}]
  %s3 = inlined_call_operand.hbm [shape: f32[144,128], index: 3, kind: input, shape index: {}]
  %s4 = inlined_call_operand.vmem [shape: f32[8,128], index: 4, kind: output, shape index: {}]
  %s5 = sld [smem:[#allocation0]]
  $region30: #{simple_meta_learning_forward.1} parent=0
    _
  %s7 = ssub.s32 1, %s5
  %s8 = scalar_select 0, %s7, %s5
  $region1: #{simple_meta_learning_forward.1} parent=0
    #allocation10 [shape = 'u8[73728]{0}', space=vmem, size = 0x12000, scoped, tag = 'input window, operand 3, single buffered']
    #allocation11 [shape = 's32[1]{0}', space=sflag, size = 0x4, scoped, tag = 'scoped memory for simple_meta_learning_forward.1']
    %9 = vsyncpa [#allocation11], 0
    // Predicated region
    $region2: #{simple_meta_learning_forward.1} parent=1 // pred_check
      _
    $region3: #{simple_meta_learning_forward.1} parent=1 // pred_check_branch
      %11 = sbr.rel (0) target = $region5
    $region4: #{simple_meta_learning_forward.1} parent=1 // pred_region
      _
    $region5: #{simple_meta_learning_forward.1} parent=1 // pred_fallthru
      _
    // Predicated region
    $region6: #{simple_meta_learning_forward.1} parent=1 // pred_check
      _
    $region7: #{simple_meta_learning_forward.1} parent=1 // pred_check_branch
      %13 = sbr.rel (0) target = $region9
    $region8: #{simple_meta_learning_forward.1} parent=1 // pred_region
      _
    $region9: #{simple_meta_learning_forward.1} parent=1 // pred_fallthru
      _
    // Predicated region
    $region10: #{simple_meta_learning_forward.1} parent=1 // pred_check
      _
    $region11: #{simple_meta_learning_forward.1} parent=1 // pred_check_branch
      %15 = sbr.rel (0) target = $region13
    $region12: #{simple_meta_learning_forward.1} parent=1 // pred_region
      _
    $region13: #{simple_meta_learning_forward.1} parent=1 // pred_fallthru
      _
    // Predicated region
    $region14: #{simple_meta_learning_forward.1} parent=1 // pred_check
      _
    $region15: #{simple_meta_learning_forward.1} parent=1 // pred_check_branch
      %17 = sbr.rel (0) target = $region17
    $region16: #{simple_meta_learning_forward.1} parent=1 // pred_region
      %s19 = ssub.s32 2304, 2304
      %20 = vsyncadd [#allocation11], %s19
      %s21 = sshll.u32 [#allocation10], 4
      %s22 = int_to_ptr.vmem [resolvable:$true] %s21
      %27 = dma.hbm_to_vmem [thread:$0]  %s3, 2304, %s22, [#allocation11], 128, 128, 8
    $region17: #{simple_meta_learning_forward.1} parent=1 // pred_fallthru
      _
    // Predicated region
    $region18: #{simple_meta_learning_forward.1} parent=1 // pred_check
      _
    $region19: #{simple_meta_learning_forward.1} parent=1 // pred_check_branch
      %29 = sbr.rel (0) target = $region21
    $region20: #{simple_meta_learning_forward.1} parent=1 // pred_region
      %30 = dma.done [#allocation11], 2304
    $region21: #{simple_meta_learning_forward.1} parent=1 // pred_fallthru
      _
    %v31 = vld [vmem:[%s0] sm:$0xff]
    %v32 = vld [vmem:[%s1] sm:$0xff]
    %v33 = vld [vmem:[%s2] sm:$0xff]
    %v34 = vld [vmem:[#allocation10] sm:$0xff]
    %v35 = vld [vmem:[#allocation10 + $0x8] sm:$0xff]
    %v36 = vld [vmem:[#allocation10 + $0x10] sm:$0xff]
    %v37 = vld [vmem:[#allocation10 + $0x18] sm:$0xff]
    %v38 = vld [vmem:[#allocation10 + $0x20] sm:$0xff]
    %v39 = vld [vmem:[#allocation10 + $0x28] sm:$0xff]
    %v40 = vld [vmem:[#allocation10 + $0x30] sm:$0xff]
    %v41 = vld [vmem:[#allocation10 + $0x38] sm:$0xff]
    %v42 = vld [vmem:[#allocation10 + $0x40] sm:$0xff]
    %v43 = vld [vmem:[#allocation10 + $0x48] sm:$0xff]
    %v44 = vld [vmem:[#allocation10 + $0x50] sm:$0xff]
    %v45 = vld [vmem:[#allocation10 + $0x58] sm:$0xff]
    %v46 = vld [vmem:[#allocation10 + $0x60] sm:$0xff]
    %v47 = vld [vmem:[#allocation10 + $0x68] sm:$0xff]
    %v48 = vld [vmem:[#allocation10 + $0x70] sm:$0xff]
    %v49 = vld [vmem:[#allocation10 + $0x78] sm:$0xff]
    %v50 = vld [vmem:[#allocation10 + $0x80] sm:$0x1]
    %v51 = vld [vmem:[#allocation10 + $0x88] sm:$0x1]
    %v52 = vlaneseq
    %v53 = vshrl.u32 %v52, 7
    %v54 = vsub.s32 0, %v53
    %v55 = vrot.slane %v50, %v54
    %56 = vmatprep.subr.mxu0 0.0
    %57 = vmatpush1.xpose.msra.mxu0 %v34
    %58 = vmatprep.subr.mxu0 0.0
    %59 = vmatpush1.xpose.msra.mxu0 %v35
    %60 = vmatprep.subr.mxu0 0.0
    %61 = vmatpush1.xpose.msra.mxu0 %v36
    %62 = vmatprep.subr.mxu0 0.0
    %63 = vmatpush1.xpose.msra.mxu0 %v37
    %64 = vmatprep.subr.mxu0 0.0
    %65 = vmatpush1.xpose.msra.mxu0 %v38
    %66 = vmatprep.subr.mxu0 0.0
    %67 = vmatpush1.xpose.msra.mxu0 %v39
    %68 = vmatprep.subr.mxu0 0.0
    %69 = vmatpush1.xpose.msra.mxu0 %v40
    %70 = vmatprep.subr.mxu0 0.0
    %71 = vmatpush1.xpose.msra.mxu0 %v41
    %72 = vmatprep.subr.mxu0 0.0
    %73 = vmatpush1.xpose.msra.mxu0 0.0
    %74 = vmatprep.subr.mxu0 0.0
    %75 = vmatpush1.xpose.msra.mxu0 0.0
    %76 = vmatprep.subr.mxu0 0.0
    %77 = vmatpush1.xpose.msra.mxu0 0.0
    %78 = vmatprep.subr.mxu0 0.0
    %79 = vmatpush1.xpose.msra.mxu0 0.0
    %80 = vmatprep.subr.mxu0 0.0
    %81 = vmatpush1.xpose.msra.mxu0 0.0
    %82 = vmatprep.subr.mxu0 0.0
    %83 = vmatpush1.xpose.msra.mxu0 0.0
    %84 = vmatprep.subr.mxu0 0.0
    %85 = vmatpush1.xpose.msra.mxu0 0.0
    %86 = vmatprep.subr.mxu0 0.0
    %87 = vmatpush1.xpose.msra.mxu0 0.0
    %88 = vmatprep.subr.mxu0 0.0
    %89 = vmatpush1.xpose.msra.mxu0 0.0
    %90 = vmatprep.subr.mxu0 0.0
    %91 = vmatpush1.xpose.msra.mxu0 0.0
    %92 = vmatprep.subr.mxu0 0.0
    %93 = vmatpush1.xpose.msra.mxu0 0.0
    %94 = vmatprep.subr.mxu0 0.0
    %95 = vmatpush1.xpose.msra.mxu0 0.0
    %96 = vmatprep.subr.mxu0 0.0
    %97 = vmatpush1.xpose.msra.mxu0 0.0
    %98 = vmatprep.subr.mxu0 0.0
    %99 = vmatpush1.xpose.msra.mxu0 0.0
    %100 = vmatprep.subr.mxu0 0.0
    %101 = vmatpush1.xpose.msra.mxu0 0.0
    %102 = vmatprep.subr.mxu0 0.0
    %103 = vmatpush1.xpose.msra.mxu0 0.0
    %104 = vmatprep.subr.mxu0 0.0
    %105 = vmatpush1.xpose.msra.mxu0 0.0
    %106 = vmatprep.subr.mxu0 0.0
    %107 = vmatpush1.xpose.msra.mxu0 0.0
    %108 = vmatprep.subr.mxu0 0.0
    %109 = vmatpush1.xpose.msra.mxu0 0.0
    %110 = vmatprep.subr.mxu0 0.0
    %111 = vmatpush1.xpose.msra.mxu0 0.0
    %112 = vmatprep.subr.mxu0 0.0
    %113 = vmatpush1.xpose.msra.mxu0 0.0
    %114 = vmatprep.subr.mxu0 0.0
    %115 = vmatpush1.xpose.msra.mxu0 0.0
    %116 = vmatprep.subr.mxu0 0.0
    %117 = vmatpush1.xpose.msra.mxu0 0.0
    %118 = vmatprep.subr.mxu0 0.0
    %119 = vmatpush1.xpose.msra.mxu0 0.0
    %120 = vmatprep.mubr.f32.mxu0 0.0
    %121 = vmatmul.mubr.f32.gmra.mrb[0].mxu0 %v31
    %v122 = vpop.f32.mrb[0].mxu0
    %v123 = vadd.f32 %v55, %v122
    %v124 = vpop.f32.mrb[0].mxu0
    %125 = vdwg.mxu0
    %v126 = vmax.f32 %v123, 0.0
    %v127 = vlaneseq
    %v128 = vshrl.u32 %v127, 7
    %v129 = vsub.s32 0, %v128
    %v130 = vrot.slane %v51, %v129
    %vm131 = vcmask 523264
    %v133 = vsel %vm131, %v126, 0
    %135 = vmatprep.subr.mxu0 0.0
    %136 = vmatpush1.msra.mxu0 %v42
    %137 = vmatprep.subr.mxu0 0.0
    %138 = vmatpush1.msra.mxu0 %v43
    %139 = vmatprep.subr.mxu0 0.0
    %140 = vmatpush1.msra.mxu0 %v44
    %141 = vmatprep.subr.mxu0 0.0
    %142 = vmatpush1.msra.mxu0 %v45
    %143 = vmatprep.subr.mxu0 0.0
    %144 = vmatpush1.msra.mxu0 %v46
    %145 = vmatprep.subr.mxu0 0.0
    %146 = vmatpush1.msra.mxu0 %v47
    %147 = vmatprep.subr.mxu0 0.0
    %148 = vmatpush1.msra.mxu0 %v48
    %149 = vmatprep.subr.mxu0 0.0
    %150 = vmatpush1.msra.mxu0 %v49
    %151 = vmatprep.subr.mxu0 0.0
    %152 = vmatpush1.msra.mxu0 0.0
    %153 = vmatprep.subr.mxu0 0.0
    %154 = vmatpush1.msra.mxu0 0.0
    %155 = vmatprep.subr.mxu0 0.0
    %156 = vmatpush1.msra.mxu0 0.0
    %157 = vmatprep.subr.mxu0 0.0
    %158 = vmatpush1.msra.mxu0 0.0
    %159 = vmatprep.subr.mxu0 0.0
    %160 = vmatpush1.msra.mxu0 0.0
    %161 = vmatprep.subr.mxu0 0.0
    %162 = vmatpush1.msra.mxu0 0.0
    %163 = vmatprep.subr.mxu0 0.0
    %164 = vmatpush1.msra.mxu0 0.0
    %165 = vmatprep.subr.mxu0 0.0
    %166 = vmatpush1.msra.mxu0 0.0
    %167 = vmatprep.subr.mxu0 0.0
    %168 = vmatpush1.msra.mxu0 0.0
    %169 = vmatprep.subr.mxu0 0.0
    %170 = vmatpush1.msra.mxu0 0.0
    %171 = vmatprep.subr.mxu0 0.0
    %172 = vmatpush1.msra.mxu0 0.0
    %173 = vmatprep.subr.mxu0 0.0
    %174 = vmatpush1.msra.mxu0 0.0
    %175 = vmatprep.subr.mxu0 0.0
    %176 = vmatpush1.msra.mxu0 0.0
    %177 = vmatprep.subr.mxu0 0.0
    %178 = vmatpush1.msra.mxu0 0.0
    %179 = vmatprep.subr.mxu0 0.0
    %180 = vmatpush1.msra.mxu0 0.0
    %181 = vmatprep.subr.mxu0 0.0
    %182 = vmatpush1.msra.mxu0 0.0
    %183 = vmatprep.subr.mxu0 0.0
    %184 = vmatpush1.msra.mxu0 0.0
    %185 = vmatprep.subr.mxu0 0.0
    %186 = vmatpush1.msra.mxu0 0.0
    %187 = vmatprep.subr.mxu0 0.0
    %188 = vmatpush1.msra.mxu0 0.0
    %189 = vmatprep.subr.mxu0 0.0
    %190 = vmatpush1.msra.mxu0 0.0
    %191 = vmatprep.subr.mxu0 0.0
    %192 = vmatpush1.msra.mxu0 0.0
    %193 = vmatprep.subr.mxu0 0.0
    %194 = vmatpush1.msra.mxu0 0.0
    %195 = vmatprep.subr.mxu0 0.0
    %196 = vmatpush1.msra.mxu0 0.0
    %197 = vmatprep.subr.mxu0 0.0
    %198 = vmatpush1.msra.mxu0 0.0
    %199 = vmatprep.mubr.f32.mxu0 0.0
    %200 = vmatmul.mubr.f32.gmra.mrb[0].mxu0 %v133
    %v201 = vpop.f32.mrb[0].mxu0
    %v202 = vadd.f32 %v130, %v201
    %v203 = vpop.f32.mrb[0].mxu0
    %204 = vdwg.mxu0
    %v205 = vxor.u32 %v202, 2147483648
    %v206 = vmul.f32 %v205, 1.442695
    %v207 = vpow.pop %v206
    %v208 = vadd.f32 %v207, 1.0
    %v209 = vrcp.pop %v208
    %v210 = vmul.f32 1.0, %v209
    %v211 = vrot.slane %v210, 4
    %v212 = vadd.f32 %v210, %v211
    %v213 = vrot.slane %v212, 2
    %v214 = vadd.f32 %v212, %v213
    %v215 = vrot.slane %v214, 1
    %v216 = vadd.f32 %v214, %v215
    %v217 = vrcp.pop 8.0
    %v218 = vmul.f32 %v216, %v217
    %v219 = vmul.f32 %v31, %v218
    %220 = vadd.xlane.f32.xlu0 %v219
    %v221 = vpop.xlane.xlu0 %220
    %v222 = vsub.f32 %v221, %v32
    %v223 = vmul.f32 %v222, %v222
    %vm224 = vcmask 7168
    %v225 = vsel %vm224, %v223, 0.0
    %226 = vadd.xlane.f32.xlu0 %v225
    %v227 = vpop.xlane.xlu0 %226
    %v228 = vrot.slane %v227, 4
    %v229 = vadd.f32 %v227, %v228
    %v230 = vrot.slane %v229, 2
    %v231 = vadd.f32 %v229, %v230
    %v232 = vrot.slane %v231, 1
    %v233 = vadd.f32 %v231, %v232
    %s234 = vtos %v233
    %v235 = vrcp.pop 8.0
    %s236 = vtos %v235
    %s237 = smul.f32 %s234, %s236
    %s238 = sadd.f32 %s237, 1e-06
    %v239 = vstv %s238
    %v240 = vrsqrt.pop %v239
    %s241 = vtos %v240
    %s242 = smul.f32 %s241, 0.125
    %v243 = vstv %s242
    %v244 = vmul.f32 %v222, %v243
    %246 = vset.pattern.permute.xlu0 0
    %247 = vperm.xlu0 %246, %v244
    %v248 = vpop.permute.xlu0 %247
    %v250 = vmul.f32 %v31, %v248
    %v251 = vrot.slane %v250, 4
    %v252 = vadd.f32 %v250, %v251
    %v253 = vrot.slane %v252, 2
    %v254 = vadd.f32 %v252, %v253
    %v255 = vrot.slane %v254, 1
    %v256 = vadd.f32 %v254, %v255
    %v257 = vmul.f32 %v256, 0.125
    %v258 = vmul.f32 %v257, %v210
    %v259 = vsub.f32 1.0, %v210
    %v260 = vmul.f32 %v258, %v259
    %261 = vxpose.xlu0.b32.start [1/16] %v126, 128
    %262 = vxpose.xlu0.b32.cont [2/16] 0.0, 128
    %263 = vxpose.xlu0.b32.cont [3/16] 0.0, 128
    %264 = vxpose.xlu0.b32.cont [4/16] 0.0, 128
    %265 = vxpose.xlu0.b32.cont [5/16] 0.0, 128
    %266 = vxpose.xlu0.b32.cont [6/16] 0.0, 128
    %267 = vxpose.xlu0.b32.cont [7/16] 0.0, 128
    %268 = vxpose.xlu0.b32.cont [8/16] 0.0, 128
    %269 = vxpose.xlu0.b32.cont [9/16] 0.0, 128
    %270 = vxpose.xlu0.b32.cont [10/16] 0.0, 128
    %271 = vxpose.xlu0.b32.cont [11/16] 0.0, 128
    %272 = vxpose.xlu0.b32.cont [12/16] 0.0, 128
    %273 = vxpose.xlu0.b32.cont [13/16] 0.0, 128
    %274 = vxpose.xlu0.b32.cont [14/16] 0.0, 128
    %275 = vxpose.xlu0.b32.cont [15/16] 0.0, 128
    %276 = vxpose.xlu0.b32.end [16/16] 0.0, 128
    %v277 = vpop.trf.xlu0
    %v278 = vpop.trf.xlu0
    %v279 = vpop.trf.xlu0
    %v280 = vpop.trf.xlu0
    %v281 = vpop.trf.xlu0
    %v282 = vpop.trf.xlu0
    %v283 = vpop.trf.xlu0
    %v284 = vpop.trf.xlu0
    %v285 = vpop.trf.xlu0
    %v286 = vpop.trf.xlu0
    %v287 = vpop.trf.xlu0
    %v288 = vpop.trf.xlu0
    %v289 = vpop.trf.xlu0
    %v290 = vpop.trf.xlu0
    %v291 = vpop.trf.xlu0
    %v292 = vpop.trf.xlu0
    %vm293 = vcmask 64512
    %v295 = vsel %vm293, %v277, 0
    %v298 = vsel %vm293, %v278, 0
    %v301 = vsel %vm293, %v279, 0
    %v304 = vsel %vm293, %v280, 0
    %v307 = vsel %vm293, %v281, 0
    %v310 = vsel %vm293, %v282, 0
    %v313 = vsel %vm293, %v283, 0
    %v316 = vsel %vm293, %v284, 0
    %318 = vmatprep.subr.mxu0 0.0
    %319 = vmatpush1.msra.mxu0 %v260
    %320 = vmatprep.subr.mxu0 0.0
    %321 = vmatpush1.msra.mxu0 0.0
    %322 = vmatprep.subr.mxu0 0.0
    %323 = vmatpush1.msra.mxu0 0.0
    %324 = vmatprep.subr.mxu0 0.0
    %325 = vmatpush1.msra.mxu0 0.0
    %326 = vmatprep.subr.mxu0 0.0
    %327 = vmatpush1.msra.mxu0 0.0
    %328 = vmatprep.subr.mxu0 0.0
    %329 = vmatpush1.msra.mxu0 0.0
    %330 = vmatprep.subr.mxu0 0.0
    %331 = vmatpush1.msra.mxu0 0.0
    %332 = vmatprep.subr.mxu0 0.0
    %333 = vmatpush1.msra.mxu0 0.0
    %334 = vmatprep.subr.mxu0 0.0
    %335 = vmatpush1.msra.mxu0 0.0
    %336 = vmatprep.subr.mxu0 0.0
    %337 = vmatpush1.msra.mxu0 0.0
    %338 = vmatprep.subr.mxu0 0.0
    %339 = vmatpush1.msra.mxu0 0.0
    %340 = vmatprep.subr.mxu0 0.0
    %341 = vmatpush1.msra.mxu0 0.0
    %342 = vmatprep.subr.mxu0 0.0
    %343 = vmatpush1.msra.mxu0 0.0
    %344 = vmatprep.subr.mxu0 0.0
    %345 = vmatpush1.msra.mxu0 0.0
    %346 = vmatprep.subr.mxu0 0.0
    %347 = vmatpush1.msra.mxu0 0.0
    %348 = vmatprep.subr.mxu0 0.0
    %349 = vmatpush1.msra.mxu0 0.0
    %350 = vmatprep.subr.mxu0 0.0
    %351 = vmatpush1.msra.mxu0 0.0
    %352 = vmatprep.subr.mxu0 0.0
    %353 = vmatpush1.msra.mxu0 0.0
    %354 = vmatprep.subr.mxu0 0.0
    %355 = vmatpush1.msra.mxu0 0.0
    %356 = vmatprep.subr.mxu0 0.0
    %357 = vmatpush1.msra.mxu0 0.0
    %358 = vmatprep.subr.mxu0 0.0
    %359 = vmatpush1.msra.mxu0 0.0
    %360 = vmatprep.subr.mxu0 0.0
    %361 = vmatpush1.msra.mxu0 0.0
    %362 = vmatprep.subr.mxu0 0.0
    %363 = vmatpush1.msra.mxu0 0.0
    %364 = vmatprep.subr.mxu0 0.0
    %365 = vmatpush1.msra.mxu0 0.0
    %366 = vmatprep.subr.mxu0 0.0
    %367 = vmatpush1.msra.mxu0 0.0
    %368 = vmatprep.subr.mxu0 0.0
    %369 = vmatpush1.msra.mxu0 0.0
    %370 = vmatprep.subr.mxu0 0.0
    %371 = vmatpush1.msra.mxu0 0.0
    %372 = vmatprep.subr.mxu0 0.0
    %373 = vmatpush1.msra.mxu0 0.0
    %374 = vmatprep.subr.mxu0 0.0
    %375 = vmatpush1.msra.mxu0 0.0
    %376 = vmatprep.subr.mxu0 0.0
    %377 = vmatpush1.msra.mxu0 0.0
    %378 = vmatprep.subr.mxu0 0.0
    %379 = vmatpush1.msra.mxu0 0.0
    %380 = vmatprep.subr.mxu0 0.0
    %381 = vmatpush1.msra.mxu0 0.0
    %382 = vmatprep.mubr.f32.mxu0 0.0
    %383 = vmatmul.mubr.f32.gmra.mrb[0].mxu0 %v295
    %v384 = vpop.f32.mrb[0].mxu0
    %v385 = vadd.f32 0.0, %v384
    %v386 = vpop.f32.mrb[0].mxu0
    %387 = vmatprep.mubr.f32.mxu0 0.0
    %388 = vmatmul.mubr.f32.gmra.mrb[0].mxu0 %v298
    %v389 = vpop.f32.mrb[0].mxu0
    %v390 = vadd.f32 0.0, %v389
    %v391 = vpop.f32.mrb[0].mxu0
    %392 = vmatprep.mubr.f32.mxu0 0.0
    %393 = vmatmul.mubr.f32.gmra.mrb[0].mxu0 %v301
    %v394 = vpop.f32.mrb[0].mxu0
    %v395 = vadd.f32 0.0, %v394
    %v396 = vpop.f32.mrb[0].mxu0
    %397 = vmatprep.mubr.f32.mxu0 0.0
    %398 = vmatmul.mubr.f32.gmra.mrb[0].mxu0 %v304
    %v399 = vpop.f32.mrb[0].mxu0
    %v400 = vadd.f32 0.0, %v399
    %v401 = vpop.f32.mrb[0].mxu0
    %402 = vmatprep.mubr.f32.mxu0 0.0
    %403 = vmatmul.mubr.f32.gmra.mrb[0].mxu0 %v307
    %v404 = vpop.f32.mrb[0].mxu0
    %v405 = vadd.f32 0.0, %v404
    %v406 = vpop.f32.mrb[0].mxu0
    %407 = vmatprep.mubr.f32.mxu0 0.0
    %408 = vmatmul.mubr.f32.gmra.mrb[0].mxu0 %v310
    %v409 = vpop.f32.mrb[0].mxu0
    %v410 = vadd.f32 0.0, %v409
    %v411 = vpop.f32.mrb[0].mxu0
    %412 = vmatprep.mubr.f32.mxu0 0.0
    %413 = vmatmul.mubr.f32.gmra.mrb[0].mxu0 %v313
    %v414 = vpop.f32.mrb[0].mxu0
    %v415 = vadd.f32 0.0, %v414
    %v416 = vpop.f32.mrb[0].mxu0
    %417 = vmatprep.mubr.f32.mxu0 0.0
    %418 = vmatmul.mubr.f32.gmra.mrb[0].mxu0 %v316
    %v419 = vpop.f32.mrb[0].mxu0
    %v420 = vadd.f32 0.0, %v419
    %v421 = vpop.f32.mrb[0].mxu0
    %422 = vdwg.mxu0
    %v423 = vrot.slane %v260, 4
    %v424 = vadd.f32 %v260, %v423
    %v425 = vrot.slane %v424, 2
    %v426 = vadd.f32 %v424, %v425
    %v427 = vrot.slane %v426, 1
    %v428 = vadd.f32 %v426, %v427
    %429 = vmatprep.subr.mxu0 0.0
    %430 = vmatpush1.xpose.msra.mxu0 %v42
    %431 = vmatprep.subr.mxu0 0.0
    %432 = vmatpush1.xpose.msra.mxu0 %v43
    %433 = vmatprep.subr.mxu0 0.0
    %434 = vmatpush1.xpose.msra.mxu0 %v44
    %435 = vmatprep.subr.mxu0 0.0
    %436 = vmatpush1.xpose.msra.mxu0 %v45
    %437 = vmatprep.subr.mxu0 0.0
    %438 = vmatpush1.xpose.msra.mxu0 %v46
    %439 = vmatprep.subr.mxu0 0.0
    %440 = vmatpush1.xpose.msra.mxu0 %v47
    %441 = vmatprep.subr.mxu0 0.0
    %442 = vmatpush1.xpose.msra.mxu0 %v48
    %443 = vmatprep.subr.mxu0 0.0
    %444 = vmatpush1.xpose.msra.mxu0 %v49
    %445 = vmatprep.subr.mxu0 0.0
    %446 = vmatpush1.xpose.msra.mxu0 0.0
    %447 = vmatprep.subr.mxu0 0.0
    %448 = vmatpush1.xpose.msra.mxu0 0.0
    %449 = vmatprep.subr.mxu0 0.0
    %450 = vmatpush1.xpose.msra.mxu0 0.0
    %451 = vmatprep.subr.mxu0 0.0
    %452 = vmatpush1.xpose.msra.mxu0 0.0
    %453 = vmatprep.subr.mxu0 0.0
    %454 = vmatpush1.xpose.msra.mxu0 0.0
    %455 = vmatprep.subr.mxu0 0.0
    %456 = vmatpush1.xpose.msra.mxu0 0.0
    %457 = vmatprep.subr.mxu0 0.0
    %458 = vmatpush1.xpose.msra.mxu0 0.0
    %459 = vmatprep.subr.mxu0 0.0
    %460 = vmatpush1.xpose.msra.mxu0 0.0
    %461 = vmatprep.subr.mxu0 0.0
    %462 = vmatpush1.xpose.msra.mxu0 0.0
    %463 = vmatprep.subr.mxu0 0.0
    %464 = vmatpush1.xpose.msra.mxu0 0.0
    %465 = vmatprep.subr.mxu0 0.0
    %466 = vmatpush1.xpose.msra.mxu0 0.0
    %467 = vmatprep.subr.mxu0 0.0
    %468 = vmatpush1.xpose.msra.mxu0 0.0
    %469 = vmatprep.subr.mxu0 0.0
    %470 = vmatpush1.xpose.msra.mxu0 0.0
    %471 = vmatprep.subr.mxu0 0.0
    %472 = vmatpush1.xpose.msra.mxu0 0.0
    %473 = vmatprep.subr.mxu0 0.0
    %474 = vmatpush1.xpose.msra.mxu0 0.0
    %475 = vmatprep.subr.mxu0 0.0
    %476 = vmatpush1.xpose.msra.mxu0 0.0
    %477 = vmatprep.subr.mxu0 0.0
    %478 = vmatpush1.xpose.msra.mxu0 0.0
    %479 = vmatprep.subr.mxu0 0.0
    %480 = vmatpush1.xpose.msra.mxu0 0.0
    %481 = vmatprep.subr.mxu0 0.0
    %482 = vmatpush1.xpose.msra.mxu0 0.0
    %483 = vmatprep.subr.mxu0 0.0
    %484 = vmatpush1.xpose.msra.mxu0 0.0
    %485 = vmatprep.subr.mxu0 0.0
    %486 = vmatpush1.xpose.msra.mxu0 0.0
    %487 = vmatprep.subr.mxu0 0.0
    %488 = vmatpush1.xpose.msra.mxu0 0.0
    %489 = vmatprep.subr.mxu0 0.0
    %490 = vmatpush1.xpose.msra.mxu0 0.0
    %491 = vmatprep.subr.mxu0 0.0
    %492 = vmatpush1.xpose.msra.mxu0 0.0
    %493 = vmatprep.mubr.f32.mxu0 0.0
    %494 = vmatmul.mubr.f32.gmra.mrb[0].mxu0 %v260
    %v495 = vpop.f32.mrb[0].mxu0
    %v496 = vadd.f32 0.0, %v495
    %v497 = vpop.f32.mrb[0].mxu0
    %498 = vdwg.mxu0
    %vm499 = vcmp.gt.f32.partialorder %v123, 0.0
    %v500 = vsel %vm499, 1, 0
    %v501 = vcvt.s32.f32 %v500
    %v502 = vmul.f32 %v496, %v501
    %503 = vxpose.xlu0.b32.start [1/16] %v502, 128
    %504 = vxpose.xlu0.b32.cont [2/16] 0.0, 128
    %505 = vxpose.xlu0.b32.cont [3/16] 0.0, 128
    %506 = vxpose.xlu0.b32.cont [4/16] 0.0, 128
    %507 = vxpose.xlu0.b32.cont [5/16] 0.0, 128
    %508 = vxpose.xlu0.b32.cont [6/16] 0.0, 128
    %509 = vxpose.xlu0.b32.cont [7/16] 0.0, 128
    %510 = vxpose.xlu0.b32.cont [8/16] 0.0, 128
    %511 = vxpose.xlu0.b32.cont [9/16] 0.0, 128
    %512 = vxpose.xlu0.b32.cont [10/16] 0.0, 128
    %513 = vxpose.xlu0.b32.cont [11/16] 0.0, 128
    %514 = vxpose.xlu0.b32.cont [12/16] 0.0, 128
    %515 = vxpose.xlu0.b32.cont [13/16] 0.0, 128
    %516 = vxpose.xlu0.b32.cont [14/16] 0.0, 128
    %517 = vxpose.xlu0.b32.cont [15/16] 0.0, 128
    %518 = vxpose.xlu0.b32.end [16/16] 0.0, 128
    %v519 = vpop.trf.xlu0
    %v520 = vpop.trf.xlu0
    %v521 = vpop.trf.xlu0
    %v522 = vpop.trf.xlu0
    %v523 = vpop.trf.xlu0
    %v524 = vpop.trf.xlu0
    %v525 = vpop.trf.xlu0
    %v526 = vpop.trf.xlu0
    %v527 = vpop.trf.xlu0
    %v528 = vpop.trf.xlu0
    %v529 = vpop.trf.xlu0
    %v530 = vpop.trf.xlu0
    %v531 = vpop.trf.xlu0
    %v532 = vpop.trf.xlu0
    %v533 = vpop.trf.xlu0
    %v534 = vpop.trf.xlu0
    %v536 = vsel %vm293, %v519, 0
    %v539 = vsel %vm293, %v520, 0
    %v542 = vsel %vm293, %v521, 0
    %v545 = vsel %vm293, %v522, 0
    %v548 = vsel %vm293, %v523, 0
    %v551 = vsel %vm293, %v524, 0
    %v554 = vsel %vm293, %v525, 0
    %v557 = vsel %vm293, %v526, 0
    %559 = vmatprep.subr.mxu0 0.0
    %560 = vmatpush1.msra.mxu0 %v31
    %561 = vmatprep.subr.mxu0 0.0
    %562 = vmatpush1.msra.mxu0 0.0
    %563 = vmatprep.subr.mxu0 0.0
    %564 = vmatpush1.msra.mxu0 0.0
    %565 = vmatprep.subr.mxu0 0.0
    %566 = vmatpush1.msra.mxu0 0.0
    %567 = vmatprep.subr.mxu0 0.0
    %568 = vmatpush1.msra.mxu0 0.0
    %569 = vmatprep.subr.mxu0 0.0
    %570 = vmatpush1.msra.mxu0 0.0
    %571 = vmatprep.subr.mxu0 0.0
    %572 = vmatpush1.msra.mxu0 0.0
    %573 = vmatprep.subr.mxu0 0.0
    %574 = vmatpush1.msra.mxu0 0.0
    %575 = vmatprep.subr.mxu0 0.0
    %576 = vmatpush1.msra.mxu0 0.0
    %577 = vmatprep.subr.mxu0 0.0
    %578 = vmatpush1.msra.mxu0 0.0
    %579 = vmatprep.subr.mxu0 0.0
    %580 = vmatpush1.msra.mxu0 0.0
    %581 = vmatprep.subr.mxu0 0.0
    %582 = vmatpush1.msra.mxu0 0.0
    %583 = vmatprep.subr.mxu0 0.0
    %584 = vmatpush1.msra.mxu0 0.0
    %585 = vmatprep.subr.mxu0 0.0
    %586 = vmatpush1.msra.mxu0 0.0
    %587 = vmatprep.subr.mxu0 0.0
    %588 = vmatpush1.msra.mxu0 0.0
    %589 = vmatprep.subr.mxu0 0.0
    %590 = vmatpush1.msra.mxu0 0.0
    %591 = vmatprep.subr.mxu0 0.0
    %592 = vmatpush1.msra.mxu0 0.0
    %593 = vmatprep.subr.mxu0 0.0
    %594 = vmatpush1.msra.mxu0 0.0
    %595 = vmatprep.subr.mxu0 0.0
    %596 = vmatpush1.msra.mxu0 0.0
    %597 = vmatprep.subr.mxu0 0.0
    %598 = vmatpush1.msra.mxu0 0.0
    %599 = vmatprep.subr.mxu0 0.0
    %600 = vmatpush1.msra.mxu0 0.0
    %601 = vmatprep.subr.mxu0 0.0
    %602 = vmatpush1.msra.mxu0 0.0
    %603 = vmatprep.subr.mxu0 0.0
    %604 = vmatpush1.msra.mxu0 0.0
    %605 = vmatprep.subr.mxu0 0.0
    %606 = vmatpush1.msra.mxu0 0.0
    %607 = vmatprep.subr.mxu0 0.0
    %608 = vmatpush1.msra.mxu0 0.0
    %609 = vmatprep.subr.mxu0 0.0
    %610 = vmatpush1.msra.mxu0 0.0
    %611 = vmatprep.subr.mxu0 0.0
    %612 = vmatpush1.msra.mxu0 0.0
    %613 = vmatprep.subr.mxu0 0.0
    %614 = vmatpush1.msra.mxu0 0.0
    %615 = vmatprep.subr.mxu0 0.0
    %616 = vmatpush1.msra.mxu0 0.0
    %617 = vmatprep.subr.mxu0 0.0
    %618 = vmatpush1.msra.mxu0 0.0
    %619 = vmatprep.subr.mxu0 0.0
    %620 = vmatpush1.msra.mxu0 0.0
    %621 = vmatprep.subr.mxu0 0.0
    %622 = vmatpush1.msra.mxu0 0.0
    %623 = vmatprep.mubr.f32.mxu0 0.0
    %624 = vmatmul.mubr.f32.gmra.mrb[0].mxu0 %v536
    %v625 = vpop.f32.mrb[0].mxu0
    %v626 = vadd.f32 0.0, %v625
    %v627 = vpop.f32.mrb[0].mxu0
    %628 = vmatprep.mubr.f32.mxu0 0.0
    %629 = vmatmul.mubr.f32.gmra.mrb[0].mxu0 %v539
    %v630 = vpop.f32.mrb[0].mxu0
    %v631 = vadd.f32 0.0, %v630
    %v632 = vpop.f32.mrb[0].mxu0
    %633 = vmatprep.mubr.f32.mxu0 0.0
    %634 = vmatmul.mubr.f32.gmra.mrb[0].mxu0 %v542
    %v635 = vpop.f32.mrb[0].mxu0
    %v636 = vadd.f32 0.0, %v635
    %v637 = vpop.f32.mrb[0].mxu0
    %638 = vmatprep.mubr.f32.mxu0 0.0
    %639 = vmatmul.mubr.f32.gmra.mrb[0].mxu0 %v545
    %v640 = vpop.f32.mrb[0].mxu0
    %v641 = vadd.f32 0.0, %v640
    %v642 = vpop.f32.mrb[0].mxu0
    %643 = vmatprep.mubr.f32.mxu0 0.0
    %644 = vmatmul.mubr.f32.gmra.mrb[0].mxu0 %v548
    %v645 = vpop.f32.mrb[0].mxu0
    %v646 = vadd.f32 0.0, %v645
    %v647 = vpop.f32.mrb[0].mxu0
    %648 = vmatprep.mubr.f32.mxu0 0.0
    %649 = vmatmul.mubr.f32.gmra.mrb[0].mxu0 %v551
    %v650 = vpop.f32.mrb[0].mxu0
    %v651 = vadd.f32 0.0, %v650
    %v652 = vpop.f32.mrb[0].mxu0
    %653 = vmatprep.mubr.f32.mxu0 0.0
    %654 = vmatmul.mubr.f32.gmra.mrb[0].mxu0 %v554
    %v655 = vpop.f32.mrb[0].mxu0
    %v656 = vadd.f32 0.0, %v655
    %v657 = vpop.f32.mrb[0].mxu0
    %658 = vmatprep.mubr.f32.mxu0 0.0
    %659 = vmatmul.mubr.f32.gmra.mrb[0].mxu0 %v557
    %v660 = vpop.f32.mrb[0].mxu0
    %v661 = vadd.f32 0.0, %v660
    %v662 = vpop.f32.mrb[0].mxu0
    %663 = vdwg.mxu0
    %v664 = vsel %vm131, %v502, 0.0
    %v665 = vrot.slane %v664, 4
    %v666 = vadd.f32 %v664, %v665
    %v667 = vrot.slane %v666, 2
    %v668 = vadd.f32 %v666, %v667
    %v669 = vrot.slane %v668, 1
    %v670 = vadd.f32 %v668, %v669
    %v671 = vmul.f32 %v626, 0.1
    %v672 = vmul.f32 %v631, 0.1
    %v673 = vmul.f32 %v636, 0.1
    %v674 = vmul.f32 %v641, 0.1
    %v675 = vmul.f32 %v646, 0.1
    %v676 = vmul.f32 %v651, 0.1
    %v677 = vmul.f32 %v656, 0.1
    %v678 = vmul.f32 %v661, 0.1
    %v679 = vmul.f32 %v626, %v626
    %v680 = vmul.f32 %v631, %v631
    %v681 = vmul.f32 %v636, %v636
    %v682 = vmul.f32 %v641, %v641
    %v683 = vmul.f32 %v646, %v646
    %v684 = vmul.f32 %v651, %v651
    %v685 = vmul.f32 %v656, %v656
    %v686 = vmul.f32 %v661, %v661
    %v687 = vmul.f32 %v679, 0.001
    %v688 = vmul.f32 %v680, 0.001
    %v689 = vmul.f32 %v681, 0.001
    %v690 = vmul.f32 %v682, 0.001
    %v691 = vmul.f32 %v683, 0.001
    %v692 = vmul.f32 %v684, 0.001
    %v693 = vmul.f32 %v685, 0.001
    %v694 = vmul.f32 %v686, 0.001
    %695 = vst [vmem:[#allocation2] sm:$0xff] %v671
    %696 = vst [vmem:[#allocation2 + $0x8] sm:$0xff] %v672
    %697 = vst [vmem:[#allocation2 + $0x10] sm:$0xff] %v673
    %698 = vst [vmem:[#allocation2 + $0x18] sm:$0xff] %v674
    %699 = vst [vmem:[#allocation2 + $0x20] sm:$0xff] %v675
    %700 = vst [vmem:[#allocation2 + $0x28] sm:$0xff] %v676
    %701 = vst [vmem:[#allocation2 + $0x30] sm:$0xff] %v677
    %702 = vst [vmem:[#allocation2 + $0x38] sm:$0xff] %v678
    %703 = vst [vmem:[#allocation3] sm:$0xff] %v687
    %704 = vst [vmem:[#allocation3 + $0x8] sm:$0xff] %v688
    %705 = vst [vmem:[#allocation3 + $0x10] sm:$0xff] %v689
    %706 = vst [vmem:[#allocation3 + $0x18] sm:$0xff] %v690
    %707 = vst [vmem:[#allocation3 + $0x20] sm:$0xff] %v691
    %708 = vst [vmem:[#allocation3 + $0x28] sm:$0xff] %v692
    %709 = vst [vmem:[#allocation3 + $0x30] sm:$0xff] %v693
    %710 = vst [vmem:[#allocation3 + $0x38] sm:$0xff] %v694
    %v711 = vrsqrt.pop %v687
    %v712 = vmul.f32 %v687, %v711
    %vm713 = vcmp.eq.f32.partialorder %v687, inf
    %v714 = vsel %vm713, %v687, %v712
    %vm715 = vcmp.eq.f32.partialorder %v687, 0.0
    %v716 = vand.u32 %v687, 2147483648
    %v717 = vsel %vm715, %v716, %v714
    %v718 = vrsqrt.pop %v688
    %v719 = vmul.f32 %v688, %v718
    %vm720 = vcmp.eq.f32.partialorder %v688, inf
    %v721 = vsel %vm720, %v688, %v719
    %vm722 = vcmp.eq.f32.partialorder %v688, 0.0
    %v723 = vand.u32 %v688, 2147483648
    %v724 = vsel %vm722, %v723, %v721
    %v725 = vrsqrt.pop %v689
    %v726 = vmul.f32 %v689, %v725
    %vm727 = vcmp.eq.f32.partialorder %v689, inf
    %v728 = vsel %vm727, %v689, %v726
    %vm729 = vcmp.eq.f32.partialorder %v689, 0.0
    %v730 = vand.u32 %v689, 2147483648
    %v731 = vsel %vm729, %v730, %v728
    %v732 = vrsqrt.pop %v690
    %v733 = vmul.f32 %v690, %v732
    %vm734 = vcmp.eq.f32.partialorder %v690, inf
    %v735 = vsel %vm734, %v690, %v733
    %vm736 = vcmp.eq.f32.partialorder %v690, 0.0
    %v737 = vand.u32 %v690, 2147483648
    %v738 = vsel %vm736, %v737, %v735
    %v739 = vrsqrt.pop %v691
    %v740 = vmul.f32 %v691, %v739
    %vm741 = vcmp.eq.f32.partialorder %v691, inf
    %v742 = vsel %vm741, %v691, %v740
    %vm743 = vcmp.eq.f32.partialorder %v691, 0.0
    %v744 = vand.u32 %v691, 2147483648
    %v745 = vsel %vm743, %v744, %v742
    %v746 = vrsqrt.pop %v692
    %v747 = vmul.f32 %v692, %v746
    %vm748 = vcmp.eq.f32.partialorder %v692, inf
    %v749 = vsel %vm748, %v692, %v747
    %vm750 = vcmp.eq.f32.partialorder %v692, 0.0
    %v751 = vand.u32 %v692, 2147483648
    %v752 = vsel %vm750, %v751, %v749
    %v753 = vrsqrt.pop %v693
    %v754 = vmul.f32 %v693, %v753
    %vm755 = vcmp.eq.f32.partialorder %v693, inf
    %v756 = vsel %vm755, %v693, %v754
    %vm757 = vcmp.eq.f32.partialorder %v693, 0.0
    %v758 = vand.u32 %v693, 2147483648
    %v759 = vsel %vm757, %v758, %v756
    %v760 = vrsqrt.pop %v694
    %v761 = vmul.f32 %v694, %v760
    %vm762 = vcmp.eq.f32.partialorder %v694, inf
    %v763 = vsel %vm762, %v694, %v761
    %vm764 = vcmp.eq.f32.partialorder %v694, 0.0
    %v765 = vand.u32 %v694, 2147483648
    %v766 = vsel %vm764, %v765, %v763
    %v767 = vmul.f32 %v717, 31.622776
    %v768 = vmul.f32 %v724, 31.622776
    %v769 = vmul.f32 %v731, 31.622776
    %v770 = vmul.f32 %v738, 31.622776
    %v771 = vmul.f32 %v745, 31.622776
    %v772 = vmul.f32 %v752, 31.622776
    %v773 = vmul.f32 %v759, 31.622776
    %v774 = vmul.f32 %v766, 31.622776
    %v775 = vadd.f32 %v767, 1e-08
    %v776 = vadd.f32 %v768, 1e-08
    %v777 = vadd.f32 %v769, 1e-08
    %v778 = vadd.f32 %v770, 1e-08
    %v779 = vadd.f32 %v771, 1e-08
    %v780 = vadd.f32 %v772, 1e-08
    %v781 = vadd.f32 %v773, 1e-08
    %v782 = vadd.f32 %v774, 1e-08
    %v783 = vrcp.pop %v775
    %v784 = vmul.f32 %v671, %v783
    %v785 = vrcp.pop %v776
    %v786 = vmul.f32 %v672, %v785
    %v787 = vrcp.pop %v777
    %v788 = vmul.f32 %v673, %v787
    %v789 = vrcp.pop %v778
    %v790 = vmul.f32 %v674, %v789
    %v791 = vrcp.pop %v779
    %v792 = vmul.f32 %v675, %v791
    %v793 = vrcp.pop %v780
    %v794 = vmul.f32 %v676, %v793
    %v795 = vrcp.pop %v781
    %v796 = vmul.f32 %v677, %v795
    %v797 = vrcp.pop %v782
    %v798 = vmul.f32 %v678, %v797
    %v799 = vmul.f32 %v784, 0.001
    %v800 = vmul.f32 %v786, 0.001
    %v801 = vmul.f32 %v788, 0.001
    %v802 = vmul.f32 %v790, 0.001
    %v803 = vmul.f32 %v792, 0.001
    %v804 = vmul.f32 %v794, 0.001
    %v805 = vmul.f32 %v796, 0.001
    %v806 = vmul.f32 %v798, 0.001
    %v807 = vsub.f32 %v34, %v799
    %v808 = vsub.f32 %v35, %v800
    %v809 = vsub.f32 %v36, %v801
    %v810 = vsub.f32 %v37, %v802
    %v811 = vsub.f32 %v38, %v803
    %v812 = vsub.f32 %v39, %v804
    %v813 = vsub.f32 %v40, %v805
    %v814 = vsub.f32 %v41, %v806
    %v815 = vmul.f32 %v670, 0.1
    %v816 = vmul.f32 %v670, %v670
    %v817 = vmul.f32 %v816, 0.001
    %vm818 = vcmask 516096
    %819 = vst.msk [vmem:[#allocation4] sm:$0x1] %vm818, %v815
    %820 = vst.msk [vmem:[#allocation5] sm:$0x1] %vm818, %v817
    %v821 = vrsqrt.pop %v817
    %v822 = vmul.f32 %v817, %v821
    %vm823 = vcmp.eq.f32.partialorder %v817, inf
    %v824 = vsel %vm823, %v817, %v822
    %vm825 = vcmp.eq.f32.partialorder %v817, 0.0
    %v826 = vand.u32 %v817, 2147483648
    %v827 = vsel %vm825, %v826, %v824
    %v828 = vmul.f32 %v827, 31.622776
    %v829 = vadd.f32 %v828, 1e-08
    %v830 = vrcp.pop %v829
    %v831 = vmul.f32 %v815, %v830
    %v832 = vmul.f32 %v831, 0.001
    %v833 = vsub.f32 %v50, %v832
    %v834 = vmul.f32 %v385, 0.1
    %v835 = vmul.f32 %v390, 0.1
    %v836 = vmul.f32 %v395, 0.1
    %v837 = vmul.f32 %v400, 0.1
    %v838 = vmul.f32 %v405, 0.1
    %v839 = vmul.f32 %v410, 0.1
    %v840 = vmul.f32 %v415, 0.1
    %v841 = vmul.f32 %v420, 0.1
    %v842 = vmul.f32 %v385, %v385
    %v843 = vmul.f32 %v390, %v390
    %v844 = vmul.f32 %v395, %v395
    %v845 = vmul.f32 %v400, %v400
    %v846 = vmul.f32 %v405, %v405
    %v847 = vmul.f32 %v410, %v410
    %v848 = vmul.f32 %v415, %v415
    %v849 = vmul.f32 %v420, %v420
    %v850 = vmul.f32 %v842, 0.001
    %v851 = vmul.f32 %v843, 0.001
    %v852 = vmul.f32 %v844, 0.001
    %v853 = vmul.f32 %v845, 0.001
    %v854 = vmul.f32 %v846, 0.001
    %v855 = vmul.f32 %v847, 0.001
    %v856 = vmul.f32 %v848, 0.001
    %v857 = vmul.f32 %v849, 0.001
    %858 = vst [vmem:[#allocation6] sm:$0xff] %v834
    %859 = vst [vmem:[#allocation6 + $0x8] sm:$0xff] %v835
    %860 = vst [vmem:[#allocation6 + $0x10] sm:$0xff] %v836
    %861 = vst [vmem:[#allocation6 + $0x18] sm:$0xff] %v837
    %862 = vst [vmem:[#allocation6 + $0x20] sm:$0xff] %v838
    %863 = vst [vmem:[#allocation6 + $0x28] sm:$0xff] %v839
    %864 = vst [vmem:[#allocation6 + $0x30] sm:$0xff] %v840
    %865 = vst [vmem:[#allocation6 + $0x38] sm:$0xff] %v841
    %866 = vst [vmem:[#allocation7] sm:$0xff] %v850
    %867 = vst [vmem:[#allocation7 + $0x8] sm:$0xff] %v851
    %868 = vst [vmem:[#allocation7 + $0x10] sm:$0xff] %v852
    %869 = vst [vmem:[#allocation7 + $0x18] sm:$0xff] %v853
    %870 = vst [vmem:[#allocation7 + $0x20] sm:$0xff] %v854
    %871 = vst [vmem:[#allocation7 + $0x28] sm:$0xff] %v855
    %872 = vst [vmem:[#allocation7 + $0x30] sm:$0xff] %v856
    %873 = vst [vmem:[#allocation7 + $0x38] sm:$0xff] %v857
    %v874 = vrsqrt.pop %v850
    %v875 = vmul.f32 %v850, %v874
    %vm876 = vcmp.eq.f32.partialorder %v850, inf
    %v877 = vsel %vm876, %v850, %v875
    %vm878 = vcmp.eq.f32.partialorder %v850, 0.0
    %v879 = vand.u32 %v850, 2147483648
    %v880 = vsel %vm878, %v879, %v877
    %v881 = vrsqrt.pop %v851
    %v882 = vmul.f32 %v851, %v881
    %vm883 = vcmp.eq.f32.partialorder %v851, inf
    %v884 = vsel %vm883, %v851, %v882
    %vm885 = vcmp.eq.f32.partialorder %v851, 0.0
    %v886 = vand.u32 %v851, 2147483648
    %v887 = vsel %vm885, %v886, %v884
    %v888 = vrsqrt.pop %v852
    %v889 = vmul.f32 %v852, %v888
    %vm890 = vcmp.eq.f32.partialorder %v852, inf
    %v891 = vsel %vm890, %v852, %v889
    %vm892 = vcmp.eq.f32.partialorder %v852, 0.0
    %v893 = vand.u32 %v852, 2147483648
    %v894 = vsel %vm892, %v893, %v891
    %v895 = vrsqrt.pop %v853
    %v896 = vmul.f32 %v853, %v895
    %vm897 = vcmp.eq.f32.partialorder %v853, inf
    %v898 = vsel %vm897, %v853, %v896
    %vm899 = vcmp.eq.f32.partialorder %v853, 0.0
    %v900 = vand.u32 %v853, 2147483648
    %v901 = vsel %vm899, %v900, %v898
    %v902 = vrsqrt.pop %v854
    %v903 = vmul.f32 %v854, %v902
    %vm904 = vcmp.eq.f32.partialorder %v854, inf
    %v905 = vsel %vm904, %v854, %v903
    %vm906 = vcmp.eq.f32.partialorder %v854, 0.0
    %v907 = vand.u32 %v854, 2147483648
    %v908 = vsel %vm906, %v907, %v905
    %v909 = vrsqrt.pop %v855
    %v910 = vmul.f32 %v855, %v909
    %vm911 = vcmp.eq.f32.partialorder %v855, inf
    %v912 = vsel %vm911, %v855, %v910
    %vm913 = vcmp.eq.f32.partialorder %v855, 0.0
    %v914 = vand.u32 %v855, 2147483648
    %v915 = vsel %vm913, %v914, %v912
    %v916 = vrsqrt.pop %v856
    %v917 = vmul.f32 %v856, %v916
    %vm918 = vcmp.eq.f32.partialorder %v856, inf
    %v919 = vsel %vm918, %v856, %v917
    %vm920 = vcmp.eq.f32.partialorder %v856, 0.0
    %v921 = vand.u32 %v856, 2147483648
    %v922 = vsel %vm920, %v921, %v919
    %v923 = vrsqrt.pop %v857
    %v924 = vmul.f32 %v857, %v923
    %vm925 = vcmp.eq.f32.partialorder %v857, inf
    %v926 = vsel %vm925, %v857, %v924
    %vm927 = vcmp.eq.f32.partialorder %v857, 0.0
    %v928 = vand.u32 %v857, 2147483648
    %v929 = vsel %vm927, %v928, %v926
    %v930 = vmul.f32 %v880, 31.622776
    %v931 = vmul.f32 %v887, 31.622776
    %v932 = vmul.f32 %v894, 31.622776
    %v933 = vmul.f32 %v901, 31.622776
    %v934 = vmul.f32 %v908, 31.622776
    %v935 = vmul.f32 %v915, 31.622776
    %v936 = vmul.f32 %v922, 31.622776
    %v937 = vmul.f32 %v929, 31.622776
    %v938 = vadd.f32 %v930, 1e-08
    %v939 = vadd.f32 %v931, 1e-08
    %v940 = vadd.f32 %v932, 1e-08
    %v941 = vadd.f32 %v933, 1e-08
    %v942 = vadd.f32 %v934, 1e-08
    %v943 = vadd.f32 %v935, 1e-08
    %v944 = vadd.f32 %v936, 1e-08
    %v945 = vadd.f32 %v937, 1e-08
    %v946 = vrcp.pop %v938
    %v947 = vmul.f32 %v834, %v946
    %v948 = vrcp.pop %v939
    %v949 = vmul.f32 %v835, %v948
    %v950 = vrcp.pop %v940
    %v951 = vmul.f32 %v836, %v950
    %v952 = vrcp.pop %v941
    %v953 = vmul.f32 %v837, %v952
    %v954 = vrcp.pop %v942
    %v955 = vmul.f32 %v838, %v954
    %v956 = vrcp.pop %v943
    %v957 = vmul.f32 %v839, %v956
    %v958 = vrcp.pop %v944
    %v959 = vmul.f32 %v840, %v958
    %v960 = vrcp.pop %v945
    %v961 = vmul.f32 %v841, %v960
    %v962 = vmul.f32 %v947, 0.001
    %v963 = vmul.f32 %v949, 0.001
    %v964 = vmul.f32 %v951, 0.001
    %v965 = vmul.f32 %v953, 0.001
    %v966 = vmul.f32 %v955, 0.001
    %v967 = vmul.f32 %v957, 0.001
    %v968 = vmul.f32 %v959, 0.001
    %v969 = vmul.f32 %v961, 0.001
    %v970 = vsub.f32 %v42, %v962
    %v971 = vsub.f32 %v43, %v963
    %v972 = vsub.f32 %v44, %v964
    %v973 = vsub.f32 %v45, %v965
    %v974 = vsub.f32 %v46, %v966
    %v975 = vsub.f32 %v47, %v967
    %v976 = vsub.f32 %v48, %v968
    %v977 = vsub.f32 %v49, %v969
    %v978 = vmul.f32 %v428, 0.1
    %v979 = vmul.f32 %v428, %v428
    %v980 = vmul.f32 %v979, 0.001
    %981 = vst [vmem:[#allocation8] sm:$0x1] %v978
    %982 = vst [vmem:[#allocation9] sm:$0x1] %v980
    %v983 = vrsqrt.pop %v980
    %v984 = vmul.f32 %v980, %v983
    %vm985 = vcmp.eq.f32.partialorder %v980, inf
    %v986 = vsel %vm985, %v980, %v984
    %vm987 = vcmp.eq.f32.partialorder %v980, 0.0
    %v988 = vand.u32 %v980, 2147483648
    %v989 = vsel %vm987, %v988, %v986
    %v990 = vmul.f32 %v989, 31.622776
    %v991 = vadd.f32 %v990, 1e-08
    %v992 = vrcp.pop %v991
    %v993 = vmul.f32 %v978, %v992
    %v994 = vmul.f32 %v993, 0.001
    %v995 = vsub.f32 %v51, %v994
    %v996 = vlaneseq
    %v997 = vshrl.u32 %v996, 7
    %v998 = vsub.s32 0, %v997
    %v999 = vrot.slane %v833, %v998
    %1000 = vmatprep.subr.mxu0 0.0
    %1001 = vmatpush1.xpose.msra.mxu0 %v807
    %1002 = vmatprep.subr.mxu0 0.0
    %1003 = vmatpush1.xpose.msra.mxu0 %v808
    %1004 = vmatprep.subr.mxu0 0.0
    %1005 = vmatpush1.xpose.msra.mxu0 %v809
    %1006 = vmatprep.subr.mxu0 0.0
    %1007 = vmatpush1.xpose.msra.mxu0 %v810
    %1008 = vmatprep.subr.mxu0 0.0
    %1009 = vmatpush1.xpose.msra.mxu0 %v811
    %1010 = vmatprep.subr.mxu0 0.0
    %1011 = vmatpush1.xpose.msra.mxu0 %v812
    %1012 = vmatprep.subr.mxu0 0.0
    %1013 = vmatpush1.xpose.msra.mxu0 %v813
    %1014 = vmatprep.subr.mxu0 0.0
    %1015 = vmatpush1.xpose.msra.mxu0 %v814
    %1016 = vmatprep.subr.mxu0 0.0
    %1017 = vmatpush1.xpose.msra.mxu0 0.0
    %1018 = vmatprep.subr.mxu0 0.0
    %1019 = vmatpush1.xpose.msra.mxu0 0.0
    %1020 = vmatprep.subr.mxu0 0.0
    %1021 = vmatpush1.xpose.msra.mxu0 0.0
    %1022 = vmatprep.subr.mxu0 0.0
    %1023 = vmatpush1.xpose.msra.mxu0 0.0
    %1024 = vmatprep.subr.mxu0 0.0
    %1025 = vmatpush1.xpose.msra.mxu0 0.0
    %1026 = vmatprep.subr.mxu0 0.0
    %1027 = vmatpush1.xpose.msra.mxu0 0.0
    %1028 = vmatprep.subr.mxu0 0.0
    %1029 = vmatpush1.xpose.msra.mxu0 0.0
    %1030 = vmatprep.subr.mxu0 0.0
    %1031 = vmatpush1.xpose.msra.mxu0 0.0
    %1032 = vmatprep.subr.mxu0 0.0
    %1033 = vmatpush1.xpose.msra.mxu0 0.0
    %1034 = vmatprep.subr.mxu0 0.0
    %1035 = vmatpush1.xpose.msra.mxu0 0.0
    %1036 = vmatprep.subr.mxu0 0.0
    %1037 = vmatpush1.xpose.msra.mxu0 0.0
    %1038 = vmatprep.subr.mxu0 0.0
    %1039 = vmatpush1.xpose.msra.mxu0 0.0
    %1040 = vmatprep.subr.mxu0 0.0
    %1041 = vmatpush1.xpose.msra.mxu0 0.0
    %1042 = vmatprep.subr.mxu0 0.0
    %1043 = vmatpush1.xpose.msra.mxu0 0.0
    %1044 = vmatprep.subr.mxu0 0.0
    %1045 = vmatpush1.xpose.msra.mxu0 0.0
    %1046 = vmatprep.subr.mxu0 0.0
    %1047 = vmatpush1.xpose.msra.mxu0 0.0
    %1048 = vmatprep.subr.mxu0 0.0
    %1049 = vmatpush1.xpose.msra.mxu0 0.0
    %1050 = vmatprep.subr.mxu0 0.0
    %1051 = vmatpush1.xpose.msra.mxu0 0.0
    %1052 = vmatprep.subr.mxu0 0.0
    %1053 = vmatpush1.xpose.msra.mxu0 0.0
    %1054 = vmatprep.subr.mxu0 0.0
    %1055 = vmatpush1.xpose.msra.mxu0 0.0
    %1056 = vmatprep.subr.mxu0 0.0
    %1057 = vmatpush1.xpose.msra.mxu0 0.0
    %1058 = vmatprep.subr.mxu0 0.0
    %1059 = vmatpush1.xpose.msra.mxu0 0.0
    %1060 = vmatprep.subr.mxu0 0.0
    %1061 = vmatpush1.xpose.msra.mxu0 0.0
    %1062 = vmatprep.subr.mxu0 0.0
    %1063 = vmatpush1.xpose.msra.mxu0 0.0
    %1064 = vmatprep.mubr.f32.mxu0 0.0
    %1065 = vmatmul.mubr.f32.gmra.mrb[0].mxu0 %v31
    %v1066 = vpop.f32.mrb[0].mxu0
    %v1067 = vadd.f32 %v999, %v1066
    %v1068 = vpop.f32.mrb[0].mxu0
    %1069 = vdwg.mxu0
    %v1070 = vmax.f32 %v1067, 0.0
    %v1071 = vlaneseq
    %v1072 = vshrl.u32 %v1071, 7
    %v1073 = vsub.s32 0, %v1072
    %v1074 = vrot.slane %v995, %v1073
    %v1076 = vsel %vm131, %v1070, 0
    %1078 = vmatprep.subr.mxu0 0.0
    %1079 = vmatpush1.msra.mxu0 %v970
    %1080 = vmatprep.subr.mxu0 0.0
    %1081 = vmatpush1.msra.mxu0 %v971
    %1082 = vmatprep.subr.mxu0 0.0
    %1083 = vmatpush1.msra.mxu0 %v972
    %1084 = vmatprep.subr.mxu0 0.0
    %1085 = vmatpush1.msra.mxu0 %v973
    %1086 = vmatprep.subr.mxu0 0.0
    %1087 = vmatpush1.msra.mxu0 %v974
    %1088 = vmatprep.subr.mxu0 0.0
    %1089 = vmatpush1.msra.mxu0 %v975
    %1090 = vmatprep.subr.mxu0 0.0
    %1091 = vmatpush1.msra.mxu0 %v976
    %1092 = vmatprep.subr.mxu0 0.0
    %1093 = vmatpush1.msra.mxu0 %v977
    %1094 = vmatprep.subr.mxu0 0.0
    %1095 = vmatpush1.msra.mxu0 0.0
    %1096 = vmatprep.subr.mxu0 0.0
    %1097 = vmatpush1.msra.mxu0 0.0
    %1098 = vmatprep.subr.mxu0 0.0
    %1099 = vmatpush1.msra.mxu0 0.0
    %1100 = vmatprep.subr.mxu0 0.0
    %1101 = vmatpush1.msra.mxu0 0.0
    %1102 = vmatprep.subr.mxu0 0.0
    %1103 = vmatpush1.msra.mxu0 0.0
    %1104 = vmatprep.subr.mxu0 0.0
    %1105 = vmatpush1.msra.mxu0 0.0
    %1106 = vmatprep.subr.mxu0 0.0
    %1107 = vmatpush1.msra.mxu0 0.0
    %1108 = vmatprep.subr.mxu0 0.0
    %1109 = vmatpush1.msra.mxu0 0.0
    %1110 = vmatprep.subr.mxu0 0.0
    %1111 = vmatpush1.msra.mxu0 0.0
    %1112 = vmatprep.subr.mxu0 0.0
    %1113 = vmatpush1.msra.mxu0 0.0
    %1114 = vmatprep.subr.mxu0 0.0
    %1115 = vmatpush1.msra.mxu0 0.0
    %1116 = vmatprep.subr.mxu0 0.0
    %1117 = vmatpush1.msra.mxu0 0.0
    %1118 = vmatprep.subr.mxu0 0.0
    %1119 = vmatpush1.msra.mxu0 0.0
    %1120 = vmatprep.subr.mxu0 0.0
    %1121 = vmatpush1.msra.mxu0 0.0
    %1122 = vmatprep.subr.mxu0 0.0
    %1123 = vmatpush1.msra.mxu0 0.0
    %1124 = vmatprep.subr.mxu0 0.0
    %1125 = vmatpush1.msra.mxu0 0.0
    %1126 = vmatprep.subr.mxu0 0.0
    %1127 = vmatpush1.msra.mxu0 0.0
    %1128 = vmatprep.subr.mxu0 0.0
    %1129 = vmatpush1.msra.mxu0 0.0
    %1130 = vmatprep.subr.mxu0 0.0
    %1131 = vmatpush1.msra.mxu0 0.0
    %1132 = vmatprep.subr.mxu0 0.0
    %1133 = vmatpush1.msra.mxu0 0.0
    %1134 = vmatprep.subr.mxu0 0.0
    %1135 = vmatpush1.msra.mxu0 0.0
    %1136 = vmatprep.subr.mxu0 0.0
    %1137 = vmatpush1.msra.mxu0 0.0
    %1138 = vmatprep.subr.mxu0 0.0
    %1139 = vmatpush1.msra.mxu0 0.0
    %1140 = vmatprep.subr.mxu0 0.0
    %1141 = vmatpush1.msra.mxu0 0.0
    %1142 = vmatprep.mubr.f32.mxu0 0.0
    %1143 = vmatmul.mubr.f32.gmra.mrb[0].mxu0 %v1076
    %v1144 = vpop.f32.mrb[0].mxu0
    %v1145 = vadd.f32 %v1074, %v1144
    %v1146 = vpop.f32.mrb[0].mxu0
    %1147 = vdwg.mxu0
    %v1148 = vxor.u32 %v1145, 2147483648
    %v1149 = vmul.f32 %v1148, 1.442695
    %v1150 = vpow.pop %v1149
    %v1151 = vadd.f32 %v1150, 1.0
    %v1152 = vrcp.pop %v1151
    %v1153 = vmul.f32 1.0, %v1152
    %v1154 = vrot.slane %v1153, 4
    %v1155 = vadd.f32 %v1153, %v1154
    %v1156 = vrot.slane %v1155, 2
    %v1157 = vadd.f32 %v1155, %v1156
    %v1158 = vrot.slane %v1157, 1
    %v1159 = vadd.f32 %v1157, %v1158
    %v1160 = vmul.f32 %v1159, %v217
    %v1161 = vmul.f32 %v31, %v1160
    %1162 = vadd.xlane.f32.xlu0 %v1161
    %v1163 = vpop.xlane.xlu0 %1162
    %v1164 = vsub.f32 %v1163, %v32
    %v1165 = vmul.f32 %v1164, %v1164
    %v1166 = vsel %vm224, %v1165, 0.0
    %1167 = vadd.xlane.f32.xlu0 %v1166
    %v1168 = vpop.xlane.xlu0 %1167
    %v1169 = vrot.slane %v1168, 4
    %v1170 = vadd.f32 %v1168, %v1169
    %v1171 = vrot.slane %v1170, 2
    %v1172 = vadd.f32 %v1170, %v1171
    %v1173 = vrot.slane %v1172, 1
    %v1174 = vadd.f32 %v1172, %v1173
    %s1175 = vtos %v1174
    %v1176 = vrcp.pop 8.0
    %s1177 = vtos %v1176
    %s1178 = smul.f32 %s1175, %s1177
    %s1179 = sadd.f32 %s1178, 1e-06
    %v1180 = vstv %s1179
    %v1181 = vrsqrt.pop %v1180
    %s1182 = vtos %v1181
    %s1183 = smul.f32 %s1182, 0.125
    %v1184 = vstv %s1183
    %v1185 = vmul.f32 %v1164, %v1184
    %1187 = vset.pattern.permute.xlu0 0
    %1188 = vperm.xlu0 %1187, %v1185
    %v1189 = vpop.permute.xlu0 %1188
    %v1191 = vmul.f32 %v31, %v1189
    %v1192 = vrot.slane %v1191, 4
    %v1193 = vadd.f32 %v1191, %v1192
    %v1194 = vrot.slane %v1193, 2
    %v1195 = vadd.f32 %v1193, %v1194
    %v1196 = vrot.slane %v1195, 1
    %v1197 = vadd.f32 %v1195, %v1196
    %v1198 = vmul.f32 %v1197, 0.125
    %v1199 = vmul.f32 %v1198, %v1153
    %v1200 = vsub.f32 1.0, %v1153
    %v1201 = vmul.f32 %v1199, %v1200
    %1202 = vxpose.xlu0.b32.start [1/16] %v1070, 128
    %1203 = vxpose.xlu0.b32.cont [2/16] 0.0, 128
    %1204 = vxpose.xlu0.b32.cont [3/16] 0.0, 128
    %1205 = vxpose.xlu0.b32.cont [4/16] 0.0, 128
    %1206 = vxpose.xlu0.b32.cont [5/16] 0.0, 128
    %1207 = vxpose.xlu0.b32.cont [6/16] 0.0, 128
    %1208 = vxpose.xlu0.b32.cont [7/16] 0.0, 128
    %1209 = vxpose.xlu0.b32.cont [8/16] 0.0, 128
    %1210 = vxpose.xlu0.b32.cont [9/16] 0.0, 128
    %1211 = vxpose.xlu0.b32.cont [10/16] 0.0, 128
    %1212 = vxpose.xlu0.b32.cont [11/16] 0.0, 128
    %1213 = vxpose.xlu0.b32.cont [12/16] 0.0, 128
    %1214 = vxpose.xlu0.b32.cont [13/16] 0.0, 128
    %1215 = vxpose.xlu0.b32.cont [14/16] 0.0, 128
    %1216 = vxpose.xlu0.b32.cont [15/16] 0.0, 128
    %1217 = vxpose.xlu0.b32.end [16/16] 0.0, 128
    %v1218 = vpop.trf.xlu0
    %v1219 = vpop.trf.xlu0
    %v1220 = vpop.trf.xlu0
    %v1221 = vpop.trf.xlu0
    %v1222 = vpop.trf.xlu0
    %v1223 = vpop.trf.xlu0
    %v1224 = vpop.trf.xlu0
    %v1225 = vpop.trf.xlu0
    %v1226 = vpop.trf.xlu0
    %v1227 = vpop.trf.xlu0
    %v1228 = vpop.trf.xlu0
    %v1229 = vpop.trf.xlu0
    %v1230 = vpop.trf.xlu0
    %v1231 = vpop.trf.xlu0
    %v1232 = vpop.trf.xlu0
    %v1233 = vpop.trf.xlu0
    %v1235 = vsel %vm293, %v1218, 0
    %v1238 = vsel %vm293, %v1219, 0
    %v1241 = vsel %vm293, %v1220, 0
    %v1244 = vsel %vm293, %v1221, 0
    %v1247 = vsel %vm293, %v1222, 0
    %v1250 = vsel %vm293, %v1223, 0
    %v1253 = vsel %vm293, %v1224, 0
    %v1256 = vsel %vm293, %v1225, 0
    %1258 = vmatprep.subr.mxu0 0.0
    %1259 = vmatpush1.msra.mxu0 %v1201
    %1260 = vmatprep.subr.mxu0 0.0
    %1261 = vmatpush1.msra.mxu0 0.0
    %1262 = vmatprep.subr.mxu0 0.0
    %1263 = vmatpush1.msra.mxu0 0.0
    %1264 = vmatprep.subr.mxu0 0.0
    %1265 = vmatpush1.msra.mxu0 0.0
    %1266 = vmatprep.subr.mxu0 0.0
    %1267 = vmatpush1.msra.mxu0 0.0
    %1268 = vmatprep.subr.mxu0 0.0
    %1269 = vmatpush1.msra.mxu0 0.0
    %1270 = vmatprep.subr.mxu0 0.0
    %1271 = vmatpush1.msra.mxu0 0.0
    %1272 = vmatprep.subr.mxu0 0.0
    %1273 = vmatpush1.msra.mxu0 0.0
    %1274 = vmatprep.subr.mxu0 0.0
    %1275 = vmatpush1.msra.mxu0 0.0
    %1276 = vmatprep.subr.mxu0 0.0
    %1277 = vmatpush1.msra.mxu0 0.0
    %1278 = vmatprep.subr.mxu0 0.0
    %1279 = vmatpush1.msra.mxu0 0.0
    %1280 = vmatprep.subr.mxu0 0.0
    %1281 = vmatpush1.msra.mxu0 0.0
    %1282 = vmatprep.subr.mxu0 0.0
    %1283 = vmatpush1.msra.mxu0 0.0
    %1284 = vmatprep.subr.mxu0 0.0
    %1285 = vmatpush1.msra.mxu0 0.0
    %1286 = vmatprep.subr.mxu0 0.0
    %1287 = vmatpush1.msra.mxu0 0.0
    %1288 = vmatprep.subr.mxu0 0.0
    %1289 = vmatpush1.msra.mxu0 0.0
    %1290 = vmatprep.subr.mxu0 0.0
    %1291 = vmatpush1.msra.mxu0 0.0
    %1292 = vmatprep.subr.mxu0 0.0
    %1293 = vmatpush1.msra.mxu0 0.0
    %1294 = vmatprep.subr.mxu0 0.0
    %1295 = vmatpush1.msra.mxu0 0.0
    %1296 = vmatprep.subr.mxu0 0.0
    %1297 = vmatpush1.msra.mxu0 0.0
    %1298 = vmatprep.subr.mxu0 0.0
    %1299 = vmatpush1.msra.mxu0 0.0
    %1300 = vmatprep.subr.mxu0 0.0
    %1301 = vmatpush1.msra.mxu0 0.0
    %1302 = vmatprep.subr.mxu0 0.0
    %1303 = vmatpush1.msra.mxu0 0.0
    %1304 = vmatprep.subr.mxu0 0.0
    %1305 = vmatpush1.msra.mxu0 0.0
    %1306 = vmatprep.subr.mxu0 0.0
    %1307 = vmatpush1.msra.mxu0 0.0
    %1308 = vmatprep.subr.mxu0 0.0
    %1309 = vmatpush1.msra.mxu0 0.0
    %1310 = vmatprep.subr.mxu0 0.0
    %1311 = vmatpush1.msra.mxu0 0.0
    %1312 = vmatprep.subr.mxu0 0.0
    %1313 = vmatpush1.msra.mxu0 0.0
    %1314 = vmatprep.subr.mxu0 0.0
    %1315 = vmatpush1.msra.mxu0 0.0
    %1316 = vmatprep.subr.mxu0 0.0
    %1317 = vmatpush1.msra.mxu0 0.0
    %1318 = vmatprep.subr.mxu0 0.0
    %1319 = vmatpush1.msra.mxu0 0.0
    %1320 = vmatprep.subr.mxu0 0.0
    %1321 = vmatpush1.msra.mxu0 0.0
    %1322 = vmatprep.mubr.f32.mxu0 0.0
    %1323 = vmatmul.mubr.f32.gmra.mrb[0].mxu0 %v1235
    %v1324 = vpop.f32.mrb[0].mxu0
    %v1325 = vadd.f32 0.0, %v1324
    %v1326 = vpop.f32.mrb[0].mxu0
    %1327 = vmatprep.mubr.f32.mxu0 0.0
    %1328 = vmatmul.mubr.f32.gmra.mrb[0].mxu0 %v1238
    %v1329 = vpop.f32.mrb[0].mxu0
    %v1330 = vadd.f32 0.0, %v1329
    %v1331 = vpop.f32.mrb[0].mxu0
    %1332 = vmatprep.mubr.f32.mxu0 0.0
    %1333 = vmatmul.mubr.f32.gmra.mrb[0].mxu0 %v1241
    %v1334 = vpop.f32.mrb[0].mxu0
    %v1335 = vadd.f32 0.0, %v1334
    %v1336 = vpop.f32.mrb[0].mxu0
    %1337 = vmatprep.mubr.f32.mxu0 0.0
    %1338 = vmatmul.mubr.f32.gmra.mrb[0].mxu0 %v1244
    %v1339 = vpop.f32.mrb[0].mxu0
    %v1340 = vadd.f32 0.0, %v1339
    %v1341 = vpop.f32.mrb[0].mxu0
    %1342 = vmatprep.mubr.f32.mxu0 0.0
    %1343 = vmatmul.mubr.f32.gmra.mrb[0].mxu0 %v1247
    %v1344 = vpop.f32.mrb[0].mxu0
    %v1345 = vadd.f32 0.0, %v1344
    %v1346 = vpop.f32.mrb[0].mxu0
    %1347 = vmatprep.mubr.f32.mxu0 0.0
    %1348 = vmatmul.mubr.f32.gmra.mrb[0].mxu0 %v1250
    %v1349 = vpop.f32.mrb[0].mxu0
    %v1350 = vadd.f32 0.0, %v1349
    %v1351 = vpop.f32.mrb[0].mxu0
    %1352 = vmatprep.mubr.f32.mxu0 0.0
    %1353 = vmatmul.mubr.f32.gmra.mrb[0].mxu0 %v1253
    %v1354 = vpop.f32.mrb[0].mxu0
    %v1355 = vadd.f32 0.0, %v1354
    %v1356 = vpop.f32.mrb[0].mxu0
    %1357 = vmatprep.mubr.f32.mxu0 0.0
    %1358 = vmatmul.mubr.f32.gmra.mrb[0].mxu0 %v1256
    %v1359 = vpop.f32.mrb[0].mxu0
    %v1360 = vadd.f32 0.0, %v1359
    %v1361 = vpop.f32.mrb[0].mxu0
    %1362 = vdwg.mxu0
    %v1363 = vrot.slane %v1201, 4
    %v1364 = vadd.f32 %v1201, %v1363
    %v1365 = vrot.slane %v1364, 2
    %v1366 = vadd.f32 %v1364, %v1365
    %v1367 = vrot.slane %v1366, 1
    %v1368 = vadd.f32 %v1366, %v1367
    %1369 = vmatprep.subr.mxu0 0.0
    %1370 = vmatpush1.xpose.msra.mxu0 %v970
    %1371 = vmatprep.subr.mxu0 0.0
    %1372 = vmatpush1.xpose.msra.mxu0 %v971
    %1373 = vmatprep.subr.mxu0 0.0
    %1374 = vmatpush1.xpose.msra.mxu0 %v972
    %1375 = vmatprep.subr.mxu0 0.0
    %1376 = vmatpush1.xpose.msra.mxu0 %v973
    %1377 = vmatprep.subr.mxu0 0.0
    %1378 = vmatpush1.xpose.msra.mxu0 %v974
    %1379 = vmatprep.subr.mxu0 0.0
    %1380 = vmatpush1.xpose.msra.mxu0 %v975
    %1381 = vmatprep.subr.mxu0 0.0
    %1382 = vmatpush1.xpose.msra.mxu0 %v976
    %1383 = vmatprep.subr.mxu0 0.0
    %1384 = vmatpush1.xpose.msra.mxu0 %v977
    %1385 = vmatprep.subr.mxu0 0.0
    %1386 = vmatpush1.xpose.msra.mxu0 0.0
    %1387 = vmatprep.subr.mxu0 0.0
    %1388 = vmatpush1.xpose.msra.mxu0 0.0
    %1389 = vmatprep.subr.mxu0 0.0
    %1390 = vmatpush1.xpose.msra.mxu0 0.0
    %1391 = vmatprep.subr.mxu0 0.0
    %1392 = vmatpush1.xpose.msra.mxu0 0.0
    %1393 = vmatprep.subr.mxu0 0.0
    %1394 = vmatpush1.xpose.msra.mxu0 0.0
    %1395 = vmatprep.subr.mxu0 0.0
    %1396 = vmatpush1.xpose.msra.mxu0 0.0
    %1397 = vmatprep.subr.mxu0 0.0
    %1398 = vmatpush1.xpose.msra.mxu0 0.0
    %1399 = vmatprep.subr.mxu0 0.0
    %1400 = vmatpush1.xpose.msra.mxu0 0.0
    %1401 = vmatprep.subr.mxu0 0.0
    %1402 = vmatpush1.xpose.msra.mxu0 0.0
    %1403 = vmatprep.subr.mxu0 0.0
    %1404 = vmatpush1.xpose.msra.mxu0 0.0
    %1405 = vmatprep.subr.mxu0 0.0
    %1406 = vmatpush1.xpose.msra.mxu0 0.0
    %1407 = vmatprep.subr.mxu0 0.0
    %1408 = vmatpush1.xpose.msra.mxu0 0.0
    %1409 = vmatprep.subr.mxu0 0.0
    %1410 = vmatpush1.xpose.msra.mxu0 0.0
    %1411 = vmatprep.subr.mxu0 0.0
    %1412 = vmatpush1.xpose.msra.mxu0 0.0
    %1413 = vmatprep.subr.mxu0 0.0
    %1414 = vmatpush1.xpose.msra.mxu0 0.0
    %1415 = vmatprep.subr.mxu0 0.0
    %1416 = vmatpush1.xpose.msra.mxu0 0.0
    %1417 = vmatprep.subr.mxu0 0.0
    %1418 = vmatpush1.xpose.msra.mxu0 0.0
    %1419 = vmatprep.subr.mxu0 0.0
    %1420 = vmatpush1.xpose.msra.mxu0 0.0
    %1421 = vmatprep.subr.mxu0 0.0
    %1422 = vmatpush1.xpose.msra.mxu0 0.0
    %1423 = vmatprep.subr.mxu0 0.0
    %1424 = vmatpush1.xpose.msra.mxu0 0.0
    %1425 = vmatprep.subr.mxu0 0.0
    %1426 = vmatpush1.xpose.msra.mxu0 0.0
    %1427 = vmatprep.subr.mxu0 0.0
    %1428 = vmatpush1.xpose.msra.mxu0 0.0
    %1429 = vmatprep.subr.mxu0 0.0
    %1430 = vmatpush1.xpose.msra.mxu0 0.0
    %1431 = vmatprep.subr.mxu0 0.0
    %1432 = vmatpush1.xpose.msra.mxu0 0.0
    %1433 = vmatprep.mubr.f32.mxu0 0.0
    %1434 = vmatmul.mubr.f32.gmra.mrb[0].mxu0 %v1201
    %v1435 = vpop.f32.mrb[0].mxu0
    %v1436 = vadd.f32 0.0, %v1435
    %v1437 = vpop.f32.mrb[0].mxu0
    %1438 = vdwg.mxu0
    %vm1439 = vcmp.gt.f32.partialorder %v1067, 0.0
    %v1440 = vsel %vm1439, 1, 0
    %v1441 = vcvt.s32.f32 %v1440
    %v1442 = vmul.f32 %v1436, %v1441
    %1443 = vxpose.xlu0.b32.start [1/16] %v1442, 128
    %1444 = vxpose.xlu0.b32.cont [2/16] 0.0, 128
    %1445 = vxpose.xlu0.b32.cont [3/16] 0.0, 128
    %1446 = vxpose.xlu0.b32.cont [4/16] 0.0, 128
    %1447 = vxpose.xlu0.b32.cont [5/16] 0.0, 128
    %1448 = vxpose.xlu0.b32.cont [6/16] 0.0, 128
    %1449 = vxpose.xlu0.b32.cont [7/16] 0.0, 128
    %1450 = vxpose.xlu0.b32.cont [8/16] 0.0, 128
    %1451 = vxpose.xlu0.b32.cont [9/16] 0.0, 128
    %1452 = vxpose.xlu0.b32.cont [10/16] 0.0, 128
    %1453 = vxpose.xlu0.b32.cont [11/16] 0.0, 128
    %1454 = vxpose.xlu0.b32.cont [12/16] 0.0, 128
    %1455 = vxpose.xlu0.b32.cont [13/16] 0.0, 128
    %1456 = vxpose.xlu0.b32.cont [14/16] 0.0, 128
    %1457 = vxpose.xlu0.b32.cont [15/16] 0.0, 128
    %1458 = vxpose.xlu0.b32.end [16/16] 0.0, 128
    %v1459 = vpop.trf.xlu0
    %v1460 = vpop.trf.xlu0
    %v1461 = vpop.trf.xlu0
    %v1462 = vpop.trf.xlu0
    %v1463 = vpop.trf.xlu0
    %v1464 = vpop.trf.xlu0
    %v1465 = vpop.trf.xlu0
    %v1466 = vpop.trf.xlu0
    %v1467 = vpop.trf.xlu0
    %v1468 = vpop.trf.xlu0
    %v1469 = vpop.trf.xlu0
    %v1470 = vpop.trf.xlu0
    %v1471 = vpop.trf.xlu0
    %v1472 = vpop.trf.xlu0
    %v1473 = vpop.trf.xlu0
    %v1474 = vpop.trf.xlu0
    %v1476 = vsel %vm293, %v1459, 0
    %v1479 = vsel %vm293, %v1460, 0
    %v1482 = vsel %vm293, %v1461, 0
    %v1485 = vsel %vm293, %v1462, 0
    %v1488 = vsel %vm293, %v1463, 0
    %v1491 = vsel %vm293, %v1464, 0
    %v1494 = vsel %vm293, %v1465, 0
    %v1497 = vsel %vm293, %v1466, 0
    %1499 = vmatprep.subr.mxu0 0.0
    %1500 = vmatpush1.msra.mxu0 %v31
    %1501 = vmatprep.subr.mxu0 0.0
    %1502 = vmatpush1.msra.mxu0 0.0
    %1503 = vmatprep.subr.mxu0 0.0
    %1504 = vmatpush1.msra.mxu0 0.0
    %1505 = vmatprep.subr.mxu0 0.0
    %1506 = vmatpush1.msra.mxu0 0.0
    %1507 = vmatprep.subr.mxu0 0.0
    %1508 = vmatpush1.msra.mxu0 0.0
    %1509 = vmatprep.subr.mxu0 0.0
    %1510 = vmatpush1.msra.mxu0 0.0
    %1511 = vmatprep.subr.mxu0 0.0
    %1512 = vmatpush1.msra.mxu0 0.0
    %1513 = vmatprep.subr.mxu0 0.0
    %1514 = vmatpush1.msra.mxu0 0.0
    %1515 = vmatprep.subr.mxu0 0.0
    %1516 = vmatpush1.msra.mxu0 0.0
    %1517 = vmatprep.subr.mxu0 0.0
    %1518 = vmatpush1.msra.mxu0 0.0
    %1519 = vmatprep.subr.mxu0 0.0
    %1520 = vmatpush1.msra.mxu0 0.0
    %1521 = vmatprep.subr.mxu0 0.0
    %1522 = vmatpush1.msra.mxu0 0.0
    %1523 = vmatprep.subr.mxu0 0.0
    %1524 = vmatpush1.msra.mxu0 0.0
    %1525 = vmatprep.subr.mxu0 0.0
    %1526 = vmatpush1.msra.mxu0 0.0
    %1527 = vmatprep.subr.mxu0 0.0
    %1528 = vmatpush1.msra.mxu0 0.0
    %1529 = vmatprep.subr.mxu0 0.0
    %1530 = vmatpush1.msra.mxu0 0.0
    %1531 = vmatprep.subr.mxu0 0.0
    %1532 = vmatpush1.msra.mxu0 0.0
    %1533 = vmatprep.subr.mxu0 0.0
    %1534 = vmatpush1.msra.mxu0 0.0
    %1535 = vmatprep.subr.mxu0 0.0
    %1536 = vmatpush1.msra.mxu0 0.0
    %1537 = vmatprep.subr.mxu0 0.0
    %1538 = vmatpush1.msra.mxu0 0.0
    %1539 = vmatprep.subr.mxu0 0.0
    %1540 = vmatpush1.msra.mxu0 0.0
    %1541 = vmatprep.subr.mxu0 0.0
    %1542 = vmatpush1.msra.mxu0 0.0
    %1543 = vmatprep.subr.mxu0 0.0
    %1544 = vmatpush1.msra.mxu0 0.0
    %1545 = vmatprep.subr.mxu0 0.0
    %1546 = vmatpush1.msra.mxu0 0.0
    %1547 = vmatprep.subr.mxu0 0.0
    %1548 = vmatpush1.msra.mxu0 0.0
    %1549 = vmatprep.subr.mxu0 0.0
    %1550 = vmatpush1.msra.mxu0 0.0
    %1551 = vmatprep.subr.mxu0 0.0
    %1552 = vmatpush1.msra.mxu0 0.0
    %1553 = vmatprep.subr.mxu0 0.0
    %1554 = vmatpush1.msra.mxu0 0.0
    %1555 = vmatprep.subr.mxu0 0.0
    %1556 = vmatpush1.msra.mxu0 0.0
    %1557 = vmatprep.subr.mxu0 0.0
    %1558 = vmatpush1.msra.mxu0 0.0
    %1559 = vmatprep.subr.mxu0 0.0
    %1560 = vmatpush1.msra.mxu0 0.0
    %1561 = vmatprep.subr.mxu0 0.0
    %1562 = vmatpush1.msra.mxu0 0.0
    %1563 = vmatprep.mubr.f32.mxu0 0.0
    %1564 = vmatmul.mubr.f32.gmra.mrb[0].mxu0 %v1476
    %v1565 = vpop.f32.mrb[0].mxu0
    %v1566 = vadd.f32 0.0, %v1565
    %v1567 = vpop.f32.mrb[0].mxu0
    %1568 = vmatprep.mubr.f32.mxu0 0.0
    %1569 = vmatmul.mubr.f32.gmra.mrb[0].mxu0 %v1479
    %v1570 = vpop.f32.mrb[0].mxu0
    %v1571 = vadd.f32 0.0, %v1570
    %v1572 = vpop.f32.mrb[0].mxu0
    %1573 = vmatprep.mubr.f32.mxu0 0.0
    %1574 = vmatmul.mubr.f32.gmra.mrb[0].mxu0 %v1482
    %v1575 = vpop.f32.mrb[0].mxu0
    %v1576 = vadd.f32 0.0, %v1575
    %v1577 = vpop.f32.mrb[0].mxu0
    %1578 = vmatprep.mubr.f32.mxu0 0.0
    %1579 = vmatmul.mubr.f32.gmra.mrb[0].mxu0 %v1485
    %v1580 = vpop.f32.mrb[0].mxu0
    %v1581 = vadd.f32 0.0, %v1580
    %v1582 = vpop.f32.mrb[0].mxu0
    %1583 = vmatprep.mubr.f32.mxu0 0.0
    %1584 = vmatmul.mubr.f32.gmra.mrb[0].mxu0 %v1488
    %v1585 = vpop.f32.mrb[0].mxu0
    %v1586 = vadd.f32 0.0, %v1585
    %v1587 = vpop.f32.mrb[0].mxu0
    %1588 = vmatprep.mubr.f32.mxu0 0.0
    %1589 = vmatmul.mubr.f32.gmra.mrb[0].mxu0 %v1491
    %v1590 = vpop.f32.mrb[0].mxu0
    %v1591 = vadd.f32 0.0, %v1590
    %v1592 = vpop.f32.mrb[0].mxu0
    %1593 = vmatprep.mubr.f32.mxu0 0.0
    %1594 = vmatmul.mubr.f32.gmra.mrb[0].mxu0 %v1494
    %v1595 = vpop.f32.mrb[0].mxu0
    %v1596 = vadd.f32 0.0, %v1595
    %v1597 = vpop.f32.mrb[0].mxu0
    %1598 = vmatprep.mubr.f32.mxu0 0.0
    %1599 = vmatmul.mubr.f32.gmra.mrb[0].mxu0 %v1497
    %v1600 = vpop.f32.mrb[0].mxu0
    %v1601 = vadd.f32 0.0, %v1600
    %v1602 = vpop.f32.mrb[0].mxu0
    %1603 = vdwg.mxu0
    %v1604 = vsel %vm131, %v1442, 0.0
    %v1605 = vrot.slane %v1604, 4
    %v1606 = vadd.f32 %v1604, %v1605
    %v1607 = vrot.slane %v1606, 2
    %v1608 = vadd.f32 %v1606, %v1607
    %v1609 = vrot.slane %v1608, 1
    %v1610 = vadd.f32 %v1608, %v1609
    %v1611 = vld [vmem:[#allocation2] sm:$0xff]
    %v1612 = vld [vmem:[#allocation2 + $0x8] sm:$0xff]
    %v1613 = vld [vmem:[#allocation2 + $0x10] sm:$0xff]
    %v1614 = vld [vmem:[#allocation2 + $0x18] sm:$0xff]
    %v1615 = vld [vmem:[#allocation2 + $0x20] sm:$0xff]
    %v1616 = vld [vmem:[#allocation2 + $0x28] sm:$0xff]
    %v1617 = vld [vmem:[#allocation2 + $0x30] sm:$0xff]
    %v1618 = vld [vmem:[#allocation2 + $0x38] sm:$0xff]
    %v1619 = vmul.f32 %v1611, 0.9
    %v1620 = vmul.f32 %v1612, 0.9
    %v1621 = vmul.f32 %v1613, 0.9
    %v1622 = vmul.f32 %v1614, 0.9
    %v1623 = vmul.f32 %v1615, 0.9
    %v1624 = vmul.f32 %v1616, 0.9
    %v1625 = vmul.f32 %v1617, 0.9
    %v1626 = vmul.f32 %v1618, 0.9
    %v1627 = vmul.f32 %v1566, 0.1
    %v1628 = vmul.f32 %v1571, 0.1
    %v1629 = vmul.f32 %v1576, 0.1
    %v1630 = vmul.f32 %v1581, 0.1
    %v1631 = vmul.f32 %v1586, 0.1
    %v1632 = vmul.f32 %v1591, 0.1
    %v1633 = vmul.f32 %v1596, 0.1
    %v1634 = vmul.f32 %v1601, 0.1
    %v1635 = vadd.f32 %v1619, %v1627
    %v1636 = vadd.f32 %v1620, %v1628
    %v1637 = vadd.f32 %v1621, %v1629
    %v1638 = vadd.f32 %v1622, %v1630
    %v1639 = vadd.f32 %v1623, %v1631
    %v1640 = vadd.f32 %v1624, %v1632
    %v1641 = vadd.f32 %v1625, %v1633
    %v1642 = vadd.f32 %v1626, %v1634
    %v1643 = vld [vmem:[#allocation3] sm:$0xff]
    %v1644 = vld [vmem:[#allocation3 + $0x8] sm:$0xff]
    %v1645 = vld [vmem:[#allocation3 + $0x10] sm:$0xff]
    %v1646 = vld [vmem:[#allocation3 + $0x18] sm:$0xff]
    %v1647 = vld [vmem:[#allocation3 + $0x20] sm:$0xff]
    %v1648 = vld [vmem:[#allocation3 + $0x28] sm:$0xff]
    %v1649 = vld [vmem:[#allocation3 + $0x30] sm:$0xff]
    %v1650 = vld [vmem:[#allocation3 + $0x38] sm:$0xff]
    %v1651 = vmul.f32 %v1643, 0.999
    %v1652 = vmul.f32 %v1644, 0.999
    %v1653 = vmul.f32 %v1645, 0.999
    %v1654 = vmul.f32 %v1646, 0.999
    %v1655 = vmul.f32 %v1647, 0.999
    %v1656 = vmul.f32 %v1648, 0.999
    %v1657 = vmul.f32 %v1649, 0.999
    %v1658 = vmul.f32 %v1650, 0.999
    %v1659 = vmul.f32 %v1566, %v1566
    %v1660 = vmul.f32 %v1571, %v1571
    %v1661 = vmul.f32 %v1576, %v1576
    %v1662 = vmul.f32 %v1581, %v1581
    %v1663 = vmul.f32 %v1586, %v1586
    %v1664 = vmul.f32 %v1591, %v1591
    %v1665 = vmul.f32 %v1596, %v1596
    %v1666 = vmul.f32 %v1601, %v1601
    %v1667 = vmul.f32 %v1659, 0.001
    %v1668 = vmul.f32 %v1660, 0.001
    %v1669 = vmul.f32 %v1661, 0.001
    %v1670 = vmul.f32 %v1662, 0.001
    %v1671 = vmul.f32 %v1663, 0.001
    %v1672 = vmul.f32 %v1664, 0.001
    %v1673 = vmul.f32 %v1665, 0.001
    %v1674 = vmul.f32 %v1666, 0.001
    %v1675 = vadd.f32 %v1651, %v1667
    %v1676 = vadd.f32 %v1652, %v1668
    %v1677 = vadd.f32 %v1653, %v1669
    %v1678 = vadd.f32 %v1654, %v1670
    %v1679 = vadd.f32 %v1655, %v1671
    %v1680 = vadd.f32 %v1656, %v1672
    %v1681 = vadd.f32 %v1657, %v1673
    %v1682 = vadd.f32 %v1658, %v1674
    %1683 = vst [vmem:[#allocation2] sm:$0xff] %v1635
    %1684 = vst [vmem:[#allocation2 + $0x8] sm:$0xff] %v1636
    %1685 = vst [vmem:[#allocation2 + $0x10] sm:$0xff] %v1637
    %1686 = vst [vmem:[#allocation2 + $0x18] sm:$0xff] %v1638
    %1687 = vst [vmem:[#allocation2 + $0x20] sm:$0xff] %v1639
    %1688 = vst [vmem:[#allocation2 + $0x28] sm:$0xff] %v1640
    %1689 = vst [vmem:[#allocation2 + $0x30] sm:$0xff] %v1641
    %1690 = vst [vmem:[#allocation2 + $0x38] sm:$0xff] %v1642
    %1691 = vst [vmem:[#allocation3] sm:$0xff] %v1675
    %1692 = vst [vmem:[#allocation3 + $0x8] sm:$0xff] %v1676
    %1693 = vst [vmem:[#allocation3 + $0x10] sm:$0xff] %v1677
    %1694 = vst [vmem:[#allocation3 + $0x18] sm:$0xff] %v1678
    %1695 = vst [vmem:[#allocation3 + $0x20] sm:$0xff] %v1679
    %1696 = vst [vmem:[#allocation3 + $0x28] sm:$0xff] %v1680
    %1697 = vst [vmem:[#allocation3 + $0x30] sm:$0xff] %v1681
    %1698 = vst [vmem:[#allocation3 + $0x38] sm:$0xff] %v1682
    %v1699 = vrsqrt.pop %v1675
    %v1700 = vmul.f32 %v1675, %v1699
    %vm1701 = vcmp.eq.f32.partialorder %v1675, inf
    %v1702 = vsel %vm1701, %v1675, %v1700
    %vm1703 = vcmp.eq.f32.partialorder %v1675, 0.0
    %v1704 = vand.u32 %v1675, 2147483648
    %v1705 = vsel %vm1703, %v1704, %v1702
    %v1706 = vrsqrt.pop %v1676
    %v1707 = vmul.f32 %v1676, %v1706
    %vm1708 = vcmp.eq.f32.partialorder %v1676, inf
    %v1709 = vsel %vm1708, %v1676, %v1707
    %vm1710 = vcmp.eq.f32.partialorder %v1676, 0.0
    %v1711 = vand.u32 %v1676, 2147483648
    %v1712 = vsel %vm1710, %v1711, %v1709
    %v1713 = vrsqrt.pop %v1677
    %v1714 = vmul.f32 %v1677, %v1713
    %vm1715 = vcmp.eq.f32.partialorder %v1677, inf
    %v1716 = vsel %vm1715, %v1677, %v1714
    %vm1717 = vcmp.eq.f32.partialorder %v1677, 0.0
    %v1718 = vand.u32 %v1677, 2147483648
    %v1719 = vsel %vm1717, %v1718, %v1716
    %v1720 = vrsqrt.pop %v1678
    %v1721 = vmul.f32 %v1678, %v1720
    %vm1722 = vcmp.eq.f32.partialorder %v1678, inf
    %v1723 = vsel %vm1722, %v1678, %v1721
    %vm1724 = vcmp.eq.f32.partialorder %v1678, 0.0
    %v1725 = vand.u32 %v1678, 2147483648
    %v1726 = vsel %vm1724, %v1725, %v1723
    %v1727 = vrsqrt.pop %v1679
    %v1728 = vmul.f32 %v1679, %v1727
    %vm1729 = vcmp.eq.f32.partialorder %v1679, inf
    %v1730 = vsel %vm1729, %v1679, %v1728
    %vm1731 = vcmp.eq.f32.partialorder %v1679, 0.0
    %v1732 = vand.u32 %v1679, 2147483648
    %v1733 = vsel %vm1731, %v1732, %v1730
    %v1734 = vrsqrt.pop %v1680
    %v1735 = vmul.f32 %v1680, %v1734
    %vm1736 = vcmp.eq.f32.partialorder %v1680, inf
    %v1737 = vsel %vm1736, %v1680, %v1735
    %vm1738 = vcmp.eq.f32.partialorder %v1680, 0.0
    %v1739 = vand.u32 %v1680, 2147483648
    %v1740 = vsel %vm1738, %v1739, %v1737
    %v1741 = vrsqrt.pop %v1681
    %v1742 = vmul.f32 %v1681, %v1741
    %vm1743 = vcmp.eq.f32.partialorder %v1681, inf
    %v1744 = vsel %vm1743, %v1681, %v1742
    %vm1745 = vcmp.eq.f32.partialorder %v1681, 0.0
    %v1746 = vand.u32 %v1681, 2147483648
    %v1747 = vsel %vm1745, %v1746, %v1744
    %v1748 = vrsqrt.pop %v1682
    %v1749 = vmul.f32 %v1682, %v1748
    %vm1750 = vcmp.eq.f32.partialorder %v1682, inf
    %v1751 = vsel %vm1750, %v1682, %v1749
    %vm1752 = vcmp.eq.f32.partialorder %v1682, 0.0
    %v1753 = vand.u32 %v1682, 2147483648
    %v1754 = vsel %vm1752, %v1753, %v1751
    %v1755 = vmul.f32 %v1705, 22.366272
    %v1756 = vmul.f32 %v1712, 22.366272
    %v1757 = vmul.f32 %v1719, 22.366272
    %v1758 = vmul.f32 %v1726, 22.366272
    %v1759 = vmul.f32 %v1733, 22.366272
    %v1760 = vmul.f32 %v1740, 22.366272
    %v1761 = vmul.f32 %v1747, 22.366272
    %v1762 = vmul.f32 %v1754, 22.366272
    %v1763 = vadd.f32 %v1755, 1e-08
    %v1764 = vadd.f32 %v1756, 1e-08
    %v1765 = vadd.f32 %v1757, 1e-08
    %v1766 = vadd.f32 %v1758, 1e-08
    %v1767 = vadd.f32 %v1759, 1e-08
    %v1768 = vadd.f32 %v1760, 1e-08
    %v1769 = vadd.f32 %v1761, 1e-08
    %v1770 = vadd.f32 %v1762, 1e-08
    %v1771 = vrcp.pop %v1763
    %v1772 = vmul.f32 %v1635, %v1771
    %v1773 = vrcp.pop %v1764
    %v1774 = vmul.f32 %v1636, %v1773
    %v1775 = vrcp.pop %v1765
    %v1776 = vmul.f32 %v1637, %v1775
    %v1777 = vrcp.pop %v1766
    %v1778 = vmul.f32 %v1638, %v1777
    %v1779 = vrcp.pop %v1767
    %v1780 = vmul.f32 %v1639, %v1779
    %v1781 = vrcp.pop %v1768
    %v1782 = vmul.f32 %v1640, %v1781
    %v1783 = vrcp.pop %v1769
    %v1784 = vmul.f32 %v1641, %v1783
    %v1785 = vrcp.pop %v1770
    %v1786 = vmul.f32 %v1642, %v1785
    %v1787 = vmul.f32 %v1772, 0.00052631577
    %v1788 = vmul.f32 %v1774, 0.00052631577
    %v1789 = vmul.f32 %v1776, 0.00052631577
    %v1790 = vmul.f32 %v1778, 0.00052631577
    %v1791 = vmul.f32 %v1780, 0.00052631577
    %v1792 = vmul.f32 %v1782, 0.00052631577
    %v1793 = vmul.f32 %v1784, 0.00052631577
    %v1794 = vmul.f32 %v1786, 0.00052631577
    %v1795 = vsub.f32 %v807, %v1787
    %v1796 = vsub.f32 %v808, %v1788
    %v1797 = vsub.f32 %v809, %v1789
    %v1798 = vsub.f32 %v810, %v1790
    %v1799 = vsub.f32 %v811, %v1791
    %v1800 = vsub.f32 %v812, %v1792
    %v1801 = vsub.f32 %v813, %v1793
    %v1802 = vsub.f32 %v814, %v1794
    %v1803 = vld [vmem:[#allocation4] sm:$0x1]
    %v1804 = vmul.f32 %v1803, 0.9
    %v1805 = vmul.f32 %v1610, 0.1
    %v1806 = vadd.f32 %v1804, %v1805
    %v1807 = vld [vmem:[#allocation5] sm:$0x1]
    %v1808 = vmul.f32 %v1807, 0.999
    %v1809 = vmul.f32 %v1610, %v1610
    %v1810 = vmul.f32 %v1809, 0.001
    %v1811 = vadd.f32 %v1808, %v1810
    %1812 = vst.msk [vmem:[#allocation4] sm:$0x1] %vm818, %v1806
    %1813 = vst.msk [vmem:[#allocation5] sm:$0x1] %vm818, %v1811
    %v1814 = vrsqrt.pop %v1811
    %v1815 = vmul.f32 %v1811, %v1814
    %vm1816 = vcmp.eq.f32.partialorder %v1811, inf
    %v1817 = vsel %vm1816, %v1811, %v1815
    %vm1818 = vcmp.eq.f32.partialorder %v1811, 0.0
    %v1819 = vand.u32 %v1811, 2147483648
    %v1820 = vsel %vm1818, %v1819, %v1817
    %v1821 = vmul.f32 %v1820, 22.366272
    %v1822 = vadd.f32 %v1821, 1e-08
    %v1823 = vrcp.pop %v1822
    %v1824 = vmul.f32 %v1806, %v1823
    %v1825 = vmul.f32 %v1824, 0.00052631577
    %v1826 = vsub.f32 %v833, %v1825
    %v1827 = vld [vmem:[#allocation6] sm:$0xff]
    %v1828 = vld [vmem:[#allocation6 + $0x8] sm:$0xff]
    %v1829 = vld [vmem:[#allocation6 + $0x10] sm:$0xff]
    %v1830 = vld [vmem:[#allocation6 + $0x18] sm:$0xff]
    %v1831 = vld [vmem:[#allocation6 + $0x20] sm:$0xff]
    %v1832 = vld [vmem:[#allocation6 + $0x28] sm:$0xff]
    %v1833 = vld [vmem:[#allocation6 + $0x30] sm:$0xff]
    %v1834 = vld [vmem:[#allocation6 + $0x38] sm:$0xff]
    %v1835 = vmul.f32 %v1827, 0.9
    %v1836 = vmul.f32 %v1828, 0.9
    %v1837 = vmul.f32 %v1829, 0.9
    %v1838 = vmul.f32 %v1830, 0.9
    %v1839 = vmul.f32 %v1831, 0.9
    %v1840 = vmul.f32 %v1832, 0.9
    %v1841 = vmul.f32 %v1833, 0.9
    %v1842 = vmul.f32 %v1834, 0.9
    %v1843 = vmul.f32 %v1325, 0.1
    %v1844 = vmul.f32 %v1330, 0.1
    %v1845 = vmul.f32 %v1335, 0.1
    %v1846 = vmul.f32 %v1340, 0.1
    %v1847 = vmul.f32 %v1345, 0.1
    %v1848 = vmul.f32 %v1350, 0.1
    %v1849 = vmul.f32 %v1355, 0.1
    %v1850 = vmul.f32 %v1360, 0.1
    %v1851 = vadd.f32 %v1835, %v1843
    %v1852 = vadd.f32 %v1836, %v1844
    %v1853 = vadd.f32 %v1837, %v1845
    %v1854 = vadd.f32 %v1838, %v1846
    %v1855 = vadd.f32 %v1839, %v1847
    %v1856 = vadd.f32 %v1840, %v1848
    %v1857 = vadd.f32 %v1841, %v1849
    %v1858 = vadd.f32 %v1842, %v1850
    %v1859 = vld [vmem:[#allocation7] sm:$0xff]
    %v1860 = vld [vmem:[#allocation7 + $0x8] sm:$0xff]
    %v1861 = vld [vmem:[#allocation7 + $0x10] sm:$0xff]
    %v1862 = vld [vmem:[#allocation7 + $0x18] sm:$0xff]
    %v1863 = vld [vmem:[#allocation7 + $0x20] sm:$0xff]
    %v1864 = vld [vmem:[#allocation7 + $0x28] sm:$0xff]
    %v1865 = vld [vmem:[#allocation7 + $0x30] sm:$0xff]
    %v1866 = vld [vmem:[#allocation7 + $0x38] sm:$0xff]
    %v1867 = vmul.f32 %v1859, 0.999
    %v1868 = vmul.f32 %v1860, 0.999
    %v1869 = vmul.f32 %v1861, 0.999
    %v1870 = vmul.f32 %v1862, 0.999
    %v1871 = vmul.f32 %v1863, 0.999
    %v1872 = vmul.f32 %v1864, 0.999
    %v1873 = vmul.f32 %v1865, 0.999
    %v1874 = vmul.f32 %v1866, 0.999
    %v1875 = vmul.f32 %v1325, %v1325
    %v1876 = vmul.f32 %v1330, %v1330
    %v1877 = vmul.f32 %v1335, %v1335
    %v1878 = vmul.f32 %v1340, %v1340
    %v1879 = vmul.f32 %v1345, %v1345
    %v1880 = vmul.f32 %v1350, %v1350
    %v1881 = vmul.f32 %v1355, %v1355
    %v1882 = vmul.f32 %v1360, %v1360
    %v1883 = vmul.f32 %v1875, 0.001
    %v1884 = vmul.f32 %v1876, 0.001
    %v1885 = vmul.f32 %v1877, 0.001
    %v1886 = vmul.f32 %v1878, 0.001
    %v1887 = vmul.f32 %v1879, 0.001
    %v1888 = vmul.f32 %v1880, 0.001
    %v1889 = vmul.f32 %v1881, 0.001
    %v1890 = vmul.f32 %v1882, 0.001
    %v1891 = vadd.f32 %v1867, %v1883
    %v1892 = vadd.f32 %v1868, %v1884
    %v1893 = vadd.f32 %v1869, %v1885
    %v1894 = vadd.f32 %v1870, %v1886
    %v1895 = vadd.f32 %v1871, %v1887
    %v1896 = vadd.f32 %v1872, %v1888
    %v1897 = vadd.f32 %v1873, %v1889
    %v1898 = vadd.f32 %v1874, %v1890
    %1899 = vst [vmem:[#allocation6] sm:$0xff] %v1851
    %1900 = vst [vmem:[#allocation6 + $0x8] sm:$0xff] %v1852
    %1901 = vst [vmem:[#allocation6 + $0x10] sm:$0xff] %v1853
    %1902 = vst [vmem:[#allocation6 + $0x18] sm:$0xff] %v1854
    %1903 = vst [vmem:[#allocation6 + $0x20] sm:$0xff] %v1855
    %1904 = vst [vmem:[#allocation6 + $0x28] sm:$0xff] %v1856
    %1905 = vst [vmem:[#allocation6 + $0x30] sm:$0xff] %v1857
    %1906 = vst [vmem:[#allocation6 + $0x38] sm:$0xff] %v1858
    %1907 = vst [vmem:[#allocation7] sm:$0xff] %v1891
    %1908 = vst [vmem:[#allocation7 + $0x8] sm:$0xff] %v1892
    %1909 = vst [vmem:[#allocation7 + $0x10] sm:$0xff] %v1893
    %1910 = vst [vmem:[#allocation7 + $0x18] sm:$0xff] %v1894
    %1911 = vst [vmem:[#allocation7 + $0x20] sm:$0xff] %v1895
    %1912 = vst [vmem:[#allocation7 + $0x28] sm:$0xff] %v1896
    %1913 = vst [vmem:[#allocation7 + $0x30] sm:$0xff] %v1897
    %1914 = vst [vmem:[#allocation7 + $0x38] sm:$0xff] %v1898
    %v1915 = vrsqrt.pop %v1891
    %v1916 = vmul.f32 %v1891, %v1915
    %vm1917 = vcmp.eq.f32.partialorder %v1891, inf
    %v1918 = vsel %vm1917, %v1891, %v1916
    %vm1919 = vcmp.eq.f32.partialorder %v1891, 0.0
    %v1920 = vand.u32 %v1891, 2147483648
    %v1921 = vsel %vm1919, %v1920, %v1918
    %v1922 = vrsqrt.pop %v1892
    %v1923 = vmul.f32 %v1892, %v1922
    %vm1924 = vcmp.eq.f32.partialorder %v1892, inf
    %v1925 = vsel %vm1924, %v1892, %v1923
    %vm1926 = vcmp.eq.f32.partialorder %v1892, 0.0
    %v1927 = vand.u32 %v1892, 2147483648
    %v1928 = vsel %vm1926, %v1927, %v1925
    %v1929 = vrsqrt.pop %v1893
    %v1930 = vmul.f32 %v1893, %v1929
    %vm1931 = vcmp.eq.f32.partialorder %v1893, inf
    %v1932 = vsel %vm1931, %v1893, %v1930
    %vm1933 = vcmp.eq.f32.partialorder %v1893, 0.0
    %v1934 = vand.u32 %v1893, 2147483648
    %v1935 = vsel %vm1933, %v1934, %v1932
    %v1936 = vrsqrt.pop %v1894
    %v1937 = vmul.f32 %v1894, %v1936
    %vm1938 = vcmp.eq.f32.partialorder %v1894, inf
    %v1939 = vsel %vm1938, %v1894, %v1937
    %vm1940 = vcmp.eq.f32.partialorder %v1894, 0.0
    %v1941 = vand.u32 %v1894, 2147483648
    %v1942 = vsel %vm1940, %v1941, %v1939
    %v1943 = vrsqrt.pop %v1895
    %v1944 = vmul.f32 %v1895, %v1943
    %vm1945 = vcmp.eq.f32.partialorder %v1895, inf
    %v1946 = vsel %vm1945, %v1895, %v1944
    %vm1947 = vcmp.eq.f32.partialorder %v1895, 0.0
    %v1948 = vand.u32 %v1895, 2147483648
    %v1949 = vsel %vm1947, %v1948, %v1946
    %v1950 = vrsqrt.pop %v1896
    %v1951 = vmul.f32 %v1896, %v1950
    %vm1952 = vcmp.eq.f32.partialorder %v1896, inf
    %v1953 = vsel %vm1952, %v1896, %v1951
    %vm1954 = vcmp.eq.f32.partialorder %v1896, 0.0
    %v1955 = vand.u32 %v1896, 2147483648
    %v1956 = vsel %vm1954, %v1955, %v1953
    %v1957 = vrsqrt.pop %v1897
    %v1958 = vmul.f32 %v1897, %v1957
    %vm1959 = vcmp.eq.f32.partialorder %v1897, inf
    %v1960 = vsel %vm1959, %v1897, %v1958
    %vm1961 = vcmp.eq.f32.partialorder %v1897, 0.0
    %v1962 = vand.u32 %v1897, 2147483648
    %v1963 = vsel %vm1961, %v1962, %v1960
    %v1964 = vrsqrt.pop %v1898
    %v1965 = vmul.f32 %v1898, %v1964
    %vm1966 = vcmp.eq.f32.partialorder %v1898, inf
    %v1967 = vsel %vm1966, %v1898, %v1965
    %vm1968 = vcmp.eq.f32.partialorder %v1898, 0.0
    %v1969 = vand.u32 %v1898, 2147483648
    %v1970 = vsel %vm1968, %v1969, %v1967
    %v1971 = vmul.f32 %v1921, 22.366272
    %v1972 = vmul.f32 %v1928, 22.366272
    %v1973 = vmul.f32 %v1935, 22.366272
    %v1974 = vmul.f32 %v1942, 22.366272
    %v1975 = vmul.f32 %v1949, 22.366272
    %v1976 = vmul.f32 %v1956, 22.366272
    %v1977 = vmul.f32 %v1963, 22.366272
    %v1978 = vmul.f32 %v1970, 22.366272
    %v1979 = vadd.f32 %v1971, 1e-08
    %v1980 = vadd.f32 %v1972, 1e-08
    %v1981 = vadd.f32 %v1973, 1e-08
    %v1982 = vadd.f32 %v1974, 1e-08
    %v1983 = vadd.f32 %v1975, 1e-08
    %v1984 = vadd.f32 %v1976, 1e-08
    %v1985 = vadd.f32 %v1977, 1e-08
    %v1986 = vadd.f32 %v1978, 1e-08
    %v1987 = vrcp.pop %v1979
    %v1988 = vmul.f32 %v1851, %v1987
    %v1989 = vrcp.pop %v1980
    %v1990 = vmul.f32 %v1852, %v1989
    %v1991 = vrcp.pop %v1981
    %v1992 = vmul.f32 %v1853, %v1991
    %v1993 = vrcp.pop %v1982
    %v1994 = vmul.f32 %v1854, %v1993
    %v1995 = vrcp.pop %v1983
    %v1996 = vmul.f32 %v1855, %v1995
    %v1997 = vrcp.pop %v1984
    %v1998 = vmul.f32 %v1856, %v1997
    %v1999 = vrcp.pop %v1985
    %v2000 = vmul.f32 %v1857, %v1999
    %v2001 = vrcp.pop %v1986
    %v2002 = vmul.f32 %v1858, %v2001
    %v2003 = vmul.f32 %v1988, 0.00052631577
    %v2004 = vmul.f32 %v1990, 0.00052631577
    %v2005 = vmul.f32 %v1992, 0.00052631577
    %v2006 = vmul.f32 %v1994, 0.00052631577
    %v2007 = vmul.f32 %v1996, 0.00052631577
    %v2008 = vmul.f32 %v1998, 0.00052631577
    %v2009 = vmul.f32 %v2000, 0.00052631577
    %v2010 = vmul.f32 %v2002, 0.00052631577
    %v2011 = vsub.f32 %v970, %v2003
    %v2012 = vsub.f32 %v971, %v2004
    %v2013 = vsub.f32 %v972, %v2005
    %v2014 = vsub.f32 %v973, %v2006
    %v2015 = vsub.f32 %v974, %v2007
    %v2016 = vsub.f32 %v975, %v2008
    %v2017 = vsub.f32 %v976, %v2009
    %v2018 = vsub.f32 %v977, %v2010
    %v2019 = vld [vmem:[#allocation8] sm:$0x1]
    %v2020 = vmul.f32 %v2019, 0.9
    %v2021 = vmul.f32 %v1368, 0.1
    %v2022 = vadd.f32 %v2020, %v2021
    %v2023 = vld [vmem:[#allocation9] sm:$0x1]
    %v2024 = vmul.f32 %v2023, 0.999
    %v2025 = vmul.f32 %v1368, %v1368
    %v2026 = vmul.f32 %v2025, 0.001
    %v2027 = vadd.f32 %v2024, %v2026
    %2028 = vst [vmem:[#allocation8] sm:$0x1] %v2022
    %2029 = vst [vmem:[#allocation9] sm:$0x1] %v2027
    %v2030 = vrsqrt.pop %v2027
    %v2031 = vmul.f32 %v2027, %v2030
    %vm2032 = vcmp.eq.f32.partialorder %v2027, inf
    %v2033 = vsel %vm2032, %v2027, %v2031
    %vm2034 = vcmp.eq.f32.partialorder %v2027, 0.0
    %v2035 = vand.u32 %v2027, 2147483648
    %v2036 = vsel %vm2034, %v2035, %v2033
    %v2037 = vmul.f32 %v2036, 22.366272
    %v2038 = vadd.f32 %v2037, 1e-08
    %v2039 = vrcp.pop %v2038
    %v2040 = vmul.f32 %v2022, %v2039
    %v2041 = vmul.f32 %v2040, 0.00052631577
    %v2042 = vsub.f32 %v995, %v2041
    %v2043 = vlaneseq
    %v2044 = vshrl.u32 %v2043, 7
    %v2045 = vsub.s32 0, %v2044
    %v2046 = vrot.slane %v1826, %v2045
    %2047 = vmatprep.subr.mxu0 0.0
    %2048 = vmatpush1.xpose.msra.mxu0 %v1795
    %2049 = vmatprep.subr.mxu0 0.0
    %2050 = vmatpush1.xpose.msra.mxu0 %v1796
    %2051 = vmatprep.subr.mxu0 0.0
    %2052 = vmatpush1.xpose.msra.mxu0 %v1797
    %2053 = vmatprep.subr.mxu0 0.0
    %2054 = vmatpush1.xpose.msra.mxu0 %v1798
    %2055 = vmatprep.subr.mxu0 0.0
    %2056 = vmatpush1.xpose.msra.mxu0 %v1799
    %2057 = vmatprep.subr.mxu0 0.0
    %2058 = vmatpush1.xpose.msra.mxu0 %v1800
    %2059 = vmatprep.subr.mxu0 0.0
    %2060 = vmatpush1.xpose.msra.mxu0 %v1801
    %2061 = vmatprep.subr.mxu0 0.0
    %2062 = vmatpush1.xpose.msra.mxu0 %v1802
    %2063 = vmatprep.subr.mxu0 0.0
    %2064 = vmatpush1.xpose.msra.mxu0 0.0
    %2065 = vmatprep.subr.mxu0 0.0
    %2066 = vmatpush1.xpose.msra.mxu0 0.0
    %2067 = vmatprep.subr.mxu0 0.0
    %2068 = vmatpush1.xpose.msra.mxu0 0.0
    %2069 = vmatprep.subr.mxu0 0.0
    %2070 = vmatpush1.xpose.msra.mxu0 0.0
    %2071 = vmatprep.subr.mxu0 0.0
    %2072 = vmatpush1.xpose.msra.mxu0 0.0
    %2073 = vmatprep.subr.mxu0 0.0
    %2074 = vmatpush1.xpose.msra.mxu0 0.0
    %2075 = vmatprep.subr.mxu0 0.0
    %2076 = vmatpush1.xpose.msra.mxu0 0.0
    %2077 = vmatprep.subr.mxu0 0.0
    %2078 = vmatpush1.xpose.msra.mxu0 0.0
    %2079 = vmatprep.subr.mxu0 0.0
    %2080 = vmatpush1.xpose.msra.mxu0 0.0
    %2081 = vmatprep.subr.mxu0 0.0
    %2082 = vmatpush1.xpose.msra.mxu0 0.0
    %2083 = vmatprep.subr.mxu0 0.0
    %2084 = vmatpush1.xpose.msra.mxu0 0.0
    %2085 = vmatprep.subr.mxu0 0.0
    %2086 = vmatpush1.xpose.msra.mxu0 0.0
    %2087 = vmatprep.subr.mxu0 0.0
    %2088 = vmatpush1.xpose.msra.mxu0 0.0
    %2089 = vmatprep.subr.mxu0 0.0
    %2090 = vmatpush1.xpose.msra.mxu0 0.0
    %2091 = vmatprep.subr.mxu0 0.0
    %2092 = vmatpush1.xpose.msra.mxu0 0.0
    %2093 = vmatprep.subr.mxu0 0.0
    %2094 = vmatpush1.xpose.msra.mxu0 0.0
    %2095 = vmatprep.subr.mxu0 0.0
    %2096 = vmatpush1.xpose.msra.mxu0 0.0
    %2097 = vmatprep.subr.mxu0 0.0
    %2098 = vmatpush1.xpose.msra.mxu0 0.0
    %2099 = vmatprep.subr.mxu0 0.0
    %2100 = vmatpush1.xpose.msra.mxu0 0.0
    %2101 = vmatprep.subr.mxu0 0.0
    %2102 = vmatpush1.xpose.msra.mxu0 0.0
    %2103 = vmatprep.subr.mxu0 0.0
    %2104 = vmatpush1.xpose.msra.mxu0 0.0
    %2105 = vmatprep.subr.mxu0 0.0
    %2106 = vmatpush1.xpose.msra.mxu0 0.0
    %2107 = vmatprep.subr.mxu0 0.0
    %2108 = vmatpush1.xpose.msra.mxu0 0.0
    %2109 = vmatprep.subr.mxu0 0.0
    %2110 = vmatpush1.xpose.msra.mxu0 0.0
    %2111 = vmatprep.mubr.f32.mxu0 0.0
    %2112 = vmatmul.mubr.f32.gmra.mrb[0].mxu0 %v31
    %v2113 = vpop.f32.mrb[0].mxu0
    %v2114 = vadd.f32 %v2046, %v2113
    %v2115 = vpop.f32.mrb[0].mxu0
    %2116 = vdwg.mxu0
    %v2117 = vmax.f32 %v2114, 0.0
    %v2118 = vlaneseq
    %v2119 = vshrl.u32 %v2118, 7
    %v2120 = vsub.s32 0, %v2119
    %v2121 = vrot.slane %v2042, %v2120
    %v2123 = vsel %vm131, %v2117, 0
    %2125 = vmatprep.subr.mxu0 0.0
    %2126 = vmatpush1.msra.mxu0 %v2011
    %2127 = vmatprep.subr.mxu0 0.0
    %2128 = vmatpush1.msra.mxu0 %v2012
    %2129 = vmatprep.subr.mxu0 0.0
    %2130 = vmatpush1.msra.mxu0 %v2013
    %2131 = vmatprep.subr.mxu0 0.0
    %2132 = vmatpush1.msra.mxu0 %v2014
    %2133 = vmatprep.subr.mxu0 0.0
    %2134 = vmatpush1.msra.mxu0 %v2015
    %2135 = vmatprep.subr.mxu0 0.0
    %2136 = vmatpush1.msra.mxu0 %v2016
    %2137 = vmatprep.subr.mxu0 0.0
    %2138 = vmatpush1.msra.mxu0 %v2017
    %2139 = vmatprep.subr.mxu0 0.0
    %2140 = vmatpush1.msra.mxu0 %v2018
    %2141 = vmatprep.subr.mxu0 0.0
    %2142 = vmatpush1.msra.mxu0 0.0
    %2143 = vmatprep.subr.mxu0 0.0
    %2144 = vmatpush1.msra.mxu0 0.0
    %2145 = vmatprep.subr.mxu0 0.0
    %2146 = vmatpush1.msra.mxu0 0.0
    %2147 = vmatprep.subr.mxu0 0.0
    %2148 = vmatpush1.msra.mxu0 0.0
    %2149 = vmatprep.subr.mxu0 0.0
    %2150 = vmatpush1.msra.mxu0 0.0
    %2151 = vmatprep.subr.mxu0 0.0
    %2152 = vmatpush1.msra.mxu0 0.0
    %2153 = vmatprep.subr.mxu0 0.0
    %2154 = vmatpush1.msra.mxu0 0.0
    %2155 = vmatprep.subr.mxu0 0.0
    %2156 = vmatpush1.msra.mxu0 0.0
    %2157 = vmatprep.subr.mxu0 0.0
    %2158 = vmatpush1.msra.mxu0 0.0
    %2159 = vmatprep.subr.mxu0 0.0
    %2160 = vmatpush1.msra.mxu0 0.0
    %2161 = vmatprep.subr.mxu0 0.0
    %2162 = vmatpush1.msra.mxu0 0.0
    %2163 = vmatprep.subr.mxu0 0.0
    %2164 = vmatpush1.msra.mxu0 0.0
    %2165 = vmatprep.subr.mxu0 0.0
    %2166 = vmatpush1.msra.mxu0 0.0
    %2167 = vmatprep.subr.mxu0 0.0
    %2168 = vmatpush1.msra.mxu0 0.0
    %2169 = vmatprep.subr.mxu0 0.0
    %2170 = vmatpush1.msra.mxu0 0.0
    %2171 = vmatprep.subr.mxu0 0.0
    %2172 = vmatpush1.msra.mxu0 0.0
    %2173 = vmatprep.subr.mxu0 0.0
    %2174 = vmatpush1.msra.mxu0 0.0
    %2175 = vmatprep.subr.mxu0 0.0
    %2176 = vmatpush1.msra.mxu0 0.0
    %2177 = vmatprep.subr.mxu0 0.0
    %2178 = vmatpush1.msra.mxu0 0.0
    %2179 = vmatprep.subr.mxu0 0.0
    %2180 = vmatpush1.msra.mxu0 0.0
    %2181 = vmatprep.subr.mxu0 0.0
    %2182 = vmatpush1.msra.mxu0 0.0
    %2183 = vmatprep.subr.mxu0 0.0
    %2184 = vmatpush1.msra.mxu0 0.0
    %2185 = vmatprep.subr.mxu0 0.0
    %2186 = vmatpush1.msra.mxu0 0.0
    %2187 = vmatprep.subr.mxu0 0.0
    %2188 = vmatpush1.msra.mxu0 0.0
    %2189 = vmatprep.mubr.f32.mxu0 0.0
    %2190 = vmatmul.mubr.f32.gmra.mrb[0].mxu0 %v2123
    %v2191 = vpop.f32.mrb[0].mxu0
    %v2192 = vadd.f32 %v2121, %v2191
    %v2193 = vpop.f32.mrb[0].mxu0
    %2194 = vdwg.mxu0
    %v2195 = vxor.u32 %v2192, 2147483648
    %v2196 = vmul.f32 %v2195, 1.442695
    %v2197 = vpow.pop %v2196
    %v2198 = vadd.f32 %v2197, 1.0
    %v2199 = vrcp.pop %v2198
    %v2200 = vmul.f32 1.0, %v2199
    %v2201 = vrot.slane %v2200, 4
    %v2202 = vadd.f32 %v2200, %v2201
    %v2203 = vrot.slane %v2202, 2
    %v2204 = vadd.f32 %v2202, %v2203
    %v2205 = vrot.slane %v2204, 1
    %v2206 = vadd.f32 %v2204, %v2205
    %v2207 = vmul.f32 %v2206, %v217
    %v2208 = vmul.f32 %v31, %v2207
    %2209 = vadd.xlane.f32.xlu0 %v2208
    %v2210 = vpop.xlane.xlu0 %2209
    %v2211 = vsub.f32 %v2210, %v32
    %v2212 = vmul.f32 %v2211, %v2211
    %v2213 = vsel %vm224, %v2212, 0.0
    %2214 = vadd.xlane.f32.xlu0 %v2213
    %v2215 = vpop.xlane.xlu0 %2214
    %v2216 = vrot.slane %v2215, 4
    %v2217 = vadd.f32 %v2215, %v2216
    %v2218 = vrot.slane %v2217, 2
    %v2219 = vadd.f32 %v2217, %v2218
    %v2220 = vrot.slane %v2219, 1
    %v2221 = vadd.f32 %v2219, %v2220
    %s2222 = vtos %v2221
    %v2223 = vrcp.pop 8.0
    %s2224 = vtos %v2223
    %s2225 = smul.f32 %s2222, %s2224
    %s2226 = sadd.f32 %s2225, 1e-06
    %v2227 = vstv %s2226
    %v2228 = vrsqrt.pop %v2227
    %s2229 = vtos %v2228
    %s2230 = smul.f32 %s2229, 0.125
    %v2231 = vstv %s2230
    %v2232 = vmul.f32 %v2211, %v2231
    %2234 = vset.pattern.permute.xlu0 0
    %2235 = vperm.xlu0 %2234, %v2232
    %v2236 = vpop.permute.xlu0 %2235
    %v2238 = vmul.f32 %v31, %v2236
    %v2239 = vrot.slane %v2238, 4
    %v2240 = vadd.f32 %v2238, %v2239
    %v2241 = vrot.slane %v2240, 2
    %v2242 = vadd.f32 %v2240, %v2241
    %v2243 = vrot.slane %v2242, 1
    %v2244 = vadd.f32 %v2242, %v2243
    %v2245 = vmul.f32 %v2244, 0.125
    %v2246 = vmul.f32 %v2245, %v2200
    %v2247 = vsub.f32 1.0, %v2200
    %v2248 = vmul.f32 %v2246, %v2247
    %2249 = vxpose.xlu0.b32.start [1/16] %v2117, 128
    %2250 = vxpose.xlu0.b32.cont [2/16] 0.0, 128
    %2251 = vxpose.xlu0.b32.cont [3/16] 0.0, 128
    %2252 = vxpose.xlu0.b32.cont [4/16] 0.0, 128
    %2253 = vxpose.xlu0.b32.cont [5/16] 0.0, 128
    %2254 = vxpose.xlu0.b32.cont [6/16] 0.0, 128
    %2255 = vxpose.xlu0.b32.cont [7/16] 0.0, 128
    %2256 = vxpose.xlu0.b32.cont [8/16] 0.0, 128
    %2257 = vxpose.xlu0.b32.cont [9/16] 0.0, 128
    %2258 = vxpose.xlu0.b32.cont [10/16] 0.0, 128
    %2259 = vxpose.xlu0.b32.cont [11/16] 0.0, 128
    %2260 = vxpose.xlu0.b32.cont [12/16] 0.0, 128
    %2261 = vxpose.xlu0.b32.cont [13/16] 0.0, 128
    %2262 = vxpose.xlu0.b32.cont [14/16] 0.0, 128
    %2263 = vxpose.xlu0.b32.cont [15/16] 0.0, 128
    %2264 = vxpose.xlu0.b32.end [16/16] 0.0, 128
    %v2265 = vpop.trf.xlu0
    %v2266 = vpop.trf.xlu0
    %v2267 = vpop.trf.xlu0
    %v2268 = vpop.trf.xlu0
    %v2269 = vpop.trf.xlu0
    %v2270 = vpop.trf.xlu0
    %v2271 = vpop.trf.xlu0
    %v2272 = vpop.trf.xlu0
    %v2273 = vpop.trf.xlu0
    %v2274 = vpop.trf.xlu0
    %v2275 = vpop.trf.xlu0
    %v2276 = vpop.trf.xlu0
    %v2277 = vpop.trf.xlu0
    %v2278 = vpop.trf.xlu0
    %v2279 = vpop.trf.xlu0
    %v2280 = vpop.trf.xlu0
    %v2282 = vsel %vm293, %v2265, 0
    %v2285 = vsel %vm293, %v2266, 0
    %v2288 = vsel %vm293, %v2267, 0
    %v2291 = vsel %vm293, %v2268, 0
    %v2294 = vsel %vm293, %v2269, 0
    %v2297 = vsel %vm293, %v2270, 0
    %v2300 = vsel %vm293, %v2271, 0
    %v2303 = vsel %vm293, %v2272, 0
    %2305 = vmatprep.subr.mxu0 0.0
    %2306 = vmatpush1.msra.mxu0 %v2248
    %2307 = vmatprep.subr.mxu0 0.0
    %2308 = vmatpush1.msra.mxu0 0.0
    %2309 = vmatprep.subr.mxu0 0.0
    %2310 = vmatpush1.msra.mxu0 0.0
    %2311 = vmatprep.subr.mxu0 0.0
    %2312 = vmatpush1.msra.mxu0 0.0
    %2313 = vmatprep.subr.mxu0 0.0
    %2314 = vmatpush1.msra.mxu0 0.0
    %2315 = vmatprep.subr.mxu0 0.0
    %2316 = vmatpush1.msra.mxu0 0.0
    %2317 = vmatprep.subr.mxu0 0.0
    %2318 = vmatpush1.msra.mxu0 0.0
    %2319 = vmatprep.subr.mxu0 0.0
    %2320 = vmatpush1.msra.mxu0 0.0
    %2321 = vmatprep.subr.mxu0 0.0
    %2322 = vmatpush1.msra.mxu0 0.0
    %2323 = vmatprep.subr.mxu0 0.0
    %2324 = vmatpush1.msra.mxu0 0.0
    %2325 = vmatprep.subr.mxu0 0.0
    %2326 = vmatpush1.msra.mxu0 0.0
    %2327 = vmatprep.subr.mxu0 0.0
    %2328 = vmatpush1.msra.mxu0 0.0
    %2329 = vmatprep.subr.mxu0 0.0
    %2330 = vmatpush1.msra.mxu0 0.0
    %2331 = vmatprep.subr.mxu0 0.0
    %2332 = vmatpush1.msra.mxu0 0.0
    %2333 = vmatprep.subr.mxu0 0.0
    %2334 = vmatpush1.msra.mxu0 0.0
    %2335 = vmatprep.subr.mxu0 0.0
    %2336 = vmatpush1.msra.mxu0 0.0
    %2337 = vmatprep.subr.mxu0 0.0
    %2338 = vmatpush1.msra.mxu0 0.0
    %2339 = vmatprep.subr.mxu0 0.0
    %2340 = vmatpush1.msra.mxu0 0.0
    %2341 = vmatprep.subr.mxu0 0.0
    %2342 = vmatpush1.msra.mxu0 0.0
    %2343 = vmatprep.subr.mxu0 0.0
    %2344 = vmatpush1.msra.mxu0 0.0
    %2345 = vmatprep.subr.mxu0 0.0
    %2346 = vmatpush1.msra.mxu0 0.0
    %2347 = vmatprep.subr.mxu0 0.0
    %2348 = vmatpush1.msra.mxu0 0.0
    %2349 = vmatprep.subr.mxu0 0.0
    %2350 = vmatpush1.msra.mxu0 0.0
    %2351 = vmatprep.subr.mxu0 0.0
    %2352 = vmatpush1.msra.mxu0 0.0
    %2353 = vmatprep.subr.mxu0 0.0
    %2354 = vmatpush1.msra.mxu0 0.0
    %2355 = vmatprep.subr.mxu0 0.0
    %2356 = vmatpush1.msra.mxu0 0.0
    %2357 = vmatprep.subr.mxu0 0.0
    %2358 = vmatpush1.msra.mxu0 0.0
    %2359 = vmatprep.subr.mxu0 0.0
    %2360 = vmatpush1.msra.mxu0 0.0
    %2361 = vmatprep.subr.mxu0 0.0
    %2362 = vmatpush1.msra.mxu0 0.0
    %2363 = vmatprep.subr.mxu0 0.0
    %2364 = vmatpush1.msra.mxu0 0.0
    %2365 = vmatprep.subr.mxu0 0.0
    %2366 = vmatpush1.msra.mxu0 0.0
    %2367 = vmatprep.subr.mxu0 0.0
    %2368 = vmatpush1.msra.mxu0 0.0
    %2369 = vmatprep.mubr.f32.mxu0 0.0
    %2370 = vmatmul.mubr.f32.gmra.mrb[0].mxu0 %v2282
    %v2371 = vpop.f32.mrb[0].mxu0
    %v2372 = vadd.f32 0.0, %v2371
    %v2373 = vpop.f32.mrb[0].mxu0
    %2374 = vmatprep.mubr.f32.mxu0 0.0
    %2375 = vmatmul.mubr.f32.gmra.mrb[0].mxu0 %v2285
    %v2376 = vpop.f32.mrb[0].mxu0
    %v2377 = vadd.f32 0.0, %v2376
    %v2378 = vpop.f32.mrb[0].mxu0
    %2379 = vmatprep.mubr.f32.mxu0 0.0
    %2380 = vmatmul.mubr.f32.gmra.mrb[0].mxu0 %v2288
    %v2381 = vpop.f32.mrb[0].mxu0
    %v2382 = vadd.f32 0.0, %v2381
    %v2383 = vpop.f32.mrb[0].mxu0
    %2384 = vmatprep.mubr.f32.mxu0 0.0
    %2385 = vmatmul.mubr.f32.gmra.mrb[0].mxu0 %v2291
    %v2386 = vpop.f32.mrb[0].mxu0
    %v2387 = vadd.f32 0.0, %v2386
    %v2388 = vpop.f32.mrb[0].mxu0
    %2389 = vmatprep.mubr.f32.mxu0 0.0
    %2390 = vmatmul.mubr.f32.gmra.mrb[0].mxu0 %v2294
    %v2391 = vpop.f32.mrb[0].mxu0
    %v2392 = vadd.f32 0.0, %v2391
    %v2393 = vpop.f32.mrb[0].mxu0
    %2394 = vmatprep.mubr.f32.mxu0 0.0
    %2395 = vmatmul.mubr.f32.gmra.mrb[0].mxu0 %v2297
    %v2396 = vpop.f32.mrb[0].mxu0
    %v2397 = vadd.f32 0.0, %v2396
    %v2398 = vpop.f32.mrb[0].mxu0
    %2399 = vmatprep.mubr.f32.mxu0 0.0
    %2400 = vmatmul.mubr.f32.gmra.mrb[0].mxu0 %v2300
    %v2401 = vpop.f32.mrb[0].mxu0
    %v2402 = vadd.f32 0.0, %v2401
    %v2403 = vpop.f32.mrb[0].mxu0
    %2404 = vmatprep.mubr.f32.mxu0 0.0
    %2405 = vmatmul.mubr.f32.gmra.mrb[0].mxu0 %v2303
    %v2406 = vpop.f32.mrb[0].mxu0
    %v2407 = vadd.f32 0.0, %v2406
    %v2408 = vpop.f32.mrb[0].mxu0
    %2409 = vdwg.mxu0
    %v2410 = vrot.slane %v2248, 4
    %v2411 = vadd.f32 %v2248, %v2410
    %v2412 = vrot.slane %v2411, 2
    %v2413 = vadd.f32 %v2411, %v2412
    %v2414 = vrot.slane %v2413, 1
    %v2415 = vadd.f32 %v2413, %v2414
    %2416 = vmatprep.subr.mxu0 0.0
    %2417 = vmatpush1.xpose.msra.mxu0 %v2011
    %2418 = vmatprep.subr.mxu0 0.0
    %2419 = vmatpush1.xpose.msra.mxu0 %v2012
    %2420 = vmatprep.subr.mxu0 0.0
    %2421 = vmatpush1.xpose.msra.mxu0 %v2013
    %2422 = vmatprep.subr.mxu0 0.0
    %2423 = vmatpush1.xpose.msra.mxu0 %v2014
    %2424 = vmatprep.subr.mxu0 0.0
    %2425 = vmatpush1.xpose.msra.mxu0 %v2015
    %2426 = vmatprep.subr.mxu0 0.0
    %2427 = vmatpush1.xpose.msra.mxu0 %v2016
    %2428 = vmatprep.subr.mxu0 0.0
    %2429 = vmatpush1.xpose.msra.mxu0 %v2017
    %2430 = vmatprep.subr.mxu0 0.0
    %2431 = vmatpush1.xpose.msra.mxu0 %v2018
    %2432 = vmatprep.subr.mxu0 0.0
    %2433 = vmatpush1.xpose.msra.mxu0 0.0
    %2434 = vmatprep.subr.mxu0 0.0
    %2435 = vmatpush1.xpose.msra.mxu0 0.0
    %2436 = vmatprep.subr.mxu0 0.0
    %2437 = vmatpush1.xpose.msra.mxu0 0.0
    %2438 = vmatprep.subr.mxu0 0.0
    %2439 = vmatpush1.xpose.msra.mxu0 0.0
    %2440 = vmatprep.subr.mxu0 0.0
    %2441 = vmatpush1.xpose.msra.mxu0 0.0
    %2442 = vmatprep.subr.mxu0 0.0
    %2443 = vmatpush1.xpose.msra.mxu0 0.0
    %2444 = vmatprep.subr.mxu0 0.0
    %2445 = vmatpush1.xpose.msra.mxu0 0.0
    %2446 = vmatprep.subr.mxu0 0.0
    %2447 = vmatpush1.xpose.msra.mxu0 0.0
    %2448 = vmatprep.subr.mxu0 0.0
    %2449 = vmatpush1.xpose.msra.mxu0 0.0
    %2450 = vmatprep.subr.mxu0 0.0
    %2451 = vmatpush1.xpose.msra.mxu0 0.0
    %2452 = vmatprep.subr.mxu0 0.0
    %2453 = vmatpush1.xpose.msra.mxu0 0.0
    %2454 = vmatprep.subr.mxu0 0.0
    %2455 = vmatpush1.xpose.msra.mxu0 0.0
    %2456 = vmatprep.subr.mxu0 0.0
    %2457 = vmatpush1.xpose.msra.mxu0 0.0
    %2458 = vmatprep.subr.mxu0 0.0
    %2459 = vmatpush1.xpose.msra.mxu0 0.0
    %2460 = vmatprep.subr.mxu0 0.0
    %2461 = vmatpush1.xpose.msra.mxu0 0.0
    %2462 = vmatprep.subr.mxu0 0.0
    %2463 = vmatpush1.xpose.msra.mxu0 0.0
    %2464 = vmatprep.subr.mxu0 0.0
    %2465 = vmatpush1.xpose.msra.mxu0 0.0
    %2466 = vmatprep.subr.mxu0 0.0
    %2467 = vmatpush1.xpose.msra.mxu0 0.0
    %2468 = vmatprep.subr.mxu0 0.0
    %2469 = vmatpush1.xpose.msra.mxu0 0.0
    %2470 = vmatprep.subr.mxu0 0.0
    %2471 = vmatpush1.xpose.msra.mxu0 0.0
    %2472 = vmatprep.subr.mxu0 0.0
    %2473 = vmatpush1.xpose.msra.mxu0 0.0
    %2474 = vmatprep.subr.mxu0 0.0
    %2475 = vmatpush1.xpose.msra.mxu0 0.0
    %2476 = vmatprep.subr.mxu0 0.0
    %2477 = vmatpush1.xpose.msra.mxu0 0.0
    %2478 = vmatprep.subr.mxu0 0.0
    %2479 = vmatpush1.xpose.msra.mxu0 0.0
    %2480 = vmatprep.mubr.f32.mxu0 0.0
    %2481 = vmatmul.mubr.f32.gmra.mrb[0].mxu0 %v2248
    %v2482 = vpop.f32.mrb[0].mxu0
    %v2483 = vadd.f32 0.0, %v2482
    %v2484 = vpop.f32.mrb[0].mxu0
    %2485 = vdwg.mxu0
    %vm2486 = vcmp.gt.f32.partialorder %v2114, 0.0
    %v2487 = vsel %vm2486, 1, 0
    %v2488 = vcvt.s32.f32 %v2487
    %v2489 = vmul.f32 %v2483, %v2488
    %2490 = vxpose.xlu0.b32.start [1/16] %v2489, 128
    %2491 = vxpose.xlu0.b32.cont [2/16] 0.0, 128
    %2492 = vxpose.xlu0.b32.cont [3/16] 0.0, 128
    %2493 = vxpose.xlu0.b32.cont [4/16] 0.0, 128
    %2494 = vxpose.xlu0.b32.cont [5/16] 0.0, 128
    %2495 = vxpose.xlu0.b32.cont [6/16] 0.0, 128
    %2496 = vxpose.xlu0.b32.cont [7/16] 0.0, 128
    %2497 = vxpose.xlu0.b32.cont [8/16] 0.0, 128
    %2498 = vxpose.xlu0.b32.cont [9/16] 0.0, 128
    %2499 = vxpose.xlu0.b32.cont [10/16] 0.0, 128
    %2500 = vxpose.xlu0.b32.cont [11/16] 0.0, 128
    %2501 = vxpose.xlu0.b32.cont [12/16] 0.0, 128
    %2502 = vxpose.xlu0.b32.cont [13/16] 0.0, 128
    %2503 = vxpose.xlu0.b32.cont [14/16] 0.0, 128
    %2504 = vxpose.xlu0.b32.cont [15/16] 0.0, 128
    %2505 = vxpose.xlu0.b32.end [16/16] 0.0, 128
    %v2506 = vpop.trf.xlu0
    %v2507 = vpop.trf.xlu0
    %v2508 = vpop.trf.xlu0
    %v2509 = vpop.trf.xlu0
    %v2510 = vpop.trf.xlu0
    %v2511 = vpop.trf.xlu0
    %v2512 = vpop.trf.xlu0
    %v2513 = vpop.trf.xlu0
    %v2514 = vpop.trf.xlu0
    %v2515 = vpop.trf.xlu0
    %v2516 = vpop.trf.xlu0
    %v2517 = vpop.trf.xlu0
    %v2518 = vpop.trf.xlu0
    %v2519 = vpop.trf.xlu0
    %v2520 = vpop.trf.xlu0
    %v2521 = vpop.trf.xlu0
    %v2523 = vsel %vm293, %v2506, 0
    %v2526 = vsel %vm293, %v2507, 0
    %v2529 = vsel %vm293, %v2508, 0
    %v2532 = vsel %vm293, %v2509, 0
    %v2535 = vsel %vm293, %v2510, 0
    %v2538 = vsel %vm293, %v2511, 0
    %v2541 = vsel %vm293, %v2512, 0
    %v2544 = vsel %vm293, %v2513, 0
    %2546 = vmatprep.subr.mxu0 0.0
    %2547 = vmatpush1.msra.mxu0 %v31
    %2548 = vmatprep.subr.mxu0 0.0
    %2549 = vmatpush1.msra.mxu0 0.0
    %2550 = vmatprep.subr.mxu0 0.0
    %2551 = vmatpush1.msra.mxu0 0.0
    %2552 = vmatprep.subr.mxu0 0.0
    %2553 = vmatpush1.msra.mxu0 0.0
    %2554 = vmatprep.subr.mxu0 0.0
    %2555 = vmatpush1.msra.mxu0 0.0
    %2556 = vmatprep.subr.mxu0 0.0
    %2557 = vmatpush1.msra.mxu0 0.0
    %2558 = vmatprep.subr.mxu0 0.0
    %2559 = vmatpush1.msra.mxu0 0.0
    %2560 = vmatprep.subr.mxu0 0.0
    %2561 = vmatpush1.msra.mxu0 0.0
    %2562 = vmatprep.subr.mxu0 0.0
    %2563 = vmatpush1.msra.mxu0 0.0
    %2564 = vmatprep.subr.mxu0 0.0
    %2565 = vmatpush1.msra.mxu0 0.0
    %2566 = vmatprep.subr.mxu0 0.0
    %2567 = vmatpush1.msra.mxu0 0.0
    %2568 = vmatprep.subr.mxu0 0.0
    %2569 = vmatpush1.msra.mxu0 0.0
    %2570 = vmatprep.subr.mxu0 0.0
    %2571 = vmatpush1.msra.mxu0 0.0
    %2572 = vmatprep.subr.mxu0 0.0
    %2573 = vmatpush1.msra.mxu0 0.0
    %2574 = vmatprep.subr.mxu0 0.0
    %2575 = vmatpush1.msra.mxu0 0.0
    %2576 = vmatprep.subr.mxu0 0.0
    %2577 = vmatpush1.msra.mxu0 0.0
    %2578 = vmatprep.subr.mxu0 0.0
    %2579 = vmatpush1.msra.mxu0 0.0
    %2580 = vmatprep.subr.mxu0 0.0
    %2581 = vmatpush1.msra.mxu0 0.0
    %2582 = vmatprep.subr.mxu0 0.0
    %2583 = vmatpush1.msra.mxu0 0.0
    %2584 = vmatprep.subr.mxu0 0.0
    %2585 = vmatpush1.msra.mxu0 0.0
    %2586 = vmatprep.subr.mxu0 0.0
    %2587 = vmatpush1.msra.mxu0 0.0
    %2588 = vmatprep.subr.mxu0 0.0
    %2589 = vmatpush1.msra.mxu0 0.0
    %2590 = vmatprep.subr.mxu0 0.0
    %2591 = vmatpush1.msra.mxu0 0.0
    %2592 = vmatprep.subr.mxu0 0.0
    %2593 = vmatpush1.msra.mxu0 0.0
    %2594 = vmatprep.subr.mxu0 0.0
    %2595 = vmatpush1.msra.mxu0 0.0
    %2596 = vmatprep.subr.mxu0 0.0
    %2597 = vmatpush1.msra.mxu0 0.0
    %2598 = vmatprep.subr.mxu0 0.0
    %2599 = vmatpush1.msra.mxu0 0.0
    %2600 = vmatprep.subr.mxu0 0.0
    %2601 = vmatpush1.msra.mxu0 0.0
    %2602 = vmatprep.subr.mxu0 0.0
    %2603 = vmatpush1.msra.mxu0 0.0
    %2604 = vmatprep.subr.mxu0 0.0
    %2605 = vmatpush1.msra.mxu0 0.0
    %2606 = vmatprep.subr.mxu0 0.0
    %2607 = vmatpush1.msra.mxu0 0.0
    %2608 = vmatprep.subr.mxu0 0.0
    %2609 = vmatpush1.msra.mxu0 0.0
    %2610 = vmatprep.mubr.f32.mxu0 0.0
    %2611 = vmatmul.mubr.f32.gmra.mrb[0].mxu0 %v2523
    %v2612 = vpop.f32.mrb[0].mxu0
    %v2613 = vadd.f32 0.0, %v2612
    %v2614 = vpop.f32.mrb[0].mxu0
    %2615 = vmatprep.mubr.f32.mxu0 0.0
    %2616 = vmatmul.mubr.f32.gmra.mrb[0].mxu0 %v2526
    %v2617 = vpop.f32.mrb[0].mxu0
    %v2618 = vadd.f32 0.0, %v2617
    %v2619 = vpop.f32.mrb[0].mxu0
    %2620 = vmatprep.mubr.f32.mxu0 0.0
    %2621 = vmatmul.mubr.f32.gmra.mrb[0].mxu0 %v2529
    %v2622 = vpop.f32.mrb[0].mxu0
    %v2623 = vadd.f32 0.0, %v2622
    %v2624 = vpop.f32.mrb[0].mxu0
    %2625 = vmatprep.mubr.f32.mxu0 0.0
    %2626 = vmatmul.mubr.f32.gmra.mrb[0].mxu0 %v2532
    %v2627 = vpop.f32.mrb[0].mxu0
    %v2628 = vadd.f32 0.0, %v2627
    %v2629 = vpop.f32.mrb[0].mxu0
    %2630 = vmatprep.mubr.f32.mxu0 0.0
    %2631 = vmatmul.mubr.f32.gmra.mrb[0].mxu0 %v2535
    %v2632 = vpop.f32.mrb[0].mxu0
    %v2633 = vadd.f32 0.0, %v2632
    %v2634 = vpop.f32.mrb[0].mxu0
    %2635 = vmatprep.mubr.f32.mxu0 0.0
    %2636 = vmatmul.mubr.f32.gmra.mrb[0].mxu0 %v2538
    %v2637 = vpop.f32.mrb[0].mxu0
    %v2638 = vadd.f32 0.0, %v2637
    %v2639 = vpop.f32.mrb[0].mxu0
    %2640 = vmatprep.mubr.f32.mxu0 0.0
    %2641 = vmatmul.mubr.f32.gmra.mrb[0].mxu0 %v2541
    %v2642 = vpop.f32.mrb[0].mxu0
    %v2643 = vadd.f32 0.0, %v2642
    %v2644 = vpop.f32.mrb[0].mxu0
    %2645 = vmatprep.mubr.f32.mxu0 0.0
    %2646 = vmatmul.mubr.f32.gmra.mrb[0].mxu0 %v2544
    %v2647 = vpop.f32.mrb[0].mxu0
    %v2648 = vadd.f32 0.0, %v2647
    %v2649 = vpop.f32.mrb[0].mxu0
    %2650 = vdwg.mxu0
    %v2651 = vsel %vm131, %v2489, 0.0
    %v2652 = vrot.slane %v2651, 4
    %v2653 = vadd.f32 %v2651, %v2652
    %v2654 = vrot.slane %v2653, 2
    %v2655 = vadd.f32 %v2653, %v2654
    %v2656 = vrot.slane %v2655, 1
    %v2657 = vadd.f32 %v2655, %v2656
    %v2658 = vld [vmem:[#allocation2] sm:$0xff]
    %v2659 = vld [vmem:[#allocation2 + $0x8] sm:$0xff]
    %v2660 = vld [vmem:[#allocation2 + $0x10] sm:$0xff]
    %v2661 = vld [vmem:[#allocation2 + $0x18] sm:$0xff]
    %v2662 = vld [vmem:[#allocation2 + $0x20] sm:$0xff]
    %v2663 = vld [vmem:[#allocation2 + $0x28] sm:$0xff]
    %v2664 = vld [vmem:[#allocation2 + $0x30] sm:$0xff]
    %v2665 = vld [vmem:[#allocation2 + $0x38] sm:$0xff]
    %v2666 = vmul.f32 %v2658, 0.9
    %v2667 = vmul.f32 %v2659, 0.9
    %v2668 = vmul.f32 %v2660, 0.9
    %v2669 = vmul.f32 %v2661, 0.9
    %v2670 = vmul.f32 %v2662, 0.9
    %v2671 = vmul.f32 %v2663, 0.9
    %v2672 = vmul.f32 %v2664, 0.9
    %v2673 = vmul.f32 %v2665, 0.9
    %v2674 = vmul.f32 %v2613, 0.1
    %v2675 = vmul.f32 %v2618, 0.1
    %v2676 = vmul.f32 %v2623, 0.1
    %v2677 = vmul.f32 %v2628, 0.1
    %v2678 = vmul.f32 %v2633, 0.1
    %v2679 = vmul.f32 %v2638, 0.1
    %v2680 = vmul.f32 %v2643, 0.1
    %v2681 = vmul.f32 %v2648, 0.1
    %v2682 = vadd.f32 %v2666, %v2674
    %v2683 = vadd.f32 %v2667, %v2675
    %v2684 = vadd.f32 %v2668, %v2676
    %v2685 = vadd.f32 %v2669, %v2677
    %v2686 = vadd.f32 %v2670, %v2678
    %v2687 = vadd.f32 %v2671, %v2679
    %v2688 = vadd.f32 %v2672, %v2680
    %v2689 = vadd.f32 %v2673, %v2681
    %v2690 = vld [vmem:[#allocation3] sm:$0xff]
    %v2691 = vld [vmem:[#allocation3 + $0x8] sm:$0xff]
    %v2692 = vld [vmem:[#allocation3 + $0x10] sm:$0xff]
    %v2693 = vld [vmem:[#allocation3 + $0x18] sm:$0xff]
    %v2694 = vld [vmem:[#allocation3 + $0x20] sm:$0xff]
    %v2695 = vld [vmem:[#allocation3 + $0x28] sm:$0xff]
    %v2696 = vld [vmem:[#allocation3 + $0x30] sm:$0xff]
    %v2697 = vld [vmem:[#allocation3 + $0x38] sm:$0xff]
    %v2698 = vmul.f32 %v2690, 0.999
    %v2699 = vmul.f32 %v2691, 0.999
    %v2700 = vmul.f32 %v2692, 0.999
    %v2701 = vmul.f32 %v2693, 0.999
    %v2702 = vmul.f32 %v2694, 0.999
    %v2703 = vmul.f32 %v2695, 0.999
    %v2704 = vmul.f32 %v2696, 0.999
    %v2705 = vmul.f32 %v2697, 0.999
    %v2706 = vmul.f32 %v2613, %v2613
    %v2707 = vmul.f32 %v2618, %v2618
    %v2708 = vmul.f32 %v2623, %v2623
    %v2709 = vmul.f32 %v2628, %v2628
    %v2710 = vmul.f32 %v2633, %v2633
    %v2711 = vmul.f32 %v2638, %v2638
    %v2712 = vmul.f32 %v2643, %v2643
    %v2713 = vmul.f32 %v2648, %v2648
    %v2714 = vmul.f32 %v2706, 0.001
    %v2715 = vmul.f32 %v2707, 0.001
    %v2716 = vmul.f32 %v2708, 0.001
    %v2717 = vmul.f32 %v2709, 0.001
    %v2718 = vmul.f32 %v2710, 0.001
    %v2719 = vmul.f32 %v2711, 0.001
    %v2720 = vmul.f32 %v2712, 0.001
    %v2721 = vmul.f32 %v2713, 0.001
    %v2722 = vadd.f32 %v2698, %v2714
    %v2723 = vadd.f32 %v2699, %v2715
    %v2724 = vadd.f32 %v2700, %v2716
    %v2725 = vadd.f32 %v2701, %v2717
    %v2726 = vadd.f32 %v2702, %v2718
    %v2727 = vadd.f32 %v2703, %v2719
    %v2728 = vadd.f32 %v2704, %v2720
    %v2729 = vadd.f32 %v2705, %v2721
    %v2730 = vrsqrt.pop %v2722
    %v2731 = vmul.f32 %v2722, %v2730
    %vm2732 = vcmp.eq.f32.partialorder %v2722, inf
    %v2733 = vsel %vm2732, %v2722, %v2731
    %vm2734 = vcmp.eq.f32.partialorder %v2722, 0.0
    %v2735 = vand.u32 %v2722, 2147483648
    %v2736 = vsel %vm2734, %v2735, %v2733
    %v2737 = vrsqrt.pop %v2723
    %v2738 = vmul.f32 %v2723, %v2737
    %vm2739 = vcmp.eq.f32.partialorder %v2723, inf
    %v2740 = vsel %vm2739, %v2723, %v2738
    %vm2741 = vcmp.eq.f32.partialorder %v2723, 0.0
    %v2742 = vand.u32 %v2723, 2147483648
    %v2743 = vsel %vm2741, %v2742, %v2740
    %v2744 = vrsqrt.pop %v2724
    %v2745 = vmul.f32 %v2724, %v2744
    %vm2746 = vcmp.eq.f32.partialorder %v2724, inf
    %v2747 = vsel %vm2746, %v2724, %v2745
    %vm2748 = vcmp.eq.f32.partialorder %v2724, 0.0
    %v2749 = vand.u32 %v2724, 2147483648
    %v2750 = vsel %vm2748, %v2749, %v2747
    %v2751 = vrsqrt.pop %v2725
    %v2752 = vmul.f32 %v2725, %v2751
    %vm2753 = vcmp.eq.f32.partialorder %v2725, inf
    %v2754 = vsel %vm2753, %v2725, %v2752
    %vm2755 = vcmp.eq.f32.partialorder %v2725, 0.0
    %v2756 = vand.u32 %v2725, 2147483648
    %v2757 = vsel %vm2755, %v2756, %v2754
    %v2758 = vrsqrt.pop %v2726
    %v2759 = vmul.f32 %v2726, %v2758
    %vm2760 = vcmp.eq.f32.partialorder %v2726, inf
    %v2761 = vsel %vm2760, %v2726, %v2759
    %vm2762 = vcmp.eq.f32.partialorder %v2726, 0.0
    %v2763 = vand.u32 %v2726, 2147483648
    %v2764 = vsel %vm2762, %v2763, %v2761
    %v2765 = vrsqrt.pop %v2727
    %v2766 = vmul.f32 %v2727, %v2765
    %vm2767 = vcmp.eq.f32.partialorder %v2727, inf
    %v2768 = vsel %vm2767, %v2727, %v2766
    %vm2769 = vcmp.eq.f32.partialorder %v2727, 0.0
    %v2770 = vand.u32 %v2727, 2147483648
    %v2771 = vsel %vm2769, %v2770, %v2768
    %v2772 = vrsqrt.pop %v2728
    %v2773 = vmul.f32 %v2728, %v2772
    %vm2774 = vcmp.eq.f32.partialorder %v2728, inf
    %v2775 = vsel %vm2774, %v2728, %v2773
    %vm2776 = vcmp.eq.f32.partialorder %v2728, 0.0
    %v2777 = vand.u32 %v2728, 2147483648
    %v2778 = vsel %vm2776, %v2777, %v2775
    %v2779 = vrsqrt.pop %v2729
    %v2780 = vmul.f32 %v2729, %v2779
    %vm2781 = vcmp.eq.f32.partialorder %v2729, inf
    %v2782 = vsel %vm2781, %v2729, %v2780
    %vm2783 = vcmp.eq.f32.partialorder %v2729, 0.0
    %v2784 = vand.u32 %v2729, 2147483648
    %v2785 = vsel %vm2783, %v2784, %v2782
    %v2786 = vmul.f32 %v2736, 18.266552
    %v2787 = vmul.f32 %v2743, 18.266552
    %v2788 = vmul.f32 %v2750, 18.266552
    %v2789 = vmul.f32 %v2757, 18.266552
    %v2790 = vmul.f32 %v2764, 18.266552
    %v2791 = vmul.f32 %v2771, 18.266552
    %v2792 = vmul.f32 %v2778, 18.266552
    %v2793 = vmul.f32 %v2785, 18.266552
    %v2794 = vadd.f32 %v2786, 1e-08
    %v2795 = vadd.f32 %v2787, 1e-08
    %v2796 = vadd.f32 %v2788, 1e-08
    %v2797 = vadd.f32 %v2789, 1e-08
    %v2798 = vadd.f32 %v2790, 1e-08
    %v2799 = vadd.f32 %v2791, 1e-08
    %v2800 = vadd.f32 %v2792, 1e-08
    %v2801 = vadd.f32 %v2793, 1e-08
    %v2802 = vrcp.pop %v2794
    %v2803 = vmul.f32 %v2682, %v2802
    %v2804 = vrcp.pop %v2795
    %v2805 = vmul.f32 %v2683, %v2804
    %v2806 = vrcp.pop %v2796
    %v2807 = vmul.f32 %v2684, %v2806
    %v2808 = vrcp.pop %v2797
    %v2809 = vmul.f32 %v2685, %v2808
    %v2810 = vrcp.pop %v2798
    %v2811 = vmul.f32 %v2686, %v2810
    %v2812 = vrcp.pop %v2799
    %v2813 = vmul.f32 %v2687, %v2812
    %v2814 = vrcp.pop %v2800
    %v2815 = vmul.f32 %v2688, %v2814
    %v2816 = vrcp.pop %v2801
    %v2817 = vmul.f32 %v2689, %v2816
    %v2818 = vmul.f32 %v2803, 0.00036900368
    %v2819 = vmul.f32 %v2805, 0.00036900368
    %v2820 = vmul.f32 %v2807, 0.00036900368
    %v2821 = vmul.f32 %v2809, 0.00036900368
    %v2822 = vmul.f32 %v2811, 0.00036900368
    %v2823 = vmul.f32 %v2813, 0.00036900368
    %v2824 = vmul.f32 %v2815, 0.00036900368
    %v2825 = vmul.f32 %v2817, 0.00036900368
    %v2826 = vsub.f32 %v1795, %v2818
    %v2827 = vsub.f32 %v1796, %v2819
    %v2828 = vsub.f32 %v1797, %v2820
    %v2829 = vsub.f32 %v1798, %v2821
    %v2830 = vsub.f32 %v1799, %v2822
    %v2831 = vsub.f32 %v1800, %v2823
    %v2832 = vsub.f32 %v1801, %v2824
    %v2833 = vsub.f32 %v1802, %v2825
    %v2834 = vld [vmem:[#allocation4] sm:$0x1]
    %v2835 = vmul.f32 %v2834, 0.9
    %v2836 = vmul.f32 %v2657, 0.1
    %v2837 = vadd.f32 %v2835, %v2836
    %v2838 = vld [vmem:[#allocation5] sm:$0x1]
    %v2839 = vmul.f32 %v2838, 0.999
    %v2840 = vmul.f32 %v2657, %v2657
    %v2841 = vmul.f32 %v2840, 0.001
    %v2842 = vadd.f32 %v2839, %v2841
    %v2843 = vrsqrt.pop %v2842
    %v2844 = vmul.f32 %v2842, %v2843
    %vm2845 = vcmp.eq.f32.partialorder %v2842, inf
    %v2846 = vsel %vm2845, %v2842, %v2844
    %vm2847 = vcmp.eq.f32.partialorder %v2842, 0.0
    %v2848 = vand.u32 %v2842, 2147483648
    %v2849 = vsel %vm2847, %v2848, %v2846
    %v2850 = vmul.f32 %v2849, 18.266552
    %v2851 = vadd.f32 %v2850, 1e-08
    %v2852 = vrcp.pop %v2851
    %v2853 = vmul.f32 %v2837, %v2852
    %v2854 = vmul.f32 %v2853, 0.00036900368
    %v2855 = vsub.f32 %v1826, %v2854
    %v2856 = vld [vmem:[#allocation6] sm:$0xff]
    %v2857 = vld [vmem:[#allocation6 + $0x8] sm:$0xff]
    %v2858 = vld [vmem:[#allocation6 + $0x10] sm:$0xff]
    %v2859 = vld [vmem:[#allocation6 + $0x18] sm:$0xff]
    %v2860 = vld [vmem:[#allocation6 + $0x20] sm:$0xff]
    %v2861 = vld [vmem:[#allocation6 + $0x28] sm:$0xff]
    %v2862 = vld [vmem:[#allocation6 + $0x30] sm:$0xff]
    %v2863 = vld [vmem:[#allocation6 + $0x38] sm:$0xff]
    %v2864 = vmul.f32 %v2856, 0.9
    %v2865 = vmul.f32 %v2857, 0.9
    %v2866 = vmul.f32 %v2858, 0.9
    %v2867 = vmul.f32 %v2859, 0.9
    %v2868 = vmul.f32 %v2860, 0.9
    %v2869 = vmul.f32 %v2861, 0.9
    %v2870 = vmul.f32 %v2862, 0.9
    %v2871 = vmul.f32 %v2863, 0.9
    %v2872 = vmul.f32 %v2372, 0.1
    %v2873 = vmul.f32 %v2377, 0.1
    %v2874 = vmul.f32 %v2382, 0.1
    %v2875 = vmul.f32 %v2387, 0.1
    %v2876 = vmul.f32 %v2392, 0.1
    %v2877 = vmul.f32 %v2397, 0.1
    %v2878 = vmul.f32 %v2402, 0.1
    %v2879 = vmul.f32 %v2407, 0.1
    %v2880 = vadd.f32 %v2864, %v2872
    %v2881 = vadd.f32 %v2865, %v2873
    %v2882 = vadd.f32 %v2866, %v2874
    %v2883 = vadd.f32 %v2867, %v2875
    %v2884 = vadd.f32 %v2868, %v2876
    %v2885 = vadd.f32 %v2869, %v2877
    %v2886 = vadd.f32 %v2870, %v2878
    %v2887 = vadd.f32 %v2871, %v2879
    %v2888 = vld [vmem:[#allocation7] sm:$0xff]
    %v2889 = vld [vmem:[#allocation7 + $0x8] sm:$0xff]
    %v2890 = vld [vmem:[#allocation7 + $0x10] sm:$0xff]
    %v2891 = vld [vmem:[#allocation7 + $0x18] sm:$0xff]
    %v2892 = vld [vmem:[#allocation7 + $0x20] sm:$0xff]
    %v2893 = vld [vmem:[#allocation7 + $0x28] sm:$0xff]
    %v2894 = vld [vmem:[#allocation7 + $0x30] sm:$0xff]
    %v2895 = vld [vmem:[#allocation7 + $0x38] sm:$0xff]
    %v2896 = vmul.f32 %v2888, 0.999
    %v2897 = vmul.f32 %v2889, 0.999
    %v2898 = vmul.f32 %v2890, 0.999
    %v2899 = vmul.f32 %v2891, 0.999
    %v2900 = vmul.f32 %v2892, 0.999
    %v2901 = vmul.f32 %v2893, 0.999
    %v2902 = vmul.f32 %v2894, 0.999
    %v2903 = vmul.f32 %v2895, 0.999
    %v2904 = vmul.f32 %v2372, %v2372
    %v2905 = vmul.f32 %v2377, %v2377
    %v2906 = vmul.f32 %v2382, %v2382
    %v2907 = vmul.f32 %v2387, %v2387
    %v2908 = vmul.f32 %v2392, %v2392
    %v2909 = vmul.f32 %v2397, %v2397
    %v2910 = vmul.f32 %v2402, %v2402
    %v2911 = vmul.f32 %v2407, %v2407
    %v2912 = vmul.f32 %v2904, 0.001
    %v2913 = vmul.f32 %v2905, 0.001
    %v2914 = vmul.f32 %v2906, 0.001
    %v2915 = vmul.f32 %v2907, 0.001
    %v2916 = vmul.f32 %v2908, 0.001
    %v2917 = vmul.f32 %v2909, 0.001
    %v2918 = vmul.f32 %v2910, 0.001
    %v2919 = vmul.f32 %v2911, 0.001
    %v2920 = vadd.f32 %v2896, %v2912
    %v2921 = vadd.f32 %v2897, %v2913
    %v2922 = vadd.f32 %v2898, %v2914
    %v2923 = vadd.f32 %v2899, %v2915
    %v2924 = vadd.f32 %v2900, %v2916
    %v2925 = vadd.f32 %v2901, %v2917
    %v2926 = vadd.f32 %v2902, %v2918
    %v2927 = vadd.f32 %v2903, %v2919
    %v2928 = vrsqrt.pop %v2920
    %v2929 = vmul.f32 %v2920, %v2928
    %vm2930 = vcmp.eq.f32.partialorder %v2920, inf
    %v2931 = vsel %vm2930, %v2920, %v2929
    %vm2932 = vcmp.eq.f32.partialorder %v2920, 0.0
    %v2933 = vand.u32 %v2920, 2147483648
    %v2934 = vsel %vm2932, %v2933, %v2931
    %v2935 = vrsqrt.pop %v2921
    %v2936 = vmul.f32 %v2921, %v2935
    %vm2937 = vcmp.eq.f32.partialorder %v2921, inf
    %v2938 = vsel %vm2937, %v2921, %v2936
    %vm2939 = vcmp.eq.f32.partialorder %v2921, 0.0
    %v2940 = vand.u32 %v2921, 2147483648
    %v2941 = vsel %vm2939, %v2940, %v2938
    %v2942 = vrsqrt.pop %v2922
    %v2943 = vmul.f32 %v2922, %v2942
    %vm2944 = vcmp.eq.f32.partialorder %v2922, inf
    %v2945 = vsel %vm2944, %v2922, %v2943
    %vm2946 = vcmp.eq.f32.partialorder %v2922, 0.0
    %v2947 = vand.u32 %v2922, 2147483648
    %v2948 = vsel %vm2946, %v2947, %v2945
    %v2949 = vrsqrt.pop %v2923
    %v2950 = vmul.f32 %v2923, %v2949
    %vm2951 = vcmp.eq.f32.partialorder %v2923, inf
    %v2952 = vsel %vm2951, %v2923, %v2950
    %vm2953 = vcmp.eq.f32.partialorder %v2923, 0.0
    %v2954 = vand.u32 %v2923, 2147483648
    %v2955 = vsel %vm2953, %v2954, %v2952
    %v2956 = vrsqrt.pop %v2924
    %v2957 = vmul.f32 %v2924, %v2956
    %vm2958 = vcmp.eq.f32.partialorder %v2924, inf
    %v2959 = vsel %vm2958, %v2924, %v2957
    %vm2960 = vcmp.eq.f32.partialorder %v2924, 0.0
    %v2961 = vand.u32 %v2924, 2147483648
    %v2962 = vsel %vm2960, %v2961, %v2959
    %v2963 = vrsqrt.pop %v2925
    %v2964 = vmul.f32 %v2925, %v2963
    %vm2965 = vcmp.eq.f32.partialorder %v2925, inf
    %v2966 = vsel %vm2965, %v2925, %v2964
    %vm2967 = vcmp.eq.f32.partialorder %v2925, 0.0
    %v2968 = vand.u32 %v2925, 2147483648
    %v2969 = vsel %vm2967, %v2968, %v2966
    %v2970 = vrsqrt.pop %v2926
    %v2971 = vmul.f32 %v2926, %v2970
    %vm2972 = vcmp.eq.f32.partialorder %v2926, inf
    %v2973 = vsel %vm2972, %v2926, %v2971
    %vm2974 = vcmp.eq.f32.partialorder %v2926, 0.0
    %v2975 = vand.u32 %v2926, 2147483648
    %v2976 = vsel %vm2974, %v2975, %v2973
    %v2977 = vrsqrt.pop %v2927
    %v2978 = vmul.f32 %v2927, %v2977
    %vm2979 = vcmp.eq.f32.partialorder %v2927, inf
    %v2980 = vsel %vm2979, %v2927, %v2978
    %vm2981 = vcmp.eq.f32.partialorder %v2927, 0.0
    %v2982 = vand.u32 %v2927, 2147483648
    %v2983 = vsel %vm2981, %v2982, %v2980
    %v2984 = vmul.f32 %v2934, 18.266552
    %v2985 = vmul.f32 %v2941, 18.266552
    %v2986 = vmul.f32 %v2948, 18.266552
    %v2987 = vmul.f32 %v2955, 18.266552
    %v2988 = vmul.f32 %v2962, 18.266552
    %v2989 = vmul.f32 %v2969, 18.266552
    %v2990 = vmul.f32 %v2976, 18.266552
    %v2991 = vmul.f32 %v2983, 18.266552
    %v2992 = vadd.f32 %v2984, 1e-08
    %v2993 = vadd.f32 %v2985, 1e-08
    %v2994 = vadd.f32 %v2986, 1e-08
    %v2995 = vadd.f32 %v2987, 1e-08
    %v2996 = vadd.f32 %v2988, 1e-08
    %v2997 = vadd.f32 %v2989, 1e-08
    %v2998 = vadd.f32 %v2990, 1e-08
    %v2999 = vadd.f32 %v2991, 1e-08
    %v3000 = vrcp.pop %v2992
    %v3001 = vmul.f32 %v2880, %v3000
    %v3002 = vrcp.pop %v2993
    %v3003 = vmul.f32 %v2881, %v3002
    %v3004 = vrcp.pop %v2994
    %v3005 = vmul.f32 %v2882, %v3004
    %v3006 = vrcp.pop %v2995
    %v3007 = vmul.f32 %v2883, %v3006
    %v3008 = vrcp.pop %v2996
    %v3009 = vmul.f32 %v2884, %v3008
    %v3010 = vrcp.pop %v2997
    %v3011 = vmul.f32 %v2885, %v3010
    %v3012 = vrcp.pop %v2998
    %v3013 = vmul.f32 %v2886, %v3012
    %v3014 = vrcp.pop %v2999
    %v3015 = vmul.f32 %v2887, %v3014
    %v3016 = vmul.f32 %v3001, 0.00036900368
    %v3017 = vmul.f32 %v3003, 0.00036900368
    %v3018 = vmul.f32 %v3005, 0.00036900368
    %v3019 = vmul.f32 %v3007, 0.00036900368
    %v3020 = vmul.f32 %v3009, 0.00036900368
    %v3021 = vmul.f32 %v3011, 0.00036900368
    %v3022 = vmul.f32 %v3013, 0.00036900368
    %v3023 = vmul.f32 %v3015, 0.00036900368
    %v3024 = vsub.f32 %v2011, %v3016
    %v3025 = vsub.f32 %v2012, %v3017
    %v3026 = vsub.f32 %v2013, %v3018
    %v3027 = vsub.f32 %v2014, %v3019
    %v3028 = vsub.f32 %v2015, %v3020
    %v3029 = vsub.f32 %v2016, %v3021
    %v3030 = vsub.f32 %v2017, %v3022
    %v3031 = vsub.f32 %v2018, %v3023
    %v3032 = vld [vmem:[#allocation8] sm:$0x1]
    %v3033 = vmul.f32 %v3032, 0.9
    %v3034 = vmul.f32 %v2415, 0.1
    %v3035 = vadd.f32 %v3033, %v3034
    %v3036 = vld [vmem:[#allocation9] sm:$0x1]
    %v3037 = vmul.f32 %v3036, 0.999
    %v3038 = vmul.f32 %v2415, %v2415
    %v3039 = vmul.f32 %v3038, 0.001
    %v3040 = vadd.f32 %v3037, %v3039
    %v3041 = vrsqrt.pop %v3040
    %v3042 = vmul.f32 %v3040, %v3041
    %vm3043 = vcmp.eq.f32.partialorder %v3040, inf
    %v3044 = vsel %vm3043, %v3040, %v3042
    %vm3045 = vcmp.eq.f32.partialorder %v3040, 0.0
    %v3046 = vand.u32 %v3040, 2147483648
    %v3047 = vsel %vm3045, %v3046, %v3044
    %v3048 = vmul.f32 %v3047, 18.266552
    %v3049 = vadd.f32 %v3048, 1e-08
    %v3050 = vrcp.pop %v3049
    %v3051 = vmul.f32 %v3035, %v3050
    %v3052 = vmul.f32 %v3051, 0.00036900368
    %v3053 = vsub.f32 %v2042, %v3052
    %v3054 = vlaneseq
    %v3055 = vshrl.u32 %v3054, 7
    %v3056 = vsub.s32 0, %v3055
    %v3057 = vrot.slane %v2855, %v3056
    %3058 = vmatprep.subr.mxu0 0.0
    %3059 = vmatpush1.xpose.msra.mxu0 %v2826
    %3060 = vmatprep.subr.mxu0 0.0
    %3061 = vmatpush1.xpose.msra.mxu0 %v2827
    %3062 = vmatprep.subr.mxu0 0.0
    %3063 = vmatpush1.xpose.msra.mxu0 %v2828
    %3064 = vmatprep.subr.mxu0 0.0
    %3065 = vmatpush1.xpose.msra.mxu0 %v2829
    %3066 = vmatprep.subr.mxu0 0.0
    %3067 = vmatpush1.xpose.msra.mxu0 %v2830
    %3068 = vmatprep.subr.mxu0 0.0
    %3069 = vmatpush1.xpose.msra.mxu0 %v2831
    %3070 = vmatprep.subr.mxu0 0.0
    %3071 = vmatpush1.xpose.msra.mxu0 %v2832
    %3072 = vmatprep.subr.mxu0 0.0
    %3073 = vmatpush1.xpose.msra.mxu0 %v2833
    %3074 = vmatprep.subr.mxu0 0.0
    %3075 = vmatpush1.xpose.msra.mxu0 0.0
    %3076 = vmatprep.subr.mxu0 0.0
    %3077 = vmatpush1.xpose.msra.mxu0 0.0
    %3078 = vmatprep.subr.mxu0 0.0
    %3079 = vmatpush1.xpose.msra.mxu0 0.0
    %3080 = vmatprep.subr.mxu0 0.0
    %3081 = vmatpush1.xpose.msra.mxu0 0.0
    %3082 = vmatprep.subr.mxu0 0.0
    %3083 = vmatpush1.xpose.msra.mxu0 0.0
    %3084 = vmatprep.subr.mxu0 0.0
    %3085 = vmatpush1.xpose.msra.mxu0 0.0
    %3086 = vmatprep.subr.mxu0 0.0
    %3087 = vmatpush1.xpose.msra.mxu0 0.0
    %3088 = vmatprep.subr.mxu0 0.0
    %3089 = vmatpush1.xpose.msra.mxu0 0.0
    %3090 = vmatprep.subr.mxu0 0.0
    %3091 = vmatpush1.xpose.msra.mxu0 0.0
    %3092 = vmatprep.subr.mxu0 0.0
    %3093 = vmatpush1.xpose.msra.mxu0 0.0
    %3094 = vmatprep.subr.mxu0 0.0
    %3095 = vmatpush1.xpose.msra.mxu0 0.0
    %3096 = vmatprep.subr.mxu0 0.0
    %3097 = vmatpush1.xpose.msra.mxu0 0.0
    %3098 = vmatprep.subr.mxu0 0.0
    %3099 = vmatpush1.xpose.msra.mxu0 0.0
    %3100 = vmatprep.subr.mxu0 0.0
    %3101 = vmatpush1.xpose.msra.mxu0 0.0
    %3102 = vmatprep.subr.mxu0 0.0
    %3103 = vmatpush1.xpose.msra.mxu0 0.0
    %3104 = vmatprep.subr.mxu0 0.0
    %3105 = vmatpush1.xpose.msra.mxu0 0.0
    %3106 = vmatprep.subr.mxu0 0.0
    %3107 = vmatpush1.xpose.msra.mxu0 0.0
    %3108 = vmatprep.subr.mxu0 0.0
    %3109 = vmatpush1.xpose.msra.mxu0 0.0
    %3110 = vmatprep.subr.mxu0 0.0
    %3111 = vmatpush1.xpose.msra.mxu0 0.0
    %3112 = vmatprep.subr.mxu0 0.0
    %3113 = vmatpush1.xpose.msra.mxu0 0.0
    %3114 = vmatprep.subr.mxu0 0.0
    %3115 = vmatpush1.xpose.msra.mxu0 0.0
    %3116 = vmatprep.subr.mxu0 0.0
    %3117 = vmatpush1.xpose.msra.mxu0 0.0
    %3118 = vmatprep.subr.mxu0 0.0
    %3119 = vmatpush1.xpose.msra.mxu0 0.0
    %3120 = vmatprep.subr.mxu0 0.0
    %3121 = vmatpush1.xpose.msra.mxu0 0.0
    %3122 = vmatprep.mubr.f32.mxu0 0.0
    %3123 = vmatmul.mubr.f32.gmra.mrb[0].mxu0 %v33
    %v3124 = vpop.f32.mrb[0].mxu0
    %v3125 = vadd.f32 %v3057, %v3124
    %v3126 = vpop.f32.mrb[0].mxu0
    %3127 = vdwg.mxu0
    %v3128 = vmax.f32 %v3125, 0.0
    %v3129 = vlaneseq
    %v3130 = vshrl.u32 %v3129, 7
    %v3131 = vsub.s32 0, %v3130
    %v3132 = vrot.slane %v3053, %v3131
    %v3134 = vsel %vm131, %v3128, 0
    %3136 = vmatprep.subr.mxu0 0.0
    %3137 = vmatpush1.msra.mxu0 %v3024
    %3138 = vmatprep.subr.mxu0 0.0
    %3139 = vmatpush1.msra.mxu0 %v3025
    %3140 = vmatprep.subr.mxu0 0.0
    %3141 = vmatpush1.msra.mxu0 %v3026
    %3142 = vmatprep.subr.mxu0 0.0
    %3143 = vmatpush1.msra.mxu0 %v3027
    %3144 = vmatprep.subr.mxu0 0.0
    %3145 = vmatpush1.msra.mxu0 %v3028
    %3146 = vmatprep.subr.mxu0 0.0
    %3147 = vmatpush1.msra.mxu0 %v3029
    %3148 = vmatprep.subr.mxu0 0.0
    %3149 = vmatpush1.msra.mxu0 %v3030
    %3150 = vmatprep.subr.mxu0 0.0
    %3151 = vmatpush1.msra.mxu0 %v3031
    %3152 = vmatprep.subr.mxu0 0.0
    %3153 = vmatpush1.msra.mxu0 0.0
    %3154 = vmatprep.subr.mxu0 0.0
    %3155 = vmatpush1.msra.mxu0 0.0
    %3156 = vmatprep.subr.mxu0 0.0
    %3157 = vmatpush1.msra.mxu0 0.0
    %3158 = vmatprep.subr.mxu0 0.0
    %3159 = vmatpush1.msra.mxu0 0.0
    %3160 = vmatprep.subr.mxu0 0.0
    %3161 = vmatpush1.msra.mxu0 0.0
    %3162 = vmatprep.subr.mxu0 0.0
    %3163 = vmatpush1.msra.mxu0 0.0
    %3164 = vmatprep.subr.mxu0 0.0
    %3165 = vmatpush1.msra.mxu0 0.0
    %3166 = vmatprep.subr.mxu0 0.0
    %3167 = vmatpush1.msra.mxu0 0.0
    %3168 = vmatprep.subr.mxu0 0.0
    %3169 = vmatpush1.msra.mxu0 0.0
    %3170 = vmatprep.subr.mxu0 0.0
    %3171 = vmatpush1.msra.mxu0 0.0
    %3172 = vmatprep.subr.mxu0 0.0
    %3173 = vmatpush1.msra.mxu0 0.0
    %3174 = vmatprep.subr.mxu0 0.0
    %3175 = vmatpush1.msra.mxu0 0.0
    %3176 = vmatprep.subr.mxu0 0.0
    %3177 = vmatpush1.msra.mxu0 0.0
    %3178 = vmatprep.subr.mxu0 0.0
    %3179 = vmatpush1.msra.mxu0 0.0
    %3180 = vmatprep.subr.mxu0 0.0
    %3181 = vmatpush1.msra.mxu0 0.0
    %3182 = vmatprep.subr.mxu0 0.0
    %3183 = vmatpush1.msra.mxu0 0.0
    %3184 = vmatprep.subr.mxu0 0.0
    %3185 = vmatpush1.msra.mxu0 0.0
    %3186 = vmatprep.subr.mxu0 0.0
    %3187 = vmatpush1.msra.mxu0 0.0
    %3188 = vmatprep.subr.mxu0 0.0
    %3189 = vmatpush1.msra.mxu0 0.0
    %3190 = vmatprep.subr.mxu0 0.0
    %3191 = vmatpush1.msra.mxu0 0.0
    %3192 = vmatprep.subr.mxu0 0.0
    %3193 = vmatpush1.msra.mxu0 0.0
    %3194 = vmatprep.subr.mxu0 0.0
    %3195 = vmatpush1.msra.mxu0 0.0
    %3196 = vmatprep.subr.mxu0 0.0
    %3197 = vmatpush1.msra.mxu0 0.0
    %3198 = vmatprep.subr.mxu0 0.0
    %3199 = vmatpush1.msra.mxu0 0.0
    %3200 = vmatprep.mubr.f32.mxu0 0.0
    %3201 = vmatmul.mubr.f32.gmra.mrb[0].mxu0 %v3134
    %v3202 = vpop.f32.mrb[0].mxu0
    %v3203 = vadd.f32 %v3132, %v3202
    %v3204 = vpop.f32.mrb[0].mxu0
    %3205 = vdwg.mxu0
    %v3206 = vxor.u32 %v3203, 2147483648
    %v3207 = vmul.f32 %v3206, 1.442695
    %v3208 = vpow.pop %v3207
    %v3209 = vadd.f32 %v3208, 1.0
    %v3210 = vrcp.pop %v3209
    %v3211 = vmul.f32 1.0, %v3210
    %v3212 = vrot.slane %v3211, 4
    %v3213 = vadd.f32 %v3211, %v3212
    %v3214 = vrot.slane %v3213, 2
    %v3215 = vadd.f32 %v3213, %v3214
    %v3216 = vrot.slane %v3215, 1
    %v3217 = vadd.f32 %v3215, %v3216
    %v3218 = vmul.f32 %v3217, %v217
    %v3219 = vmul.f32 %v33, %v3218
    %3220 = vadd.xlane.f32.xlu0 %v3219
    %v3221 = vpop.xlane.xlu0 %3220
    %3222 = vst [vmem:[%s4] sm:$0xff] %v3221
    // Predicated region
    $region22: #{simple_meta_learning_forward.1} parent=1 // pred_check
      _
    $region23: #{simple_meta_learning_forward.1} parent=1 // pred_check_branch
      %3224 = sbr.rel (0) target = $region25
    $region24: #{simple_meta_learning_forward.1} parent=1 // pred_region
      _
    $region25: #{simple_meta_learning_forward.1} parent=1 // pred_fallthru
      _
    // Predicated region
    $region26: #{simple_meta_learning_forward.1} parent=1 // pred_check
      _
    $region27: #{simple_meta_learning_forward.1} parent=1 // pred_check_branch
      %3226 = sbr.rel (0) target = $region29
    $region28: #{simple_meta_learning_forward.1} parent=1 // pred_region
      _
    $region29: #{simple_meta_learning_forward.1} parent=1 // pred_fallthru
      _
    %3227 = vsyncpa [#allocation11], 1

</llo_original>
